<compile_context>
chip_gen: v7x
topology: tpu7x:2x2x1
jax: 0.10.0
libtpu: 0.0.40
codegen_flags: <defaults>
</compile_context>

<pallas_src>
import jax
import jax.numpy as jnp
import numpy as np
from jax.experimental import pallas as pl
from jax.experimental.pallas import tpu as pltpu

# ----------------------------- model config ---------------------------------
ENCODED_DIM = 4          # encoded_dimension
N_CIRC = 2               # n_circular_dimensions
N_LIN = 2                # n_linear_dimensions
HIDDEN = 32              # hidden_layer_dimension (small for the demo)
HALF_HIDDEN = HIDDEN // 2
# n_hidden_layers = 1: wide_n_deep = Linear(feat,16)+Tanh, Linear(16,32)+Tanh,
#                      Linear(32,16)+Tanh, Linear(16,4).

P_DIM = N_CIRC + N_LIN            # raw phase input dim
FEAT_DIM = 2 * N_CIRC + N_LIN     # ring-expanded (stacked) feature dim

BATCH = 128                       # demo batch (multiple of 8 sublanes)

# --------------------- packed-parameter buffer layout ------------------------
# One (TOTAL_ROWS, PACK_W) f32 buffer.  Every section starts on an 8-sublane
# boundary so all in-kernel static slices are trivially aligned.
PACK_W = 128
ROW_W0 = 0                        # (FEAT_DIM, HALF_HIDDEN)    rows  0..5
ROW_B0 = 8                        # (1, HALF_HIDDEN)           row   8
ROW_W1 = 16                       # (HALF_HIDDEN, HIDDEN)      rows 16..31
ROW_B1 = 32                       # (1, HIDDEN)                row  32
ROW_W2 = 40                       # (HIDDEN, HALF_HIDDEN)      rows 40..71
ROW_B2 = 72                       # (1, HALF_HIDDEN)           row  72
ROW_W3 = 80                       # (HALF_HIDDEN, ENCODED_DIM) rows 80..95
ROW_B3 = 96                       # (1, ENCODED_DIM)           row  96
TOTAL_ROWS = 104


# ------------------------------ Pallas kernel --------------------------------
def encoder1d_kernel(x_ref, p_ref, o_ref):
    """Full Encoder1D.forward in natural (batch, feature) layout.

    x_ref : (B, P_DIM)            raw phases
    p_ref : (TOTAL_ROWS, PACK_W)  packed weights + biases (see layout above)
    o_ref : (B, ENCODED_DIM)
    """
    x = x_ref[...]                                    # (B, P_DIM)
    circ = x[:, :N_CIRC]                              # (B, N_CIRC)
    lin = x[:, N_CIRC:]                               # (B, N_LIN)

    # Ring expansion + layer 0 fused into ONE matmul: feature order matches
    # the reordered W0 block [cos-rows | sin-rows | lin-rows].
    feat = jnp.concatenate([jnp.cos(circ), jnp.sin(circ), lin], axis=-1)  # (B, FEAT_DIM)

    w0 = p_ref[ROW_W0:ROW_W0 + FEAT_DIM, :HALF_HIDDEN]
    b0 = p_ref[ROW_B0:ROW_B0 + 1, :HALF_HIDDEN]
    h = jnp.tanh(jnp.dot(feat, w0, preferred_element_type=jnp.float32) + b0)

    w1 = p_ref[ROW_W1:ROW_W1 + HALF_HIDDEN, :HIDDEN]
    b1 = p_ref[ROW_B1:ROW_B1 + 1, :HIDDEN]
    h = jnp.tanh(jnp.dot(h, w1, preferred_element_type=jnp.float32) + b1)

    w2 = p_ref[ROW_W2:ROW_W2 + HIDDEN, :HALF_HIDDEN]
    b2 = p_ref[ROW_B2:ROW_B2 + 1, :HALF_HIDDEN]
    h = jnp.tanh(jnp.dot(h, w2, preferred_element_type=jnp.float32) + b2)

    w3 = p_ref[ROW_W3:ROW_W3 + HALF_HIDDEN, :ENCODED_DIM]
    b3 = p_ref[ROW_B3:ROW_B3 + 1, :ENCODED_DIM]
    out = jnp.dot(h, w3, preferred_element_type=jnp.float32) + b3
    o_ref[...] = out.astype(o_ref.dtype)


# ------------------------------ param prep -----------------------------------
def prepare_params(params):
    """One-time (outside the hot path) packing of all weights/biases.

    params["w0"] is (FEAT_DIM, HALF_HIDDEN) in (in, out) layout with the
    PyTorch feature order [cos0, sin0, cos1, sin1, lin0, lin1].  Its rows are
    permuted once to the kernel's stacked order [cos*, sin*, lin*], then every
    weight matrix / bias is written into one (TOTAL_ROWS, PACK_W) buffer.
    """
    perm = (list(range(0, 2 * N_CIRC, 2))        # cos rows
            + list(range(1, 2 * N_CIRC, 2))      # sin rows
            + list(range(2 * N_CIRC, FEAT_DIM))) # linear rows
    w0s = params["w0"][np.array(perm), :]        # (FEAT_DIM, HALF_HIDDEN)

    buf = jnp.zeros((TOTAL_ROWS, PACK_W), jnp.float32)
    buf = buf.at[ROW_W0:ROW_W0 + FEAT_DIM, :HALF_HIDDEN].set(w0s)
    buf = buf.at[ROW_B0, :HALF_HIDDEN].set(params["b0"])
    buf = buf.at[ROW_W1:ROW_W1 + HALF_HIDDEN, :HIDDEN].set(params["w1"])
    buf = buf.at[ROW_B1, :HIDDEN].set(params["b1"])
    buf = buf.at[ROW_W2:ROW_W2 + HIDDEN, :HALF_HIDDEN].set(params["w2"])
    buf = buf.at[ROW_B2, :HALF_HIDDEN].set(params["b2"])
    buf = buf.at[ROW_W3:ROW_W3 + HALF_HIDDEN, :ENCODED_DIM].set(params["w3"])
    buf = buf.at[ROW_B3, :ENCODED_DIM].set(params["b3"])
    return buf


# ------------------------------ wrapper --------------------------------------
_VMEM_SPEC = pl.BlockSpec(memory_space=pltpu.MemorySpace.VMEM)


def _cost_estimate(batch):
    flops = 2 * batch * (FEAT_DIM * HALF_HIDDEN + HALF_HIDDEN * HIDDEN
                         + HIDDEN * HALF_HIDDEN + HALF_HIDDEN * ENCODED_DIM)
    transcendentals = batch * (2 * N_CIRC + HALF_HIDDEN + HIDDEN + HALF_HIDDEN)
    bytes_accessed = 4 * (batch * P_DIM + TOTAL_ROWS * PACK_W
                          + batch * ENCODED_DIM)
    return pl.CostEstimate(flops=flops, transcendentals=transcendentals,
                           bytes_accessed=bytes_accessed)


@jax.jit
def encoder1d_forward(x, packed):
    """x: (B, P_DIM) float32.  packed: output of prepare_params()."""
    B = x.shape[0]
    assert B % 8 == 0, "batch must be a multiple of 8 sublanes"
    # Single kernel invocation (no grid): whole batch + all parameters in VMEM,
    # exactly two input DMAs and one output DMA, no wrapper-side transposes.
    # TODO(synk): for very large B, add a 1-D "parallel" grid over batch tiles
    # (>=256 rows/tile to fill the 256-wide MXU on v6e/v7x and use both v7x
    # TensorCores) and size tiles against v7x's 64 MiB VMEM.
    return pl.pallas_call(
        encoder1d_kernel,
        out_shape=jax.ShapeDtypeStruct((B, ENCODED_DIM), jnp.float32),
        in_specs=[_VMEM_SPEC, _VMEM_SPEC],
        out_specs=_VMEM_SPEC,
        cost_estimate=_cost_estimate(B),
    )(x, packed)


# --------------------------- pure-JAX reference -------------------------------
def encoder1d_reference(x, params):
    circ = x[..., :N_CIRC]
    lin = x[..., N_CIRC:]
    ring = jnp.stack([jnp.cos(circ), jnp.sin(circ)], axis=-1)
    flat_ring = ring.reshape(*circ.shape[:-1], -1)    # interleaved cos/sin
    feat = jnp.concatenate([flat_ring, lin], axis=-1)
    h = jnp.tanh(feat @ params["w0"] + params["b0"])
    h = jnp.tanh(h @ params["w1"] + params["b1"])
    h = jnp.tanh(h @ params["w2"] + params["b2"])
    return h @ params["w3"] + params["b3"]


# ------------------------------ init ------------------------------------------
def init_params(key):
    ks = jax.random.split(key, 8)

    def lin_init(kw, fan_in, fan_out):
        scale = 1.0 / np.sqrt(fan_in)
        return jax.random.uniform(kw, (fan_in, fan_out), jnp.float32,
                                  -scale, scale)

    return {
        "w0": lin_init(ks[0], FEAT_DIM, HALF_HIDDEN),
        "b0": jax.random.uniform(ks[1], (HALF_HIDDEN,), jnp.float32, -0.1, 0.1),
        "w1": lin_init(ks[2], HALF_HIDDEN, HIDDEN),
        "b1": jax.random.uniform(ks[3], (HIDDEN,), jnp.float32, -0.1, 0.1),
        "w2": lin_init(ks[4], HIDDEN, HALF_HIDDEN),
        "b2": jax.random.uniform(ks[5], (HALF_HIDDEN,), jnp.float32, -0.1, 0.1),
        "w3": lin_init(ks[6], HALF_HIDDEN, ENCODED_DIM),
        "b3": jax.random.uniform(ks[7], (ENCODED_DIM,), jnp.float32, -0.1, 0.1),
    }


# ------------------------------ main ------------------------------------------
if __name__ == "__main__":
    key = jax.random.PRNGKey(0)
    kx, kp = jax.random.split(key)
    x = jax.random.uniform(kx, (BATCH, P_DIM), jnp.float32, -np.pi, np.pi)
    params = init_params(kp)

    # Parameter packing done once, outside the jitted forward.
    packed = jax.block_until_ready(prepare_params(params))

    out = jax.block_until_ready(encoder1d_forward(x, packed))

    ref = encoder1d_reference(x, params)
    np.testing.assert_allclose(np.asarray(out), np.asarray(ref),
                               rtol=1e-5, atol=2e-5)
    print("KERNEL_OK")
</pallas_src>

<mosaic_0001>
module attributes {stable_mosaic.version = 11 : i64} {
  func.func @encoder1d_kernel(%arg0: memref<128x4xf32, #tpu.memory_space<vmem>>, %arg1: memref<104x128xf32, #tpu.memory_space<vmem>>, %arg2: memref<128x4xf32, #tpu.memory_space<vmem>>) attributes {dimension_semantics = [], scalar_prefetch = 0 : i64, scratch_operands = 0 : i64, tpu.core_type = #tpu.core_type<tc>} {
    %c0 = arith.constant 0 : index
    %c0_0 = arith.constant 0 : index
    %0 = vector.load %arg0[%c0, %c0_0] : memref<128x4xf32, #tpu.memory_space<vmem>>, vector<128x4xf32>
    %1 = vector.extract_strided_slice %0 {offsets = [0, 0], sizes = [128, 2], strides = [1, 1]} : vector<128x4xf32> to vector<128x2xf32>
    %2 = vector.extract_strided_slice %0 {offsets = [0, 2], sizes = [128, 2], strides = [1, 1]} : vector<128x4xf32> to vector<128x2xf32>
    %3 = math.cos %1 : vector<128x2xf32>
    %4 = math.sin %1 : vector<128x2xf32>
    %5 = tpu.concatenate %3, %4, %2 in 1 : vector<128x2xf32>, vector<128x2xf32>, vector<128x2xf32> -> vector<128x6xf32>
    %c0_1 = arith.constant 0 : index
    %c0_2 = arith.constant 0 : index
    %6 = vector.load %arg1[%c0_1, %c0_2] : memref<104x128xf32, #tpu.memory_space<vmem>>, vector<6x16xf32>
    %c8 = arith.constant 8 : index
    %c0_3 = arith.constant 0 : index
    %7 = vector.load %arg1[%c8, %c0_3] : memref<104x128xf32, #tpu.memory_space<vmem>>, vector<1x16xf32>
    %cst = arith.constant dense<0.000000e+00> : vector<128x16xf32>
    %8 = tpu.matmul %5, %6, %cst {dimension_numbers = #tpu.dot_dimension_numbers<[1], [0], [0], [1], [0, 0, 1, 1], [], []>} : vector<128x6xf32>, vector<6x16xf32>, vector<128x16xf32> -> vector<128x16xf32>
    %9 = vector.broadcast %7 : vector<1x16xf32> to vector<128x16xf32>
    %10 = arith.addf %8, %9 : vector<128x16xf32>
    %11 = math.tanh %10 : vector<128x16xf32>
    %c16 = arith.constant 16 : index
    %c0_4 = arith.constant 0 : index
    %12 = vector.load %arg1[%c16, %c0_4] : memref<104x128xf32, #tpu.memory_space<vmem>>, vector<16x32xf32>
    %c32 = arith.constant 32 : index
    %c0_5 = arith.constant 0 : index
    %13 = vector.load %arg1[%c32, %c0_5] : memref<104x128xf32, #tpu.memory_space<vmem>>, vector<1x32xf32>
    %cst_6 = arith.constant dense<0.000000e+00> : vector<128x32xf32>
    %14 = tpu.matmul %11, %12, %cst_6 {dimension_numbers = #tpu.dot_dimension_numbers<[1], [0], [0], [1], [0, 0, 1, 1], [], []>} : vector<128x16xf32>, vector<16x32xf32>, vector<128x32xf32> -> vector<128x32xf32>
    %15 = vector.broadcast %13 : vector<1x32xf32> to vector<128x32xf32>
    %16 = arith.addf %14, %15 : vector<128x32xf32>
    %17 = math.tanh %16 : vector<128x32xf32>
    %c40 = arith.constant 40 : index
    %c0_7 = arith.constant 0 : index
    %18 = vector.load %arg1[%c40, %c0_7] : memref<104x128xf32, #tpu.memory_space<vmem>>, vector<32x16xf32>
    %c72 = arith.constant 72 : index
    %c0_8 = arith.constant 0 : index
    %19 = vector.load %arg1[%c72, %c0_8] : memref<104x128xf32, #tpu.memory_space<vmem>>, vector<1x16xf32>
    %cst_9 = arith.constant dense<0.000000e+00> : vector<128x16xf32>
    %20 = tpu.matmul %17, %18, %cst_9 {dimension_numbers = #tpu.dot_dimension_numbers<[1], [0], [0], [1], [0, 0, 1, 1], [], []>} : vector<128x32xf32>, vector<32x16xf32>, vector<128x16xf32> -> vector<128x16xf32>
    %21 = vector.broadcast %19 : vector<1x16xf32> to vector<128x16xf32>
    %22 = arith.addf %20, %21 : vector<128x16xf32>
    %23 = math.tanh %22 : vector<128x16xf32>
    %c80 = arith.constant 80 : index
    %c0_10 = arith.constant 0 : index
    %24 = vector.load %arg1[%c80, %c0_10] : memref<104x128xf32, #tpu.memory_space<vmem>>, vector<16x4xf32>
    %c96 = arith.constant 96 : index
    %c0_11 = arith.constant 0 : index
    %25 = vector.load %arg1[%c96, %c0_11] : memref<104x128xf32, #tpu.memory_space<vmem>>, vector<1x4xf32>
    %cst_12 = arith.constant dense<0.000000e+00> : vector<128x4xf32>
    %26 = tpu.matmul %23, %24, %cst_12 {dimension_numbers = #tpu.dot_dimension_numbers<[1], [0], [0], [1], [0, 0, 1, 1], [], []>} : vector<128x16xf32>, vector<16x4xf32>, vector<128x4xf32> -> vector<128x4xf32>
    %27 = vector.broadcast %25 : vector<1x4xf32> to vector<128x4xf32>
    %28 = arith.addf %26, %27 : vector<128x4xf32>
    %c0_13 = arith.constant 0 : index
    %c0_14 = arith.constant 0 : index
    %29 = vector.load %arg2[%c0_13, %c0_14] : memref<128x4xf32, #tpu.memory_space<vmem>>, vector<128x4xf32>
    tpu.vector_store %arg2[%c0_13, %c0_14], %28 {strides = array<i32>} : memref<128x4xf32, #tpu.memory_space<vmem>>, vector<128x4xf32>,
    return
  }
}

</mosaic_0001>

<llo_original>
// kernel: encoder1d_forward.1
$region0: #{encoder1d_forward.1}
  #allocation0 [shape = 'u32[]', space=smem, size = 0x4, offset = 0x4, fixed_abs, tag = 'smem constant byte address 0x4 - core index']
  #allocation1 [shape = 'u32[144,128]{1,0:T(1,128)}', space=vmem, size = 0x12000, scoped, tag = 'internal scratch']
  %s0 = inlined_call_operand.vmem [shape: f32[128,4], index: 0, kind: input, shape index: {}]
  %s1 = inlined_call_operand.vmem [shape: f32[104,128], index: 1, kind: input, shape index: {}]
  %s2 = inlined_call_operand.vmem [shape: f32[128,4], index: 2, kind: output, shape index: {}]
  %s3 = sld [smem:[#allocation0]]
  $region18: #{encoder1d_forward.1} parent=0
    _
  %s5 = ssub.s32 1, %s3
  %s6 = scalar_select 0, %s5, %s3
  // Predicated region
  $region2: #{encoder1d_forward.1} parent=0 // pred_check
    _
  $region3: #{encoder1d_forward.1} parent=0 // pred_check_branch
    %8 = sbr.rel (0) target = $region5
  $region4: #{encoder1d_forward.1} parent=0 // pred_region
    _
  $region5: #{encoder1d_forward.1} parent=0 // pred_fallthru
    _
  // Predicated region
  $region6: #{encoder1d_forward.1} parent=0 // pred_check
    _
  $region7: #{encoder1d_forward.1} parent=0 // pred_check_branch
    %10 = sbr.rel (0) target = $region9
  $region8: #{encoder1d_forward.1} parent=0 // pred_region
    _
  $region9: #{encoder1d_forward.1} parent=0 // pred_fallthru
    _
  %v11 = vld [vmem:[%s0] sm:$0xff]
  %v12 = vld [vmem:[%s0 + $0x8] sm:$0xff]
  %v13 = vld [vmem:[%s0 + $0x10] sm:$0xff]
  %v14 = vld [vmem:[%s0 + $0x18] sm:$0xff]
  %v15 = vld [vmem:[%s0 + $0x20] sm:$0xff]
  %v16 = vld [vmem:[%s0 + $0x28] sm:$0xff]
  %v17 = vld [vmem:[%s0 + $0x30] sm:$0xff]
  %v18 = vld [vmem:[%s0 + $0x38] sm:$0xff]
  %v19 = vld [vmem:[%s0 + $0x40] sm:$0xff]
  %v20 = vld [vmem:[%s0 + $0x48] sm:$0xff]
  %v21 = vld [vmem:[%s0 + $0x50] sm:$0xff]
  %v22 = vld [vmem:[%s0 + $0x58] sm:$0xff]
  %v23 = vld [vmem:[%s0 + $0x60] sm:$0xff]
  %v24 = vld [vmem:[%s0 + $0x68] sm:$0xff]
  %v25 = vld [vmem:[%s0 + $0x70] sm:$0xff]
  %v26 = vld [vmem:[%s0 + $0x78] sm:$0xff]
  %v27 = vand.u32 2147483647, %v11
  %vm28 = vcmp.le.f32.partialorder %v27, 0.7853982
  %vm29 = vcmp.lt.s32.totalorder %v11, 0
  %v30 = vand.u32 %v11, 2139095040
  %v31 = vshrl.u32 %v30, 23
  %v32 = vsub.s32 %v31, 127
  %v33 = vand.u32 2147483647, %v11
  %v34 = vand.u32 %v33, 8388607
  %v35 = vor.u32 %v34, 8388608
  %v36 = vsub.s32 0, %v35
  %v37 = vadd.s32 %v32, 1
  %vm38 = vcmp.gt.s32.totalorder %v37, 0
  %v39 = vsel %vm38, %v37, 0
  %v40 = vshrl.u32 %v39, 5
  %v41 = vand.u32 %v39, 31
  %v42 = vsub.s32 32, %v41
  %v43 = vshrl.u32 683565275, %v42
  %v44 = vshll.u32 683565275, %v41
  %v45 = vshrl.u32 2475754826, %v42
  %v46 = vor.u32 %v44, %v45
  %v47 = vshll.u32 2475754826, %v41
  %v48 = vshrl.u32 2131351028, %v42
  %v49 = vor.u32 %v47, %v48
  %v50 = vshll.u32 2131351028, %v41
  %v51 = vshrl.u32 2102212464, %v42
  %v52 = vor.u32 %v50, %v51
  %v53 = vshll.u32 2102212464, %v41
  %v54 = vshrl.u32 920167782, %v42
  %v55 = vor.u32 %v53, %v54
  %v56 = vshll.u32 920167782, %v41
  %v57 = vshrl.u32 1326507024, %v42
  %v58 = vor.u32 %v56, %v57
  %vm59 = vcmp.lt.s32.totalorder %v40, 1
  %vm60 = vcmp.lt.s32.totalorder %v40, 2
  %vm61 = vcmp.lt.s32.totalorder %v40, 3
  %vm62 = vcmp.lt.s32.totalorder %v40, 4
  %v63 = vsel %vm59, %v43, %v46
  %v64 = vsel %vm62, %v52, 2102212464
  %v65 = vsel %vm61, %v49, %v64
  %v66 = vsel %vm60, %v63, %v65
  %v67 = vsel %vm59, %v46, %v49
  %v68 = vsel %vm62, %v55, 920167782
  %v69 = vsel %vm61, %v52, %v68
  %v70 = vsel %vm60, %v67, %v69
  %v71 = vsel %vm59, %v49, %v52
  %v72 = vsel %vm62, %v58, 1326507024
  %v73 = vsel %vm61, %v55, %v72
  %v74 = vsel %vm60, %v71, %v73
  %v75 = vshll.u32 %v35, 8
  %v76 = vmul.u32.u64.compose %v75, %v74
  %v77 = vextract.low.u32 %v76
  %v78 = vextract.high.u32 %v76
  %v79 = vmul.u32.u64.compose %v75, %v70
  %v80 = vextract.low.u32 %v79
  %v81 = vextract.high.u32 %v79
  %v82 = vmul.u32 %v75, %v66
  %v83 = vadd.s32 %v78, %v80
  %vm84 = vc.u32 %v78, %v80
  %v85 = vadd.s32 %v81, 1
  %v86 = vsel %vm84, %v85, %v81
  %v87 = vadd.s32 %v82, %v86
  %v88 = vadd.s32 %v87, 536870912
  %v89 = vshrl.u32 %v88, 30
  %v90 = vshll.u32 %v89, 30
  %v91 = vsub.s32 %v87, %v90
  %vm92 = vcmp.lt.s32.totalorder %v91, 0
  %v93 = vsub.s32 0, %v91
  %v94 = vsel %vm92, %v93, %v91
  %v95 = vclz %v94
  %v96 = vsub.s32 %v95, 2
  %vm97 = vcmp.gt.s32.totalorder 0, %v96
  %v98 = vsel %vm97, 0, %v96
  %v99 = vsub.s32 32, %v98
  %v100 = vshll.u32 %v91, %v98
  %v101 = vshrl.u32 %v83, %v99
  %v102 = vor.u32 %v100, %v101
  %v103 = vsub.s32 4294967266, %v98
  %v104 = vadd.s32 %v103, 127
  %v105 = vshll.u32 %v104, 23
  %v106 = vor.u32 4788187, %v105
  %v107 = vand.u32 2147483647, %v106
  %v109 = vcvt.s32.f32 %v102
  %v110 = vmul.f32 %v109, %v107
  %v111 = vxor.u32 %v110, 2147483648
  %v112 = vsel %vm29, %v111, %v110
  %v113 = vsub.s32 4, %v89
  %v114 = vsel %vm29, %v113, %v89
  %v115 = vsel %vm28, %v11, %v112
  %v116 = vsel %vm28, 0, %v114
  %v117 = vcosq.f32.pop %v115
  %v118 = vsinq.f32.pop %v115
  %vm119 = vweird.f32 %v11
  %v120 = vand.u32 %v116, 3
  %vm121 = vcmp.lt.s32.totalorder %v120, 2
  %vm122 = vcmp.eq.s32.totalorder %v120, 0
  %v123 = vxor.u32 %v118, 2147483648
  %v124 = vsel %vm122, %v117, %v123
  %vm125 = vcmp.eq.s32.totalorder %v120, 2
  %v126 = vxor.u32 %v117, 2147483648
  %v127 = vsel %vm125, %v126, %v118
  %v128 = vsel %vm121, %v124, %v127
  %v129 = vsel %vm119, nan, %v128
  %v130 = vand.u32 2147483647, %v12
  %vm131 = vcmp.le.f32.partialorder %v130, 0.7853982
  %vm132 = vcmp.lt.s32.totalorder %v12, 0
  %v133 = vand.u32 %v12, 2139095040
  %v134 = vshrl.u32 %v133, 23
  %v135 = vsub.s32 %v134, 127
  %v136 = vand.u32 2147483647, %v12
  %v137 = vand.u32 %v136, 8388607
  %v138 = vor.u32 %v137, 8388608
  %v139 = vsub.s32 0, %v138
  %v140 = vadd.s32 %v135, 1
  %vm141 = vcmp.gt.s32.totalorder %v140, 0
  %v142 = vsel %vm141, %v140, 0
  %v143 = vshrl.u32 %v142, 5
  %v144 = vand.u32 %v142, 31
  %v145 = vsub.s32 32, %v144
  %v146 = vshrl.u32 683565275, %v145
  %v147 = vshll.u32 683565275, %v144
  %v148 = vshrl.u32 2475754826, %v145
  %v149 = vor.u32 %v147, %v148
  %v150 = vshll.u32 2475754826, %v144
  %v151 = vshrl.u32 2131351028, %v145
  %v152 = vor.u32 %v150, %v151
  %v153 = vshll.u32 2131351028, %v144
  %v154 = vshrl.u32 2102212464, %v145
  %v155 = vor.u32 %v153, %v154
  %v156 = vshll.u32 2102212464, %v144
  %v157 = vshrl.u32 920167782, %v145
  %v158 = vor.u32 %v156, %v157
  %v159 = vshll.u32 920167782, %v144
  %v160 = vshrl.u32 1326507024, %v145
  %v161 = vor.u32 %v159, %v160
  %vm162 = vcmp.lt.s32.totalorder %v143, 1
  %vm163 = vcmp.lt.s32.totalorder %v143, 2
  %vm164 = vcmp.lt.s32.totalorder %v143, 3
  %vm165 = vcmp.lt.s32.totalorder %v143, 4
  %v166 = vsel %vm162, %v146, %v149
  %v167 = vsel %vm165, %v155, 2102212464
  %v168 = vsel %vm164, %v152, %v167
  %v169 = vsel %vm163, %v166, %v168
  %v170 = vsel %vm162, %v149, %v152
  %v171 = vsel %vm165, %v158, 920167782
  %v172 = vsel %vm164, %v155, %v171
  %v173 = vsel %vm163, %v170, %v172
  %v174 = vsel %vm162, %v152, %v155
  %v175 = vsel %vm165, %v161, 1326507024
  %v176 = vsel %vm164, %v158, %v175
  %v177 = vsel %vm163, %v174, %v176
  %v178 = vshll.u32 %v138, 8
  %v179 = vmul.u32.u64.compose %v178, %v177
  %v180 = vextract.low.u32 %v179
  %v181 = vextract.high.u32 %v179
  %v182 = vmul.u32.u64.compose %v178, %v173
  %v183 = vextract.low.u32 %v182
  %v184 = vextract.high.u32 %v182
  %v185 = vmul.u32 %v178, %v169
  %v186 = vadd.s32 %v181, %v183
  %vm187 = vc.u32 %v181, %v183
  %v188 = vadd.s32 %v184, 1
  %v189 = vsel %vm187, %v188, %v184
  %v190 = vadd.s32 %v185, %v189
  %v191 = vadd.s32 %v190, 536870912
  %v192 = vshrl.u32 %v191, 30
  %v193 = vshll.u32 %v192, 30
  %v194 = vsub.s32 %v190, %v193
  %vm195 = vcmp.lt.s32.totalorder %v194, 0
  %v196 = vsub.s32 0, %v194
  %v197 = vsel %vm195, %v196, %v194
  %v198 = vclz %v197
  %v199 = vsub.s32 %v198, 2
  %vm200 = vcmp.gt.s32.totalorder 0, %v199
  %v201 = vsel %vm200, 0, %v199
  %v202 = vsub.s32 32, %v201
  %v203 = vshll.u32 %v194, %v201
  %v204 = vshrl.u32 %v186, %v202
  %v205 = vor.u32 %v203, %v204
  %v206 = vsub.s32 4294967266, %v201
  %v207 = vadd.s32 %v206, 127
  %v208 = vshll.u32 %v207, 23
  %v209 = vor.u32 4788187, %v208
  %v210 = vand.u32 2147483647, %v209
  %v212 = vcvt.s32.f32 %v205
  %v213 = vmul.f32 %v212, %v210
  %v214 = vxor.u32 %v213, 2147483648
  %v215 = vsel %vm132, %v214, %v213
  %v216 = vsub.s32 4, %v192
  %v217 = vsel %vm132, %v216, %v192
  %v218 = vsel %vm131, %v12, %v215
  %v219 = vsel %vm131, 0, %v217
  %v220 = vcosq.f32.pop %v218
  %v221 = vsinq.f32.pop %v218
  %vm222 = vweird.f32 %v12
  %v223 = vand.u32 %v219, 3
  %vm224 = vcmp.lt.s32.totalorder %v223, 2
  %vm225 = vcmp.eq.s32.totalorder %v223, 0
  %v226 = vxor.u32 %v221, 2147483648
  %v227 = vsel %vm225, %v220, %v226
  %vm228 = vcmp.eq.s32.totalorder %v223, 2
  %v229 = vxor.u32 %v220, 2147483648
  %v230 = vsel %vm228, %v229, %v221
  %v231 = vsel %vm224, %v227, %v230
  %v232 = vsel %vm222, nan, %v231
  %v233 = vand.u32 2147483647, %v13
  %vm234 = vcmp.le.f32.partialorder %v233, 0.7853982
  %vm235 = vcmp.lt.s32.totalorder %v13, 0
  %v236 = vand.u32 %v13, 2139095040
  %v237 = vshrl.u32 %v236, 23
  %v238 = vsub.s32 %v237, 127
  %v239 = vand.u32 2147483647, %v13
  %v240 = vand.u32 %v239, 8388607
  %v241 = vor.u32 %v240, 8388608
  %v242 = vsub.s32 0, %v241
  %v243 = vadd.s32 %v238, 1
  %vm244 = vcmp.gt.s32.totalorder %v243, 0
  %v245 = vsel %vm244, %v243, 0
  %v246 = vshrl.u32 %v245, 5
  %v247 = vand.u32 %v245, 31
  %v248 = vsub.s32 32, %v247
  %v249 = vshrl.u32 683565275, %v248
  %v250 = vshll.u32 683565275, %v247
  %v251 = vshrl.u32 2475754826, %v248
  %v252 = vor.u32 %v250, %v251
  %v253 = vshll.u32 2475754826, %v247
  %v254 = vshrl.u32 2131351028, %v248
  %v255 = vor.u32 %v253, %v254
  %v256 = vshll.u32 2131351028, %v247
  %v257 = vshrl.u32 2102212464, %v248
  %v258 = vor.u32 %v256, %v257
  %v259 = vshll.u32 2102212464, %v247
  %v260 = vshrl.u32 920167782, %v248
  %v261 = vor.u32 %v259, %v260
  %v262 = vshll.u32 920167782, %v247
  %v263 = vshrl.u32 1326507024, %v248
  %v264 = vor.u32 %v262, %v263
  %vm265 = vcmp.lt.s32.totalorder %v246, 1
  %vm266 = vcmp.lt.s32.totalorder %v246, 2
  %vm267 = vcmp.lt.s32.totalorder %v246, 3
  %vm268 = vcmp.lt.s32.totalorder %v246, 4
  %v269 = vsel %vm265, %v249, %v252
  %v270 = vsel %vm268, %v258, 2102212464
  %v271 = vsel %vm267, %v255, %v270
  %v272 = vsel %vm266, %v269, %v271
  %v273 = vsel %vm265, %v252, %v255
  %v274 = vsel %vm268, %v261, 920167782
  %v275 = vsel %vm267, %v258, %v274
  %v276 = vsel %vm266, %v273, %v275
  %v277 = vsel %vm265, %v255, %v258
  %v278 = vsel %vm268, %v264, 1326507024
  %v279 = vsel %vm267, %v261, %v278
  %v280 = vsel %vm266, %v277, %v279
  %v281 = vshll.u32 %v241, 8
  %v282 = vmul.u32.u64.compose %v281, %v280
  %v283 = vextract.low.u32 %v282
  %v284 = vextract.high.u32 %v282
  %v285 = vmul.u32.u64.compose %v281, %v276
  %v286 = vextract.low.u32 %v285
  %v287 = vextract.high.u32 %v285
  %v288 = vmul.u32 %v281, %v272
  %v289 = vadd.s32 %v284, %v286
  %vm290 = vc.u32 %v284, %v286
  %v291 = vadd.s32 %v287, 1
  %v292 = vsel %vm290, %v291, %v287
  %v293 = vadd.s32 %v288, %v292
  %v294 = vadd.s32 %v293, 536870912
  %v295 = vshrl.u32 %v294, 30
  %v296 = vshll.u32 %v295, 30
  %v297 = vsub.s32 %v293, %v296
  %vm298 = vcmp.lt.s32.totalorder %v297, 0
  %v299 = vsub.s32 0, %v297
  %v300 = vsel %vm298, %v299, %v297
  %v301 = vclz %v300
  %v302 = vsub.s32 %v301, 2
  %vm303 = vcmp.gt.s32.totalorder 0, %v302
  %v304 = vsel %vm303, 0, %v302
  %v305 = vsub.s32 32, %v304
  %v306 = vshll.u32 %v297, %v304
  %v307 = vshrl.u32 %v289, %v305
  %v308 = vor.u32 %v306, %v307
  %v309 = vsub.s32 4294967266, %v304
  %v310 = vadd.s32 %v309, 127
  %v311 = vshll.u32 %v310, 23
  %v312 = vor.u32 4788187, %v311
  %v313 = vand.u32 2147483647, %v312
  %v315 = vcvt.s32.f32 %v308
  %v316 = vmul.f32 %v315, %v313
  %v317 = vxor.u32 %v316, 2147483648
  %v318 = vsel %vm235, %v317, %v316
  %v319 = vsub.s32 4, %v295
  %v320 = vsel %vm235, %v319, %v295
  %v321 = vsel %vm234, %v13, %v318
  %v322 = vsel %vm234, 0, %v320
  %v323 = vcosq.f32.pop %v321
  %v324 = vsinq.f32.pop %v321
  %vm325 = vweird.f32 %v13
  %v326 = vand.u32 %v322, 3
  %vm327 = vcmp.lt.s32.totalorder %v326, 2
  %vm328 = vcmp.eq.s32.totalorder %v326, 0
  %v329 = vxor.u32 %v324, 2147483648
  %v330 = vsel %vm328, %v323, %v329
  %vm331 = vcmp.eq.s32.totalorder %v326, 2
  %v332 = vxor.u32 %v323, 2147483648
  %v333 = vsel %vm331, %v332, %v324
  %v334 = vsel %vm327, %v330, %v333
  %v335 = vsel %vm325, nan, %v334
  %v336 = vand.u32 2147483647, %v14
  %vm337 = vcmp.le.f32.partialorder %v336, 0.7853982
  %vm338 = vcmp.lt.s32.totalorder %v14, 0
  %v339 = vand.u32 %v14, 2139095040
  %v340 = vshrl.u32 %v339, 23
  %v341 = vsub.s32 %v340, 127
  %v342 = vand.u32 2147483647, %v14
  %v343 = vand.u32 %v342, 8388607
  %v344 = vor.u32 %v343, 8388608
  %v345 = vsub.s32 0, %v344
  %v346 = vadd.s32 %v341, 1
  %vm347 = vcmp.gt.s32.totalorder %v346, 0
  %v348 = vsel %vm347, %v346, 0
  %v349 = vshrl.u32 %v348, 5
  %v350 = vand.u32 %v348, 31
  %v351 = vsub.s32 32, %v350
  %v352 = vshrl.u32 683565275, %v351
  %v353 = vshll.u32 683565275, %v350
  %v354 = vshrl.u32 2475754826, %v351
  %v355 = vor.u32 %v353, %v354
  %v356 = vshll.u32 2475754826, %v350
  %v357 = vshrl.u32 2131351028, %v351
  %v358 = vor.u32 %v356, %v357
  %v359 = vshll.u32 2131351028, %v350
  %v360 = vshrl.u32 2102212464, %v351
  %v361 = vor.u32 %v359, %v360
  %v362 = vshll.u32 2102212464, %v350
  %v363 = vshrl.u32 920167782, %v351
  %v364 = vor.u32 %v362, %v363
  %v365 = vshll.u32 920167782, %v350
  %v366 = vshrl.u32 1326507024, %v351
  %v367 = vor.u32 %v365, %v366
  %vm368 = vcmp.lt.s32.totalorder %v349, 1
  %vm369 = vcmp.lt.s32.totalorder %v349, 2
  %vm370 = vcmp.lt.s32.totalorder %v349, 3
  %vm371 = vcmp.lt.s32.totalorder %v349, 4
  %v372 = vsel %vm368, %v352, %v355
  %v373 = vsel %vm371, %v361, 2102212464
  %v374 = vsel %vm370, %v358, %v373
  %v375 = vsel %vm369, %v372, %v374
  %v376 = vsel %vm368, %v355, %v358
  %v377 = vsel %vm371, %v364, 920167782
  %v378 = vsel %vm370, %v361, %v377
  %v379 = vsel %vm369, %v376, %v378
  %v380 = vsel %vm368, %v358, %v361
  %v381 = vsel %vm371, %v367, 1326507024
  %v382 = vsel %vm370, %v364, %v381
  %v383 = vsel %vm369, %v380, %v382
  %v384 = vshll.u32 %v344, 8
  %v385 = vmul.u32.u64.compose %v384, %v383
  %v386 = vextract.low.u32 %v385
  %v387 = vextract.high.u32 %v385
  %v388 = vmul.u32.u64.compose %v384, %v379
  %v389 = vextract.low.u32 %v388
  %v390 = vextract.high.u32 %v388
  %v391 = vmul.u32 %v384, %v375
  %v392 = vadd.s32 %v387, %v389
  %vm393 = vc.u32 %v387, %v389
  %v394 = vadd.s32 %v390, 1
  %v395 = vsel %vm393, %v394, %v390
  %v396 = vadd.s32 %v391, %v395
  %v397 = vadd.s32 %v396, 536870912
  %v398 = vshrl.u32 %v397, 30
  %v399 = vshll.u32 %v398, 30
  %v400 = vsub.s32 %v396, %v399
  %vm401 = vcmp.lt.s32.totalorder %v400, 0
  %v402 = vsub.s32 0, %v400
  %v403 = vsel %vm401, %v402, %v400
  %v404 = vclz %v403
  %v405 = vsub.s32 %v404, 2
  %vm406 = vcmp.gt.s32.totalorder 0, %v405
  %v407 = vsel %vm406, 0, %v405
  %v408 = vsub.s32 32, %v407
  %v409 = vshll.u32 %v400, %v407
  %v410 = vshrl.u32 %v392, %v408
  %v411 = vor.u32 %v409, %v410
  %v412 = vsub.s32 4294967266, %v407
  %v413 = vadd.s32 %v412, 127
  %v414 = vshll.u32 %v413, 23
  %v415 = vor.u32 4788187, %v414
  %v416 = vand.u32 2147483647, %v415
  %v418 = vcvt.s32.f32 %v411
  %v419 = vmul.f32 %v418, %v416
  %v420 = vxor.u32 %v419, 2147483648
  %v421 = vsel %vm338, %v420, %v419
  %v422 = vsub.s32 4, %v398
  %v423 = vsel %vm338, %v422, %v398
  %v424 = vsel %vm337, %v14, %v421
  %v425 = vsel %vm337, 0, %v423
  %v426 = vcosq.f32.pop %v424
  %v427 = vsinq.f32.pop %v424
  %vm428 = vweird.f32 %v14
  %v429 = vand.u32 %v425, 3
  %vm430 = vcmp.lt.s32.totalorder %v429, 2
  %vm431 = vcmp.eq.s32.totalorder %v429, 0
  %v432 = vxor.u32 %v427, 2147483648
  %v433 = vsel %vm431, %v426, %v432
  %vm434 = vcmp.eq.s32.totalorder %v429, 2
  %v435 = vxor.u32 %v426, 2147483648
  %v436 = vsel %vm434, %v435, %v427
  %v437 = vsel %vm430, %v433, %v436
  %v438 = vsel %vm428, nan, %v437
  %v439 = vand.u32 2147483647, %v15
  %vm440 = vcmp.le.f32.partialorder %v439, 0.7853982
  %vm441 = vcmp.lt.s32.totalorder %v15, 0
  %v442 = vand.u32 %v15, 2139095040
  %v443 = vshrl.u32 %v442, 23
  %v444 = vsub.s32 %v443, 127
  %v445 = vand.u32 2147483647, %v15
  %v446 = vand.u32 %v445, 8388607
  %v447 = vor.u32 %v446, 8388608
  %v448 = vsub.s32 0, %v447
  %v449 = vadd.s32 %v444, 1
  %vm450 = vcmp.gt.s32.totalorder %v449, 0
  %v451 = vsel %vm450, %v449, 0
  %v452 = vshrl.u32 %v451, 5
  %v453 = vand.u32 %v451, 31
  %v454 = vsub.s32 32, %v453
  %v455 = vshrl.u32 683565275, %v454
  %v456 = vshll.u32 683565275, %v453
  %v457 = vshrl.u32 2475754826, %v454
  %v458 = vor.u32 %v456, %v457
  %v459 = vshll.u32 2475754826, %v453
  %v460 = vshrl.u32 2131351028, %v454
  %v461 = vor.u32 %v459, %v460
  %v462 = vshll.u32 2131351028, %v453
  %v463 = vshrl.u32 2102212464, %v454
  %v464 = vor.u32 %v462, %v463
  %v465 = vshll.u32 2102212464, %v453
  %v466 = vshrl.u32 920167782, %v454
  %v467 = vor.u32 %v465, %v466
  %v468 = vshll.u32 920167782, %v453
  %v469 = vshrl.u32 1326507024, %v454
  %v470 = vor.u32 %v468, %v469
  %vm471 = vcmp.lt.s32.totalorder %v452, 1
  %vm472 = vcmp.lt.s32.totalorder %v452, 2
  %vm473 = vcmp.lt.s32.totalorder %v452, 3
  %vm474 = vcmp.lt.s32.totalorder %v452, 4
  %v475 = vsel %vm471, %v455, %v458
  %v476 = vsel %vm474, %v464, 2102212464
  %v477 = vsel %vm473, %v461, %v476
  %v478 = vsel %vm472, %v475, %v477
  %v479 = vsel %vm471, %v458, %v461
  %v480 = vsel %vm474, %v467, 920167782
  %v481 = vsel %vm473, %v464, %v480
  %v482 = vsel %vm472, %v479, %v481
  %v483 = vsel %vm471, %v461, %v464
  %v484 = vsel %vm474, %v470, 1326507024
  %v485 = vsel %vm473, %v467, %v484
  %v486 = vsel %vm472, %v483, %v485
  %v487 = vshll.u32 %v447, 8
  %v488 = vmul.u32.u64.compose %v487, %v486
  %v489 = vextract.low.u32 %v488
  %v490 = vextract.high.u32 %v488
  %v491 = vmul.u32.u64.compose %v487, %v482
  %v492 = vextract.low.u32 %v491
  %v493 = vextract.high.u32 %v491
  %v494 = vmul.u32 %v487, %v478
  %v495 = vadd.s32 %v490, %v492
  %vm496 = vc.u32 %v490, %v492
  %v497 = vadd.s32 %v493, 1
  %v498 = vsel %vm496, %v497, %v493
  %v499 = vadd.s32 %v494, %v498
  %v500 = vadd.s32 %v499, 536870912
  %v501 = vshrl.u32 %v500, 30
  %v502 = vshll.u32 %v501, 30
  %v503 = vsub.s32 %v499, %v502
  %vm504 = vcmp.lt.s32.totalorder %v503, 0
  %v505 = vsub.s32 0, %v503
  %v506 = vsel %vm504, %v505, %v503
  %v507 = vclz %v506
  %v508 = vsub.s32 %v507, 2
  %vm509 = vcmp.gt.s32.totalorder 0, %v508
  %v510 = vsel %vm509, 0, %v508
  %v511 = vsub.s32 32, %v510
  %v512 = vshll.u32 %v503, %v510
  %v513 = vshrl.u32 %v495, %v511
  %v514 = vor.u32 %v512, %v513
  %v515 = vsub.s32 4294967266, %v510
  %v516 = vadd.s32 %v515, 127
  %v517 = vshll.u32 %v516, 23
  %v518 = vor.u32 4788187, %v517
  %v519 = vand.u32 2147483647, %v518
  %v521 = vcvt.s32.f32 %v514
  %v522 = vmul.f32 %v521, %v519
  %v523 = vxor.u32 %v522, 2147483648
  %v524 = vsel %vm441, %v523, %v522
  %v525 = vsub.s32 4, %v501
  %v526 = vsel %vm441, %v525, %v501
  %v527 = vsel %vm440, %v15, %v524
  %v528 = vsel %vm440, 0, %v526
  %v529 = vcosq.f32.pop %v527
  %v530 = vsinq.f32.pop %v527
  %vm531 = vweird.f32 %v15
  %v532 = vand.u32 %v528, 3
  %vm533 = vcmp.lt.s32.totalorder %v532, 2
  %vm534 = vcmp.eq.s32.totalorder %v532, 0
  %v535 = vxor.u32 %v530, 2147483648
  %v536 = vsel %vm534, %v529, %v535
  %vm537 = vcmp.eq.s32.totalorder %v532, 2
  %v538 = vxor.u32 %v529, 2147483648
  %v539 = vsel %vm537, %v538, %v530
  %v540 = vsel %vm533, %v536, %v539
  %v541 = vsel %vm531, nan, %v540
  %v542 = vand.u32 2147483647, %v16
  %vm543 = vcmp.le.f32.partialorder %v542, 0.7853982
  %vm544 = vcmp.lt.s32.totalorder %v16, 0
  %v545 = vand.u32 %v16, 2139095040
  %v546 = vshrl.u32 %v545, 23
  %v547 = vsub.s32 %v546, 127
  %v548 = vand.u32 2147483647, %v16
  %v549 = vand.u32 %v548, 8388607
  %v550 = vor.u32 %v549, 8388608
  %v551 = vsub.s32 0, %v550
  %v552 = vadd.s32 %v547, 1
  %vm553 = vcmp.gt.s32.totalorder %v552, 0
  %v554 = vsel %vm553, %v552, 0
  %v555 = vshrl.u32 %v554, 5
  %v556 = vand.u32 %v554, 31
  %v557 = vsub.s32 32, %v556
  %v558 = vshrl.u32 683565275, %v557
  %v559 = vshll.u32 683565275, %v556
  %v560 = vshrl.u32 2475754826, %v557
  %v561 = vor.u32 %v559, %v560
  %v562 = vshll.u32 2475754826, %v556
  %v563 = vshrl.u32 2131351028, %v557
  %v564 = vor.u32 %v562, %v563
  %v565 = vshll.u32 2131351028, %v556
  %v566 = vshrl.u32 2102212464, %v557
  %v567 = vor.u32 %v565, %v566
  %v568 = vshll.u32 2102212464, %v556
  %v569 = vshrl.u32 920167782, %v557
  %v570 = vor.u32 %v568, %v569
  %v571 = vshll.u32 920167782, %v556
  %v572 = vshrl.u32 1326507024, %v557
  %v573 = vor.u32 %v571, %v572
  %vm574 = vcmp.lt.s32.totalorder %v555, 1
  %vm575 = vcmp.lt.s32.totalorder %v555, 2
  %vm576 = vcmp.lt.s32.totalorder %v555, 3
  %vm577 = vcmp.lt.s32.totalorder %v555, 4
  %v578 = vsel %vm574, %v558, %v561
  %v579 = vsel %vm577, %v567, 2102212464
  %v580 = vsel %vm576, %v564, %v579
  %v581 = vsel %vm575, %v578, %v580
  %v582 = vsel %vm574, %v561, %v564
  %v583 = vsel %vm577, %v570, 920167782
  %v584 = vsel %vm576, %v567, %v583
  %v585 = vsel %vm575, %v582, %v584
  %v586 = vsel %vm574, %v564, %v567
  %v587 = vsel %vm577, %v573, 1326507024
  %v588 = vsel %vm576, %v570, %v587
  %v589 = vsel %vm575, %v586, %v588
  %v590 = vshll.u32 %v550, 8
  %v591 = vmul.u32.u64.compose %v590, %v589
  %v592 = vextract.low.u32 %v591
  %v593 = vextract.high.u32 %v591
  %v594 = vmul.u32.u64.compose %v590, %v585
  %v595 = vextract.low.u32 %v594
  %v596 = vextract.high.u32 %v594
  %v597 = vmul.u32 %v590, %v581
  %v598 = vadd.s32 %v593, %v595
  %vm599 = vc.u32 %v593, %v595
  %v600 = vadd.s32 %v596, 1
  %v601 = vsel %vm599, %v600, %v596
  %v602 = vadd.s32 %v597, %v601
  %v603 = vadd.s32 %v602, 536870912
  %v604 = vshrl.u32 %v603, 30
  %v605 = vshll.u32 %v604, 30
  %v606 = vsub.s32 %v602, %v605
  %vm607 = vcmp.lt.s32.totalorder %v606, 0
  %v608 = vsub.s32 0, %v606
  %v609 = vsel %vm607, %v608, %v606
  %v610 = vclz %v609
  %v611 = vsub.s32 %v610, 2
  %vm612 = vcmp.gt.s32.totalorder 0, %v611
  %v613 = vsel %vm612, 0, %v611
  %v614 = vsub.s32 32, %v613
  %v615 = vshll.u32 %v606, %v613
  %v616 = vshrl.u32 %v598, %v614
  %v617 = vor.u32 %v615, %v616
  %v618 = vsub.s32 4294967266, %v613
  %v619 = vadd.s32 %v618, 127
  %v620 = vshll.u32 %v619, 23
  %v621 = vor.u32 4788187, %v620
  %v622 = vand.u32 2147483647, %v621
  %v624 = vcvt.s32.f32 %v617
  %v625 = vmul.f32 %v624, %v622
  %v626 = vxor.u32 %v625, 2147483648
  %v627 = vsel %vm544, %v626, %v625
  %v628 = vsub.s32 4, %v604
  %v629 = vsel %vm544, %v628, %v604
  %v630 = vsel %vm543, %v16, %v627
  %v631 = vsel %vm543, 0, %v629
  %v632 = vcosq.f32.pop %v630
  %v633 = vsinq.f32.pop %v630
  %vm634 = vweird.f32 %v16
  %v635 = vand.u32 %v631, 3
  %vm636 = vcmp.lt.s32.totalorder %v635, 2
  %vm637 = vcmp.eq.s32.totalorder %v635, 0
  %v638 = vxor.u32 %v633, 2147483648
  %v639 = vsel %vm637, %v632, %v638
  %vm640 = vcmp.eq.s32.totalorder %v635, 2
  %v641 = vxor.u32 %v632, 2147483648
  %v642 = vsel %vm640, %v641, %v633
  %v643 = vsel %vm636, %v639, %v642
  %v644 = vsel %vm634, nan, %v643
  %v645 = vand.u32 2147483647, %v17
  %vm646 = vcmp.le.f32.partialorder %v645, 0.7853982
  %vm647 = vcmp.lt.s32.totalorder %v17, 0
  %v648 = vand.u32 %v17, 2139095040
  %v649 = vshrl.u32 %v648, 23
  %v650 = vsub.s32 %v649, 127
  %v651 = vand.u32 2147483647, %v17
  %v652 = vand.u32 %v651, 8388607
  %v653 = vor.u32 %v652, 8388608
  %v654 = vsub.s32 0, %v653
  %v655 = vadd.s32 %v650, 1
  %vm656 = vcmp.gt.s32.totalorder %v655, 0
  %v657 = vsel %vm656, %v655, 0
  %v658 = vshrl.u32 %v657, 5
  %v659 = vand.u32 %v657, 31
  %v660 = vsub.s32 32, %v659
  %v661 = vshrl.u32 683565275, %v660
  %v662 = vshll.u32 683565275, %v659
  %v663 = vshrl.u32 2475754826, %v660
  %v664 = vor.u32 %v662, %v663
  %v665 = vshll.u32 2475754826, %v659
  %v666 = vshrl.u32 2131351028, %v660
  %v667 = vor.u32 %v665, %v666
  %v668 = vshll.u32 2131351028, %v659
  %v669 = vshrl.u32 2102212464, %v660
  %v670 = vor.u32 %v668, %v669
  %v671 = vshll.u32 2102212464, %v659
  %v672 = vshrl.u32 920167782, %v660
  %v673 = vor.u32 %v671, %v672
  %v674 = vshll.u32 920167782, %v659
  %v675 = vshrl.u32 1326507024, %v660
  %v676 = vor.u32 %v674, %v675
  %vm677 = vcmp.lt.s32.totalorder %v658, 1
  %vm678 = vcmp.lt.s32.totalorder %v658, 2
  %vm679 = vcmp.lt.s32.totalorder %v658, 3
  %vm680 = vcmp.lt.s32.totalorder %v658, 4
  %v681 = vsel %vm677, %v661, %v664
  %v682 = vsel %vm680, %v670, 2102212464
  %v683 = vsel %vm679, %v667, %v682
  %v684 = vsel %vm678, %v681, %v683
  %v685 = vsel %vm677, %v664, %v667
  %v686 = vsel %vm680, %v673, 920167782
  %v687 = vsel %vm679, %v670, %v686
  %v688 = vsel %vm678, %v685, %v687
  %v689 = vsel %vm677, %v667, %v670
  %v690 = vsel %vm680, %v676, 1326507024
  %v691 = vsel %vm679, %v673, %v690
  %v692 = vsel %vm678, %v689, %v691
  %v693 = vshll.u32 %v653, 8
  %v694 = vmul.u32.u64.compose %v693, %v692
  %v695 = vextract.low.u32 %v694
  %v696 = vextract.high.u32 %v694
  %v697 = vmul.u32.u64.compose %v693, %v688
  %v698 = vextract.low.u32 %v697
  %v699 = vextract.high.u32 %v697
  %v700 = vmul.u32 %v693, %v684
  %v701 = vadd.s32 %v696, %v698
  %vm702 = vc.u32 %v696, %v698
  %v703 = vadd.s32 %v699, 1
  %v704 = vsel %vm702, %v703, %v699
  %v705 = vadd.s32 %v700, %v704
  %v706 = vadd.s32 %v705, 536870912
  %v707 = vshrl.u32 %v706, 30
  %v708 = vshll.u32 %v707, 30
  %v709 = vsub.s32 %v705, %v708
  %vm710 = vcmp.lt.s32.totalorder %v709, 0
  %v711 = vsub.s32 0, %v709
  %v712 = vsel %vm710, %v711, %v709
  %v713 = vclz %v712
  %v714 = vsub.s32 %v713, 2
  %vm715 = vcmp.gt.s32.totalorder 0, %v714
  %v716 = vsel %vm715, 0, %v714
  %v717 = vsub.s32 32, %v716
  %v718 = vshll.u32 %v709, %v716
  %v719 = vshrl.u32 %v701, %v717
  %v720 = vor.u32 %v718, %v719
  %v721 = vsub.s32 4294967266, %v716
  %v722 = vadd.s32 %v721, 127
  %v723 = vshll.u32 %v722, 23
  %v724 = vor.u32 4788187, %v723
  %v725 = vand.u32 2147483647, %v724
  %v727 = vcvt.s32.f32 %v720
  %v728 = vmul.f32 %v727, %v725
  %v729 = vxor.u32 %v728, 2147483648
  %v730 = vsel %vm647, %v729, %v728
  %v731 = vsub.s32 4, %v707
  %v732 = vsel %vm647, %v731, %v707
  %v733 = vsel %vm646, %v17, %v730
  %v734 = vsel %vm646, 0, %v732
  %v735 = vcosq.f32.pop %v733
  %v736 = vsinq.f32.pop %v733
  %vm737 = vweird.f32 %v17
  %v738 = vand.u32 %v734, 3
  %vm739 = vcmp.lt.s32.totalorder %v738, 2
  %vm740 = vcmp.eq.s32.totalorder %v738, 0
  %v741 = vxor.u32 %v736, 2147483648
  %v742 = vsel %vm740, %v735, %v741
  %vm743 = vcmp.eq.s32.totalorder %v738, 2
  %v744 = vxor.u32 %v735, 2147483648
  %v745 = vsel %vm743, %v744, %v736
  %v746 = vsel %vm739, %v742, %v745
  %v747 = vsel %vm737, nan, %v746
  %v748 = vand.u32 2147483647, %v18
  %vm749 = vcmp.le.f32.partialorder %v748, 0.7853982
  %vm750 = vcmp.lt.s32.totalorder %v18, 0
  %v751 = vand.u32 %v18, 2139095040
  %v752 = vshrl.u32 %v751, 23
  %v753 = vsub.s32 %v752, 127
  %v754 = vand.u32 2147483647, %v18
  %v755 = vand.u32 %v754, 8388607
  %v756 = vor.u32 %v755, 8388608
  %v757 = vsub.s32 0, %v756
  %v758 = vadd.s32 %v753, 1
  %vm759 = vcmp.gt.s32.totalorder %v758, 0
  %v760 = vsel %vm759, %v758, 0
  %v761 = vshrl.u32 %v760, 5
  %v762 = vand.u32 %v760, 31
  %v763 = vsub.s32 32, %v762
  %v764 = vshrl.u32 683565275, %v763
  %v765 = vshll.u32 683565275, %v762
  %v766 = vshrl.u32 2475754826, %v763
  %v767 = vor.u32 %v765, %v766
  %v768 = vshll.u32 2475754826, %v762
  %v769 = vshrl.u32 2131351028, %v763
  %v770 = vor.u32 %v768, %v769
  %v771 = vshll.u32 2131351028, %v762
  %v772 = vshrl.u32 2102212464, %v763
  %v773 = vor.u32 %v771, %v772
  %v774 = vshll.u32 2102212464, %v762
  %v775 = vshrl.u32 920167782, %v763
  %v776 = vor.u32 %v774, %v775
  %v777 = vshll.u32 920167782, %v762
  %v778 = vshrl.u32 1326507024, %v763
  %v779 = vor.u32 %v777, %v778
  %vm780 = vcmp.lt.s32.totalorder %v761, 1
  %vm781 = vcmp.lt.s32.totalorder %v761, 2
  %vm782 = vcmp.lt.s32.totalorder %v761, 3
  %vm783 = vcmp.lt.s32.totalorder %v761, 4
  %v784 = vsel %vm780, %v764, %v767
  %v785 = vsel %vm783, %v773, 2102212464
  %v786 = vsel %vm782, %v770, %v785
  %v787 = vsel %vm781, %v784, %v786
  %v788 = vsel %vm780, %v767, %v770
  %v789 = vsel %vm783, %v776, 920167782
  %v790 = vsel %vm782, %v773, %v789
  %v791 = vsel %vm781, %v788, %v790
  %v792 = vsel %vm780, %v770, %v773
  %v793 = vsel %vm783, %v779, 1326507024
  %v794 = vsel %vm782, %v776, %v793
  %v795 = vsel %vm781, %v792, %v794
  %v796 = vshll.u32 %v756, 8
  %v797 = vmul.u32.u64.compose %v796, %v795
  %v798 = vextract.low.u32 %v797
  %v799 = vextract.high.u32 %v797
  %v800 = vmul.u32.u64.compose %v796, %v791
  %v801 = vextract.low.u32 %v800
  %v802 = vextract.high.u32 %v800
  %v803 = vmul.u32 %v796, %v787
  %v804 = vadd.s32 %v799, %v801
  %vm805 = vc.u32 %v799, %v801
  %v806 = vadd.s32 %v802, 1
  %v807 = vsel %vm805, %v806, %v802
  %v808 = vadd.s32 %v803, %v807
  %v809 = vadd.s32 %v808, 536870912
  %v810 = vshrl.u32 %v809, 30
  %v811 = vshll.u32 %v810, 30
  %v812 = vsub.s32 %v808, %v811
  %vm813 = vcmp.lt.s32.totalorder %v812, 0
  %v814 = vsub.s32 0, %v812
  %v815 = vsel %vm813, %v814, %v812
  %v816 = vclz %v815
  %v817 = vsub.s32 %v816, 2
  %vm818 = vcmp.gt.s32.totalorder 0, %v817
  %v819 = vsel %vm818, 0, %v817
  %v820 = vsub.s32 32, %v819
  %v821 = vshll.u32 %v812, %v819
  %v822 = vshrl.u32 %v804, %v820
  %v823 = vor.u32 %v821, %v822
  %v824 = vsub.s32 4294967266, %v819
  %v825 = vadd.s32 %v824, 127
  %v826 = vshll.u32 %v825, 23
  %v827 = vor.u32 4788187, %v826
  %v828 = vand.u32 2147483647, %v827
  %v830 = vcvt.s32.f32 %v823
  %v831 = vmul.f32 %v830, %v828
  %v832 = vxor.u32 %v831, 2147483648
  %v833 = vsel %vm750, %v832, %v831
  %v834 = vsub.s32 4, %v810
  %v835 = vsel %vm750, %v834, %v810
  %v836 = vsel %vm749, %v18, %v833
  %v837 = vsel %vm749, 0, %v835
  %v838 = vcosq.f32.pop %v836
  %v839 = vsinq.f32.pop %v836
  %vm840 = vweird.f32 %v18
  %v841 = vand.u32 %v837, 3
  %vm842 = vcmp.lt.s32.totalorder %v841, 2
  %vm843 = vcmp.eq.s32.totalorder %v841, 0
  %v844 = vxor.u32 %v839, 2147483648
  %v845 = vsel %vm843, %v838, %v844
  %vm846 = vcmp.eq.s32.totalorder %v841, 2
  %v847 = vxor.u32 %v838, 2147483648
  %v848 = vsel %vm846, %v847, %v839
  %v849 = vsel %vm842, %v845, %v848
  %v850 = vsel %vm840, nan, %v849
  %v851 = vand.u32 2147483647, %v19
  %vm852 = vcmp.le.f32.partialorder %v851, 0.7853982
  %vm853 = vcmp.lt.s32.totalorder %v19, 0
  %v854 = vand.u32 %v19, 2139095040
  %v855 = vshrl.u32 %v854, 23
  %v856 = vsub.s32 %v855, 127
  %v857 = vand.u32 2147483647, %v19
  %v858 = vand.u32 %v857, 8388607
  %v859 = vor.u32 %v858, 8388608
  %v860 = vsub.s32 0, %v859
  %v861 = vadd.s32 %v856, 1
  %vm862 = vcmp.gt.s32.totalorder %v861, 0
  %v863 = vsel %vm862, %v861, 0
  %v864 = vshrl.u32 %v863, 5
  %v865 = vand.u32 %v863, 31
  %v866 = vsub.s32 32, %v865
  %v867 = vshrl.u32 683565275, %v866
  %v868 = vshll.u32 683565275, %v865
  %v869 = vshrl.u32 2475754826, %v866
  %v870 = vor.u32 %v868, %v869
  %v871 = vshll.u32 2475754826, %v865
  %v872 = vshrl.u32 2131351028, %v866
  %v873 = vor.u32 %v871, %v872
  %v874 = vshll.u32 2131351028, %v865
  %v875 = vshrl.u32 2102212464, %v866
  %v876 = vor.u32 %v874, %v875
  %v877 = vshll.u32 2102212464, %v865
  %v878 = vshrl.u32 920167782, %v866
  %v879 = vor.u32 %v877, %v878
  %v880 = vshll.u32 920167782, %v865
  %v881 = vshrl.u32 1326507024, %v866
  %v882 = vor.u32 %v880, %v881
  %vm883 = vcmp.lt.s32.totalorder %v864, 1
  %vm884 = vcmp.lt.s32.totalorder %v864, 2
  %vm885 = vcmp.lt.s32.totalorder %v864, 3
  %vm886 = vcmp.lt.s32.totalorder %v864, 4
  %v887 = vsel %vm883, %v867, %v870
  %v888 = vsel %vm886, %v876, 2102212464
  %v889 = vsel %vm885, %v873, %v888
  %v890 = vsel %vm884, %v887, %v889
  %v891 = vsel %vm883, %v870, %v873
  %v892 = vsel %vm886, %v879, 920167782
  %v893 = vsel %vm885, %v876, %v892
  %v894 = vsel %vm884, %v891, %v893
  %v895 = vsel %vm883, %v873, %v876
  %v896 = vsel %vm886, %v882, 1326507024
  %v897 = vsel %vm885, %v879, %v896
  %v898 = vsel %vm884, %v895, %v897
  %v899 = vshll.u32 %v859, 8
  %v900 = vmul.u32.u64.compose %v899, %v898
  %v901 = vextract.low.u32 %v900
  %v902 = vextract.high.u32 %v900
  %v903 = vmul.u32.u64.compose %v899, %v894
  %v904 = vextract.low.u32 %v903
  %v905 = vextract.high.u32 %v903
  %v906 = vmul.u32 %v899, %v890
  %v907 = vadd.s32 %v902, %v904
  %vm908 = vc.u32 %v902, %v904
  %v909 = vadd.s32 %v905, 1
  %v910 = vsel %vm908, %v909, %v905
  %v911 = vadd.s32 %v906, %v910
  %v912 = vadd.s32 %v911, 536870912
  %v913 = vshrl.u32 %v912, 30
  %v914 = vshll.u32 %v913, 30
  %v915 = vsub.s32 %v911, %v914
  %vm916 = vcmp.lt.s32.totalorder %v915, 0
  %v917 = vsub.s32 0, %v915
  %v918 = vsel %vm916, %v917, %v915
  %v919 = vclz %v918
  %v920 = vsub.s32 %v919, 2
  %vm921 = vcmp.gt.s32.totalorder 0, %v920
  %v922 = vsel %vm921, 0, %v920
  %v923 = vsub.s32 32, %v922
  %v924 = vshll.u32 %v915, %v922
  %v925 = vshrl.u32 %v907, %v923
  %v926 = vor.u32 %v924, %v925
  %v927 = vsub.s32 4294967266, %v922
  %v928 = vadd.s32 %v927, 127
  %v929 = vshll.u32 %v928, 23
  %v930 = vor.u32 4788187, %v929
  %v931 = vand.u32 2147483647, %v930
  %v933 = vcvt.s32.f32 %v926
  %v934 = vmul.f32 %v933, %v931
  %v935 = vxor.u32 %v934, 2147483648
  %v936 = vsel %vm853, %v935, %v934
  %v937 = vsub.s32 4, %v913
  %v938 = vsel %vm853, %v937, %v913
  %v939 = vsel %vm852, %v19, %v936
  %v940 = vsel %vm852, 0, %v938
  %v941 = vcosq.f32.pop %v939
  %v942 = vsinq.f32.pop %v939
  %vm943 = vweird.f32 %v19
  %v944 = vand.u32 %v940, 3
  %vm945 = vcmp.lt.s32.totalorder %v944, 2
  %vm946 = vcmp.eq.s32.totalorder %v944, 0
  %v947 = vxor.u32 %v942, 2147483648
  %v948 = vsel %vm946, %v941, %v947
  %vm949 = vcmp.eq.s32.totalorder %v944, 2
  %v950 = vxor.u32 %v941, 2147483648
  %v951 = vsel %vm949, %v950, %v942
  %v952 = vsel %vm945, %v948, %v951
  %v953 = vsel %vm943, nan, %v952
  %v954 = vand.u32 2147483647, %v20
  %vm955 = vcmp.le.f32.partialorder %v954, 0.7853982
  %vm956 = vcmp.lt.s32.totalorder %v20, 0
  %v957 = vand.u32 %v20, 2139095040
  %v958 = vshrl.u32 %v957, 23
  %v959 = vsub.s32 %v958, 127
  %v960 = vand.u32 2147483647, %v20
  %v961 = vand.u32 %v960, 8388607
  %v962 = vor.u32 %v961, 8388608
  %v963 = vsub.s32 0, %v962
  %v964 = vadd.s32 %v959, 1
  %vm965 = vcmp.gt.s32.totalorder %v964, 0
  %v966 = vsel %vm965, %v964, 0
  %v967 = vshrl.u32 %v966, 5
  %v968 = vand.u32 %v966, 31
  %v969 = vsub.s32 32, %v968
  %v970 = vshrl.u32 683565275, %v969
  %v971 = vshll.u32 683565275, %v968
  %v972 = vshrl.u32 2475754826, %v969
  %v973 = vor.u32 %v971, %v972
  %v974 = vshll.u32 2475754826, %v968
  %v975 = vshrl.u32 2131351028, %v969
  %v976 = vor.u32 %v974, %v975
  %v977 = vshll.u32 2131351028, %v968
  %v978 = vshrl.u32 2102212464, %v969
  %v979 = vor.u32 %v977, %v978
  %v980 = vshll.u32 2102212464, %v968
  %v981 = vshrl.u32 920167782, %v969
  %v982 = vor.u32 %v980, %v981
  %v983 = vshll.u32 920167782, %v968
  %v984 = vshrl.u32 1326507024, %v969
  %v985 = vor.u32 %v983, %v984
  %vm986 = vcmp.lt.s32.totalorder %v967, 1
  %vm987 = vcmp.lt.s32.totalorder %v967, 2
  %vm988 = vcmp.lt.s32.totalorder %v967, 3
  %vm989 = vcmp.lt.s32.totalorder %v967, 4
  %v990 = vsel %vm986, %v970, %v973
  %v991 = vsel %vm989, %v979, 2102212464
  %v992 = vsel %vm988, %v976, %v991
  %v993 = vsel %vm987, %v990, %v992
  %v994 = vsel %vm986, %v973, %v976
  %v995 = vsel %vm989, %v982, 920167782
  %v996 = vsel %vm988, %v979, %v995
  %v997 = vsel %vm987, %v994, %v996
  %v998 = vsel %vm986, %v976, %v979
  %v999 = vsel %vm989, %v985, 1326507024
  %v1000 = vsel %vm988, %v982, %v999
  %v1001 = vsel %vm987, %v998, %v1000
  %v1002 = vshll.u32 %v962, 8
  %v1003 = vmul.u32.u64.compose %v1002, %v1001
  %v1004 = vextract.low.u32 %v1003
  %v1005 = vextract.high.u32 %v1003
  %v1006 = vmul.u32.u64.compose %v1002, %v997
  %v1007 = vextract.low.u32 %v1006
  %v1008 = vextract.high.u32 %v1006
  %v1009 = vmul.u32 %v1002, %v993
  %v1010 = vadd.s32 %v1005, %v1007
  %vm1011 = vc.u32 %v1005, %v1007
  %v1012 = vadd.s32 %v1008, 1
  %v1013 = vsel %vm1011, %v1012, %v1008
  %v1014 = vadd.s32 %v1009, %v1013
  %v1015 = vadd.s32 %v1014, 536870912
  %v1016 = vshrl.u32 %v1015, 30
  %v1017 = vshll.u32 %v1016, 30
  %v1018 = vsub.s32 %v1014, %v1017
  %vm1019 = vcmp.lt.s32.totalorder %v1018, 0
  %v1020 = vsub.s32 0, %v1018
  %v1021 = vsel %vm1019, %v1020, %v1018
  %v1022 = vclz %v1021
  %v1023 = vsub.s32 %v1022, 2
  %vm1024 = vcmp.gt.s32.totalorder 0, %v1023
  %v1025 = vsel %vm1024, 0, %v1023
  %v1026 = vsub.s32 32, %v1025
  %v1027 = vshll.u32 %v1018, %v1025
  %v1028 = vshrl.u32 %v1010, %v1026
  %v1029 = vor.u32 %v1027, %v1028
  %v1030 = vsub.s32 4294967266, %v1025
  %v1031 = vadd.s32 %v1030, 127
  %v1032 = vshll.u32 %v1031, 23
  %v1033 = vor.u32 4788187, %v1032
  %v1034 = vand.u32 2147483647, %v1033
  %v1036 = vcvt.s32.f32 %v1029
  %v1037 = vmul.f32 %v1036, %v1034
  %v1038 = vxor.u32 %v1037, 2147483648
  %v1039 = vsel %vm956, %v1038, %v1037
  %v1040 = vsub.s32 4, %v1016
  %v1041 = vsel %vm956, %v1040, %v1016
  %v1042 = vsel %vm955, %v20, %v1039
  %v1043 = vsel %vm955, 0, %v1041
  %v1044 = vcosq.f32.pop %v1042
  %v1045 = vsinq.f32.pop %v1042
  %vm1046 = vweird.f32 %v20
  %v1047 = vand.u32 %v1043, 3
  %vm1048 = vcmp.lt.s32.totalorder %v1047, 2
  %vm1049 = vcmp.eq.s32.totalorder %v1047, 0
  %v1050 = vxor.u32 %v1045, 2147483648
  %v1051 = vsel %vm1049, %v1044, %v1050
  %vm1052 = vcmp.eq.s32.totalorder %v1047, 2
  %v1053 = vxor.u32 %v1044, 2147483648
  %v1054 = vsel %vm1052, %v1053, %v1045
  %v1055 = vsel %vm1048, %v1051, %v1054
  %v1056 = vsel %vm1046, nan, %v1055
  %v1057 = vand.u32 2147483647, %v21
  %vm1058 = vcmp.le.f32.partialorder %v1057, 0.7853982
  %vm1059 = vcmp.lt.s32.totalorder %v21, 0
  %v1060 = vand.u32 %v21, 2139095040
  %v1061 = vshrl.u32 %v1060, 23
  %v1062 = vsub.s32 %v1061, 127
  %v1063 = vand.u32 2147483647, %v21
  %v1064 = vand.u32 %v1063, 8388607
  %v1065 = vor.u32 %v1064, 8388608
  %v1066 = vsub.s32 0, %v1065
  %v1067 = vadd.s32 %v1062, 1
  %vm1068 = vcmp.gt.s32.totalorder %v1067, 0
  %v1069 = vsel %vm1068, %v1067, 0
  %v1070 = vshrl.u32 %v1069, 5
  %v1071 = vand.u32 %v1069, 31
  %v1072 = vsub.s32 32, %v1071
  %v1073 = vshrl.u32 683565275, %v1072
  %v1074 = vshll.u32 683565275, %v1071
  %v1075 = vshrl.u32 2475754826, %v1072
  %v1076 = vor.u32 %v1074, %v1075
  %v1077 = vshll.u32 2475754826, %v1071
  %v1078 = vshrl.u32 2131351028, %v1072
  %v1079 = vor.u32 %v1077, %v1078
  %v1080 = vshll.u32 2131351028, %v1071
  %v1081 = vshrl.u32 2102212464, %v1072
  %v1082 = vor.u32 %v1080, %v1081
  %v1083 = vshll.u32 2102212464, %v1071
  %v1084 = vshrl.u32 920167782, %v1072
  %v1085 = vor.u32 %v1083, %v1084
  %v1086 = vshll.u32 920167782, %v1071
  %v1087 = vshrl.u32 1326507024, %v1072
  %v1088 = vor.u32 %v1086, %v1087
  %vm1089 = vcmp.lt.s32.totalorder %v1070, 1
  %vm1090 = vcmp.lt.s32.totalorder %v1070, 2
  %vm1091 = vcmp.lt.s32.totalorder %v1070, 3
  %vm1092 = vcmp.lt.s32.totalorder %v1070, 4
  %v1093 = vsel %vm1089, %v1073, %v1076
  %v1094 = vsel %vm1092, %v1082, 2102212464
  %v1095 = vsel %vm1091, %v1079, %v1094
  %v1096 = vsel %vm1090, %v1093, %v1095
  %v1097 = vsel %vm1089, %v1076, %v1079
  %v1098 = vsel %vm1092, %v1085, 920167782
  %v1099 = vsel %vm1091, %v1082, %v1098
  %v1100 = vsel %vm1090, %v1097, %v1099
  %v1101 = vsel %vm1089, %v1079, %v1082
  %v1102 = vsel %vm1092, %v1088, 1326507024
  %v1103 = vsel %vm1091, %v1085, %v1102
  %v1104 = vsel %vm1090, %v1101, %v1103
  %v1105 = vshll.u32 %v1065, 8
  %v1106 = vmul.u32.u64.compose %v1105, %v1104
  %v1107 = vextract.low.u32 %v1106
  %v1108 = vextract.high.u32 %v1106
  %v1109 = vmul.u32.u64.compose %v1105, %v1100
  %v1110 = vextract.low.u32 %v1109
  %v1111 = vextract.high.u32 %v1109
  %v1112 = vmul.u32 %v1105, %v1096
  %v1113 = vadd.s32 %v1108, %v1110
  %vm1114 = vc.u32 %v1108, %v1110
  %v1115 = vadd.s32 %v1111, 1
  %v1116 = vsel %vm1114, %v1115, %v1111
  %v1117 = vadd.s32 %v1112, %v1116
  %v1118 = vadd.s32 %v1117, 536870912
  %v1119 = vshrl.u32 %v1118, 30
  %v1120 = vshll.u32 %v1119, 30
  %v1121 = vsub.s32 %v1117, %v1120
  %vm1122 = vcmp.lt.s32.totalorder %v1121, 0
  %v1123 = vsub.s32 0, %v1121
  %v1124 = vsel %vm1122, %v1123, %v1121
  %v1125 = vclz %v1124
  %v1126 = vsub.s32 %v1125, 2
  %vm1127 = vcmp.gt.s32.totalorder 0, %v1126
  %v1128 = vsel %vm1127, 0, %v1126
  %v1129 = vsub.s32 32, %v1128
  %v1130 = vshll.u32 %v1121, %v1128
  %v1131 = vshrl.u32 %v1113, %v1129
  %v1132 = vor.u32 %v1130, %v1131
  %v1133 = vsub.s32 4294967266, %v1128
  %v1134 = vadd.s32 %v1133, 127
  %v1135 = vshll.u32 %v1134, 23
  %v1136 = vor.u32 4788187, %v1135
  %v1137 = vand.u32 2147483647, %v1136
  %v1139 = vcvt.s32.f32 %v1132
  %v1140 = vmul.f32 %v1139, %v1137
  %v1141 = vxor.u32 %v1140, 2147483648
  %v1142 = vsel %vm1059, %v1141, %v1140
  %v1143 = vsub.s32 4, %v1119
  %v1144 = vsel %vm1059, %v1143, %v1119
  %v1145 = vsel %vm1058, %v21, %v1142
  %v1146 = vsel %vm1058, 0, %v1144
  %v1147 = vcosq.f32.pop %v1145
  %v1148 = vsinq.f32.pop %v1145
  %vm1149 = vweird.f32 %v21
  %v1150 = vand.u32 %v1146, 3
  %vm1151 = vcmp.lt.s32.totalorder %v1150, 2
  %vm1152 = vcmp.eq.s32.totalorder %v1150, 0
  %v1153 = vxor.u32 %v1148, 2147483648
  %v1154 = vsel %vm1152, %v1147, %v1153
  %vm1155 = vcmp.eq.s32.totalorder %v1150, 2
  %v1156 = vxor.u32 %v1147, 2147483648
  %v1157 = vsel %vm1155, %v1156, %v1148
  %v1158 = vsel %vm1151, %v1154, %v1157
  %v1159 = vsel %vm1149, nan, %v1158
  %v1160 = vand.u32 2147483647, %v22
  %vm1161 = vcmp.le.f32.partialorder %v1160, 0.7853982
  %vm1162 = vcmp.lt.s32.totalorder %v22, 0
  %v1163 = vand.u32 %v22, 2139095040
  %v1164 = vshrl.u32 %v1163, 23
  %v1165 = vsub.s32 %v1164, 127
  %v1166 = vand.u32 2147483647, %v22
  %v1167 = vand.u32 %v1166, 8388607
  %v1168 = vor.u32 %v1167, 8388608
  %v1169 = vsub.s32 0, %v1168
  %v1170 = vadd.s32 %v1165, 1
  %vm1171 = vcmp.gt.s32.totalorder %v1170, 0
  %v1172 = vsel %vm1171, %v1170, 0
  %v1173 = vshrl.u32 %v1172, 5
  %v1174 = vand.u32 %v1172, 31
  %v1175 = vsub.s32 32, %v1174
  %v1176 = vshrl.u32 683565275, %v1175
  %v1177 = vshll.u32 683565275, %v1174
  %v1178 = vshrl.u32 2475754826, %v1175
  %v1179 = vor.u32 %v1177, %v1178
  %v1180 = vshll.u32 2475754826, %v1174
  %v1181 = vshrl.u32 2131351028, %v1175
  %v1182 = vor.u32 %v1180, %v1181
  %v1183 = vshll.u32 2131351028, %v1174
  %v1184 = vshrl.u32 2102212464, %v1175
  %v1185 = vor.u32 %v1183, %v1184
  %v1186 = vshll.u32 2102212464, %v1174
  %v1187 = vshrl.u32 920167782, %v1175
  %v1188 = vor.u32 %v1186, %v1187
  %v1189 = vshll.u32 920167782, %v1174
  %v1190 = vshrl.u32 1326507024, %v1175
  %v1191 = vor.u32 %v1189, %v1190
  %vm1192 = vcmp.lt.s32.totalorder %v1173, 1
  %vm1193 = vcmp.lt.s32.totalorder %v1173, 2
  %vm1194 = vcmp.lt.s32.totalorder %v1173, 3
  %vm1195 = vcmp.lt.s32.totalorder %v1173, 4
  %v1196 = vsel %vm1192, %v1176, %v1179
  %v1197 = vsel %vm1195, %v1185, 2102212464
  %v1198 = vsel %vm1194, %v1182, %v1197
  %v1199 = vsel %vm1193, %v1196, %v1198
  %v1200 = vsel %vm1192, %v1179, %v1182
  %v1201 = vsel %vm1195, %v1188, 920167782
  %v1202 = vsel %vm1194, %v1185, %v1201
  %v1203 = vsel %vm1193, %v1200, %v1202
  %v1204 = vsel %vm1192, %v1182, %v1185
  %v1205 = vsel %vm1195, %v1191, 1326507024
  %v1206 = vsel %vm1194, %v1188, %v1205
  %v1207 = vsel %vm1193, %v1204, %v1206
  %v1208 = vshll.u32 %v1168, 8
  %v1209 = vmul.u32.u64.compose %v1208, %v1207
  %v1210 = vextract.low.u32 %v1209
  %v1211 = vextract.high.u32 %v1209
  %v1212 = vmul.u32.u64.compose %v1208, %v1203
  %v1213 = vextract.low.u32 %v1212
  %v1214 = vextract.high.u32 %v1212
  %v1215 = vmul.u32 %v1208, %v1199
  %v1216 = vadd.s32 %v1211, %v1213
  %vm1217 = vc.u32 %v1211, %v1213
  %v1218 = vadd.s32 %v1214, 1
  %v1219 = vsel %vm1217, %v1218, %v1214
  %v1220 = vadd.s32 %v1215, %v1219
  %v1221 = vadd.s32 %v1220, 536870912
  %v1222 = vshrl.u32 %v1221, 30
  %v1223 = vshll.u32 %v1222, 30
  %v1224 = vsub.s32 %v1220, %v1223
  %vm1225 = vcmp.lt.s32.totalorder %v1224, 0
  %v1226 = vsub.s32 0, %v1224
  %v1227 = vsel %vm1225, %v1226, %v1224
  %v1228 = vclz %v1227
  %v1229 = vsub.s32 %v1228, 2
  %vm1230 = vcmp.gt.s32.totalorder 0, %v1229
  %v1231 = vsel %vm1230, 0, %v1229
  %v1232 = vsub.s32 32, %v1231
  %v1233 = vshll.u32 %v1224, %v1231
  %v1234 = vshrl.u32 %v1216, %v1232
  %v1235 = vor.u32 %v1233, %v1234
  %v1236 = vsub.s32 4294967266, %v1231
  %v1237 = vadd.s32 %v1236, 127
  %v1238 = vshll.u32 %v1237, 23
  %v1239 = vor.u32 4788187, %v1238
  %v1240 = vand.u32 2147483647, %v1239
  %v1242 = vcvt.s32.f32 %v1235
  %v1243 = vmul.f32 %v1242, %v1240
  %v1244 = vxor.u32 %v1243, 2147483648
  %v1245 = vsel %vm1162, %v1244, %v1243
  %v1246 = vsub.s32 4, %v1222
  %v1247 = vsel %vm1162, %v1246, %v1222
  %v1248 = vsel %vm1161, %v22, %v1245
  %v1249 = vsel %vm1161, 0, %v1247
  %v1250 = vcosq.f32.pop %v1248
  %v1251 = vsinq.f32.pop %v1248
  %vm1252 = vweird.f32 %v22
  %v1253 = vand.u32 %v1249, 3
  %vm1254 = vcmp.lt.s32.totalorder %v1253, 2
  %vm1255 = vcmp.eq.s32.totalorder %v1253, 0
  %v1256 = vxor.u32 %v1251, 2147483648
  %v1257 = vsel %vm1255, %v1250, %v1256
  %vm1258 = vcmp.eq.s32.totalorder %v1253, 2
  %v1259 = vxor.u32 %v1250, 2147483648
  %v1260 = vsel %vm1258, %v1259, %v1251
  %v1261 = vsel %vm1254, %v1257, %v1260
  %v1262 = vsel %vm1252, nan, %v1261
  %v1263 = vand.u32 2147483647, %v23
  %vm1264 = vcmp.le.f32.partialorder %v1263, 0.7853982
  %vm1265 = vcmp.lt.s32.totalorder %v23, 0
  %v1266 = vand.u32 %v23, 2139095040
  %v1267 = vshrl.u32 %v1266, 23
  %v1268 = vsub.s32 %v1267, 127
  %v1269 = vand.u32 2147483647, %v23
  %v1270 = vand.u32 %v1269, 8388607
  %v1271 = vor.u32 %v1270, 8388608
  %v1272 = vsub.s32 0, %v1271
  %v1273 = vadd.s32 %v1268, 1
  %vm1274 = vcmp.gt.s32.totalorder %v1273, 0
  %v1275 = vsel %vm1274, %v1273, 0
  %v1276 = vshrl.u32 %v1275, 5
  %v1277 = vand.u32 %v1275, 31
  %v1278 = vsub.s32 32, %v1277
  %v1279 = vshrl.u32 683565275, %v1278
  %v1280 = vshll.u32 683565275, %v1277
  %v1281 = vshrl.u32 2475754826, %v1278
  %v1282 = vor.u32 %v1280, %v1281
  %v1283 = vshll.u32 2475754826, %v1277
  %v1284 = vshrl.u32 2131351028, %v1278
  %v1285 = vor.u32 %v1283, %v1284
  %v1286 = vshll.u32 2131351028, %v1277
  %v1287 = vshrl.u32 2102212464, %v1278
  %v1288 = vor.u32 %v1286, %v1287
  %v1289 = vshll.u32 2102212464, %v1277
  %v1290 = vshrl.u32 920167782, %v1278
  %v1291 = vor.u32 %v1289, %v1290
  %v1292 = vshll.u32 920167782, %v1277
  %v1293 = vshrl.u32 1326507024, %v1278
  %v1294 = vor.u32 %v1292, %v1293
  %vm1295 = vcmp.lt.s32.totalorder %v1276, 1
  %vm1296 = vcmp.lt.s32.totalorder %v1276, 2
  %vm1297 = vcmp.lt.s32.totalorder %v1276, 3
  %vm1298 = vcmp.lt.s32.totalorder %v1276, 4
  %v1299 = vsel %vm1295, %v1279, %v1282
  %v1300 = vsel %vm1298, %v1288, 2102212464
  %v1301 = vsel %vm1297, %v1285, %v1300
  %v1302 = vsel %vm1296, %v1299, %v1301
  %v1303 = vsel %vm1295, %v1282, %v1285
  %v1304 = vsel %vm1298, %v1291, 920167782
  %v1305 = vsel %vm1297, %v1288, %v1304
  %v1306 = vsel %vm1296, %v1303, %v1305
  %v1307 = vsel %vm1295, %v1285, %v1288
  %v1308 = vsel %vm1298, %v1294, 1326507024
  %v1309 = vsel %vm1297, %v1291, %v1308
  %v1310 = vsel %vm1296, %v1307, %v1309
  %v1311 = vshll.u32 %v1271, 8
  %v1312 = vmul.u32.u64.compose %v1311, %v1310
  %v1313 = vextract.low.u32 %v1312
  %v1314 = vextract.high.u32 %v1312
  %v1315 = vmul.u32.u64.compose %v1311, %v1306
  %v1316 = vextract.low.u32 %v1315
  %v1317 = vextract.high.u32 %v1315
  %v1318 = vmul.u32 %v1311, %v1302
  %v1319 = vadd.s32 %v1314, %v1316
  %vm1320 = vc.u32 %v1314, %v1316
  %v1321 = vadd.s32 %v1317, 1
  %v1322 = vsel %vm1320, %v1321, %v1317
  %v1323 = vadd.s32 %v1318, %v1322
  %v1324 = vadd.s32 %v1323, 536870912
  %v1325 = vshrl.u32 %v1324, 30
  %v1326 = vshll.u32 %v1325, 30
  %v1327 = vsub.s32 %v1323, %v1326
  %vm1328 = vcmp.lt.s32.totalorder %v1327, 0
  %v1329 = vsub.s32 0, %v1327
  %v1330 = vsel %vm1328, %v1329, %v1327
  %v1331 = vclz %v1330
  %v1332 = vsub.s32 %v1331, 2
  %vm1333 = vcmp.gt.s32.totalorder 0, %v1332
  %v1334 = vsel %vm1333, 0, %v1332
  %v1335 = vsub.s32 32, %v1334
  %v1336 = vshll.u32 %v1327, %v1334
  %v1337 = vshrl.u32 %v1319, %v1335
  %v1338 = vor.u32 %v1336, %v1337
  %v1339 = vsub.s32 4294967266, %v1334
  %v1340 = vadd.s32 %v1339, 127
  %v1341 = vshll.u32 %v1340, 23
  %v1342 = vor.u32 4788187, %v1341
  %v1343 = vand.u32 2147483647, %v1342
  %v1345 = vcvt.s32.f32 %v1338
  %v1346 = vmul.f32 %v1345, %v1343
  %v1347 = vxor.u32 %v1346, 2147483648
  %v1348 = vsel %vm1265, %v1347, %v1346
  %v1349 = vsub.s32 4, %v1325
  %v1350 = vsel %vm1265, %v1349, %v1325
  %v1351 = vsel %vm1264, %v23, %v1348
  %v1352 = vsel %vm1264, 0, %v1350
  %v1353 = vcosq.f32.pop %v1351
  %v1354 = vsinq.f32.pop %v1351
  %vm1355 = vweird.f32 %v23
  %v1356 = vand.u32 %v1352, 3
  %vm1357 = vcmp.lt.s32.totalorder %v1356, 2
  %vm1358 = vcmp.eq.s32.totalorder %v1356, 0
  %v1359 = vxor.u32 %v1354, 2147483648
  %v1360 = vsel %vm1358, %v1353, %v1359
  %vm1361 = vcmp.eq.s32.totalorder %v1356, 2
  %v1362 = vxor.u32 %v1353, 2147483648
  %v1363 = vsel %vm1361, %v1362, %v1354
  %v1364 = vsel %vm1357, %v1360, %v1363
  %v1365 = vsel %vm1355, nan, %v1364
  %v1366 = vand.u32 2147483647, %v24
  %vm1367 = vcmp.le.f32.partialorder %v1366, 0.7853982
  %vm1368 = vcmp.lt.s32.totalorder %v24, 0
  %v1369 = vand.u32 %v24, 2139095040
  %v1370 = vshrl.u32 %v1369, 23
  %v1371 = vsub.s32 %v1370, 127
  %v1372 = vand.u32 2147483647, %v24
  %v1373 = vand.u32 %v1372, 8388607
  %v1374 = vor.u32 %v1373, 8388608
  %v1375 = vsub.s32 0, %v1374
  %v1376 = vadd.s32 %v1371, 1
  %vm1377 = vcmp.gt.s32.totalorder %v1376, 0
  %v1378 = vsel %vm1377, %v1376, 0
  %v1379 = vshrl.u32 %v1378, 5
  %v1380 = vand.u32 %v1378, 31
  %v1381 = vsub.s32 32, %v1380
  %v1382 = vshrl.u32 683565275, %v1381
  %v1383 = vshll.u32 683565275, %v1380
  %v1384 = vshrl.u32 2475754826, %v1381
  %v1385 = vor.u32 %v1383, %v1384
  %v1386 = vshll.u32 2475754826, %v1380
  %v1387 = vshrl.u32 2131351028, %v1381
  %v1388 = vor.u32 %v1386, %v1387
  %v1389 = vshll.u32 2131351028, %v1380
  %v1390 = vshrl.u32 2102212464, %v1381
  %v1391 = vor.u32 %v1389, %v1390
  %v1392 = vshll.u32 2102212464, %v1380
  %v1393 = vshrl.u32 920167782, %v1381
  %v1394 = vor.u32 %v1392, %v1393
  %v1395 = vshll.u32 920167782, %v1380
  %v1396 = vshrl.u32 1326507024, %v1381
  %v1397 = vor.u32 %v1395, %v1396
  %vm1398 = vcmp.lt.s32.totalorder %v1379, 1
  %vm1399 = vcmp.lt.s32.totalorder %v1379, 2
  %vm1400 = vcmp.lt.s32.totalorder %v1379, 3
  %vm1401 = vcmp.lt.s32.totalorder %v1379, 4
  %v1402 = vsel %vm1398, %v1382, %v1385
  %v1403 = vsel %vm1401, %v1391, 2102212464
  %v1404 = vsel %vm1400, %v1388, %v1403
  %v1405 = vsel %vm1399, %v1402, %v1404
  %v1406 = vsel %vm1398, %v1385, %v1388
  %v1407 = vsel %vm1401, %v1394, 920167782
  %v1408 = vsel %vm1400, %v1391, %v1407
  %v1409 = vsel %vm1399, %v1406, %v1408
  %v1410 = vsel %vm1398, %v1388, %v1391
  %v1411 = vsel %vm1401, %v1397, 1326507024
  %v1412 = vsel %vm1400, %v1394, %v1411
  %v1413 = vsel %vm1399, %v1410, %v1412
  %v1414 = vshll.u32 %v1374, 8
  %v1415 = vmul.u32.u64.compose %v1414, %v1413
  %v1416 = vextract.low.u32 %v1415
  %v1417 = vextract.high.u32 %v1415
  %v1418 = vmul.u32.u64.compose %v1414, %v1409
  %v1419 = vextract.low.u32 %v1418
  %v1420 = vextract.high.u32 %v1418
  %v1421 = vmul.u32 %v1414, %v1405
  %v1422 = vadd.s32 %v1417, %v1419
  %vm1423 = vc.u32 %v1417, %v1419
  %v1424 = vadd.s32 %v1420, 1
  %v1425 = vsel %vm1423, %v1424, %v1420
  %v1426 = vadd.s32 %v1421, %v1425
  %v1427 = vadd.s32 %v1426, 536870912
  %v1428 = vshrl.u32 %v1427, 30
  %v1429 = vshll.u32 %v1428, 30
  %v1430 = vsub.s32 %v1426, %v1429
  %vm1431 = vcmp.lt.s32.totalorder %v1430, 0
  %v1432 = vsub.s32 0, %v1430
  %v1433 = vsel %vm1431, %v1432, %v1430
  %v1434 = vclz %v1433
  %v1435 = vsub.s32 %v1434, 2
  %vm1436 = vcmp.gt.s32.totalorder 0, %v1435
  %v1437 = vsel %vm1436, 0, %v1435
  %v1438 = vsub.s32 32, %v1437
  %v1439 = vshll.u32 %v1430, %v1437
  %v1440 = vshrl.u32 %v1422, %v1438
  %v1441 = vor.u32 %v1439, %v1440
  %v1442 = vsub.s32 4294967266, %v1437
  %v1443 = vadd.s32 %v1442, 127
  %v1444 = vshll.u32 %v1443, 23
  %v1445 = vor.u32 4788187, %v1444
  %v1446 = vand.u32 2147483647, %v1445
  %v1448 = vcvt.s32.f32 %v1441
  %v1449 = vmul.f32 %v1448, %v1446
  %v1450 = vxor.u32 %v1449, 2147483648
  %v1451 = vsel %vm1368, %v1450, %v1449
  %v1452 = vsub.s32 4, %v1428
  %v1453 = vsel %vm1368, %v1452, %v1428
  %v1454 = vsel %vm1367, %v24, %v1451
  %v1455 = vsel %vm1367, 0, %v1453
  %v1456 = vcosq.f32.pop %v1454
  %v1457 = vsinq.f32.pop %v1454
  %vm1458 = vweird.f32 %v24
  %v1459 = vand.u32 %v1455, 3
  %vm1460 = vcmp.lt.s32.totalorder %v1459, 2
  %vm1461 = vcmp.eq.s32.totalorder %v1459, 0
  %v1462 = vxor.u32 %v1457, 2147483648
  %v1463 = vsel %vm1461, %v1456, %v1462
  %vm1464 = vcmp.eq.s32.totalorder %v1459, 2
  %v1465 = vxor.u32 %v1456, 2147483648
  %v1466 = vsel %vm1464, %v1465, %v1457
  %v1467 = vsel %vm1460, %v1463, %v1466
  %v1468 = vsel %vm1458, nan, %v1467
  %v1469 = vand.u32 2147483647, %v25
  %vm1470 = vcmp.le.f32.partialorder %v1469, 0.7853982
  %vm1471 = vcmp.lt.s32.totalorder %v25, 0
  %v1472 = vand.u32 %v25, 2139095040
  %v1473 = vshrl.u32 %v1472, 23
  %v1474 = vsub.s32 %v1473, 127
  %v1475 = vand.u32 2147483647, %v25
  %v1476 = vand.u32 %v1475, 8388607
  %v1477 = vor.u32 %v1476, 8388608
  %v1478 = vsub.s32 0, %v1477
  %v1479 = vadd.s32 %v1474, 1
  %vm1480 = vcmp.gt.s32.totalorder %v1479, 0
  %v1481 = vsel %vm1480, %v1479, 0
  %v1482 = vshrl.u32 %v1481, 5
  %v1483 = vand.u32 %v1481, 31
  %v1484 = vsub.s32 32, %v1483
  %v1485 = vshrl.u32 683565275, %v1484
  %v1486 = vshll.u32 683565275, %v1483
  %v1487 = vshrl.u32 2475754826, %v1484
  %v1488 = vor.u32 %v1486, %v1487
  %v1489 = vshll.u32 2475754826, %v1483
  %v1490 = vshrl.u32 2131351028, %v1484
  %v1491 = vor.u32 %v1489, %v1490
  %v1492 = vshll.u32 2131351028, %v1483
  %v1493 = vshrl.u32 2102212464, %v1484
  %v1494 = vor.u32 %v1492, %v1493
  %v1495 = vshll.u32 2102212464, %v1483
  %v1496 = vshrl.u32 920167782, %v1484
  %v1497 = vor.u32 %v1495, %v1496
  %v1498 = vshll.u32 920167782, %v1483
  %v1499 = vshrl.u32 1326507024, %v1484
  %v1500 = vor.u32 %v1498, %v1499
  %vm1501 = vcmp.lt.s32.totalorder %v1482, 1
  %vm1502 = vcmp.lt.s32.totalorder %v1482, 2
  %vm1503 = vcmp.lt.s32.totalorder %v1482, 3
  %vm1504 = vcmp.lt.s32.totalorder %v1482, 4
  %v1505 = vsel %vm1501, %v1485, %v1488
  %v1506 = vsel %vm1504, %v1494, 2102212464
  %v1507 = vsel %vm1503, %v1491, %v1506
  %v1508 = vsel %vm1502, %v1505, %v1507
  %v1509 = vsel %vm1501, %v1488, %v1491
  %v1510 = vsel %vm1504, %v1497, 920167782
  %v1511 = vsel %vm1503, %v1494, %v1510
  %v1512 = vsel %vm1502, %v1509, %v1511
  %v1513 = vsel %vm1501, %v1491, %v1494
  %v1514 = vsel %vm1504, %v1500, 1326507024
  %v1515 = vsel %vm1503, %v1497, %v1514
  %v1516 = vsel %vm1502, %v1513, %v1515
  %v1517 = vshll.u32 %v1477, 8
  %v1518 = vmul.u32.u64.compose %v1517, %v1516
  %v1519 = vextract.low.u32 %v1518
  %v1520 = vextract.high.u32 %v1518
  %v1521 = vmul.u32.u64.compose %v1517, %v1512
  %v1522 = vextract.low.u32 %v1521
  %v1523 = vextract.high.u32 %v1521
  %v1524 = vmul.u32 %v1517, %v1508
  %v1525 = vadd.s32 %v1520, %v1522
  %vm1526 = vc.u32 %v1520, %v1522
  %v1527 = vadd.s32 %v1523, 1
  %v1528 = vsel %vm1526, %v1527, %v1523
  %v1529 = vadd.s32 %v1524, %v1528
  %v1530 = vadd.s32 %v1529, 536870912
  %v1531 = vshrl.u32 %v1530, 30
  %v1532 = vshll.u32 %v1531, 30
  %v1533 = vsub.s32 %v1529, %v1532
  %vm1534 = vcmp.lt.s32.totalorder %v1533, 0
  %v1535 = vsub.s32 0, %v1533
  %v1536 = vsel %vm1534, %v1535, %v1533
  %v1537 = vclz %v1536
  %v1538 = vsub.s32 %v1537, 2
  %vm1539 = vcmp.gt.s32.totalorder 0, %v1538
  %v1540 = vsel %vm1539, 0, %v1538
  %v1541 = vsub.s32 32, %v1540
  %v1542 = vshll.u32 %v1533, %v1540
  %v1543 = vshrl.u32 %v1525, %v1541
  %v1544 = vor.u32 %v1542, %v1543
  %v1545 = vsub.s32 4294967266, %v1540
  %v1546 = vadd.s32 %v1545, 127
  %v1547 = vshll.u32 %v1546, 23
  %v1548 = vor.u32 4788187, %v1547
  %v1549 = vand.u32 2147483647, %v1548
  %v1551 = vcvt.s32.f32 %v1544
  %v1552 = vmul.f32 %v1551, %v1549
  %v1553 = vxor.u32 %v1552, 2147483648
  %v1554 = vsel %vm1471, %v1553, %v1552
  %v1555 = vsub.s32 4, %v1531
  %v1556 = vsel %vm1471, %v1555, %v1531
  %v1557 = vsel %vm1470, %v25, %v1554
  %v1558 = vsel %vm1470, 0, %v1556
  %v1559 = vcosq.f32.pop %v1557
  %v1560 = vsinq.f32.pop %v1557
  %vm1561 = vweird.f32 %v25
  %v1562 = vand.u32 %v1558, 3
  %vm1563 = vcmp.lt.s32.totalorder %v1562, 2
  %vm1564 = vcmp.eq.s32.totalorder %v1562, 0
  %v1565 = vxor.u32 %v1560, 2147483648
  %v1566 = vsel %vm1564, %v1559, %v1565
  %vm1567 = vcmp.eq.s32.totalorder %v1562, 2
  %v1568 = vxor.u32 %v1559, 2147483648
  %v1569 = vsel %vm1567, %v1568, %v1560
  %v1570 = vsel %vm1563, %v1566, %v1569
  %v1571 = vsel %vm1561, nan, %v1570
  %v1572 = vand.u32 2147483647, %v26
  %vm1573 = vcmp.le.f32.partialorder %v1572, 0.7853982
  %vm1574 = vcmp.lt.s32.totalorder %v26, 0
  %v1575 = vand.u32 %v26, 2139095040
  %v1576 = vshrl.u32 %v1575, 23
  %v1577 = vsub.s32 %v1576, 127
  %v1578 = vand.u32 2147483647, %v26
  %v1579 = vand.u32 %v1578, 8388607
  %v1580 = vor.u32 %v1579, 8388608
  %v1581 = vsub.s32 0, %v1580
  %v1582 = vadd.s32 %v1577, 1
  %vm1583 = vcmp.gt.s32.totalorder %v1582, 0
  %v1584 = vsel %vm1583, %v1582, 0
  %v1585 = vshrl.u32 %v1584, 5
  %v1586 = vand.u32 %v1584, 31
  %v1587 = vsub.s32 32, %v1586
  %v1588 = vshrl.u32 683565275, %v1587
  %v1589 = vshll.u32 683565275, %v1586
  %v1590 = vshrl.u32 2475754826, %v1587
  %v1591 = vor.u32 %v1589, %v1590
  %v1592 = vshll.u32 2475754826, %v1586
  %v1593 = vshrl.u32 2131351028, %v1587
  %v1594 = vor.u32 %v1592, %v1593
  %v1595 = vshll.u32 2131351028, %v1586
  %v1596 = vshrl.u32 2102212464, %v1587
  %v1597 = vor.u32 %v1595, %v1596
  %v1598 = vshll.u32 2102212464, %v1586
  %v1599 = vshrl.u32 920167782, %v1587
  %v1600 = vor.u32 %v1598, %v1599
  %v1601 = vshll.u32 920167782, %v1586
  %v1602 = vshrl.u32 1326507024, %v1587
  %v1603 = vor.u32 %v1601, %v1602
  %vm1604 = vcmp.lt.s32.totalorder %v1585, 1
  %vm1605 = vcmp.lt.s32.totalorder %v1585, 2
  %vm1606 = vcmp.lt.s32.totalorder %v1585, 3
  %vm1607 = vcmp.lt.s32.totalorder %v1585, 4
  %v1608 = vsel %vm1604, %v1588, %v1591
  %v1609 = vsel %vm1607, %v1597, 2102212464
  %v1610 = vsel %vm1606, %v1594, %v1609
  %v1611 = vsel %vm1605, %v1608, %v1610
  %v1612 = vsel %vm1604, %v1591, %v1594
  %v1613 = vsel %vm1607, %v1600, 920167782
  %v1614 = vsel %vm1606, %v1597, %v1613
  %v1615 = vsel %vm1605, %v1612, %v1614
  %v1616 = vsel %vm1604, %v1594, %v1597
  %v1617 = vsel %vm1607, %v1603, 1326507024
  %v1618 = vsel %vm1606, %v1600, %v1617
  %v1619 = vsel %vm1605, %v1616, %v1618
  %v1620 = vshll.u32 %v1580, 8
  %v1621 = vmul.u32.u64.compose %v1620, %v1619
  %v1622 = vextract.low.u32 %v1621
  %v1623 = vextract.high.u32 %v1621
  %v1624 = vmul.u32.u64.compose %v1620, %v1615
  %v1625 = vextract.low.u32 %v1624
  %v1626 = vextract.high.u32 %v1624
  %v1627 = vmul.u32 %v1620, %v1611
  %v1628 = vadd.s32 %v1623, %v1625
  %vm1629 = vc.u32 %v1623, %v1625
  %v1630 = vadd.s32 %v1626, 1
  %v1631 = vsel %vm1629, %v1630, %v1626
  %v1632 = vadd.s32 %v1627, %v1631
  %v1633 = vadd.s32 %v1632, 536870912
  %v1634 = vshrl.u32 %v1633, 30
  %v1635 = vshll.u32 %v1634, 30
  %v1636 = vsub.s32 %v1632, %v1635
  %vm1637 = vcmp.lt.s32.totalorder %v1636, 0
  %v1638 = vsub.s32 0, %v1636
  %v1639 = vsel %vm1637, %v1638, %v1636
  %v1640 = vclz %v1639
  %v1641 = vsub.s32 %v1640, 2
  %vm1642 = vcmp.gt.s32.totalorder 0, %v1641
  %v1643 = vsel %vm1642, 0, %v1641
  %v1644 = vsub.s32 32, %v1643
  %v1645 = vshll.u32 %v1636, %v1643
  %v1646 = vshrl.u32 %v1628, %v1644
  %v1647 = vor.u32 %v1645, %v1646
  %v1648 = vsub.s32 4294967266, %v1643
  %v1649 = vadd.s32 %v1648, 127
  %v1650 = vshll.u32 %v1649, 23
  %v1651 = vor.u32 4788187, %v1650
  %v1652 = vand.u32 2147483647, %v1651
  %v1654 = vcvt.s32.f32 %v1647
  %v1655 = vmul.f32 %v1654, %v1652
  %v1656 = vxor.u32 %v1655, 2147483648
  %v1657 = vsel %vm1574, %v1656, %v1655
  %v1658 = vsub.s32 4, %v1634
  %v1659 = vsel %vm1574, %v1658, %v1634
  %v1660 = vsel %vm1573, %v26, %v1657
  %v1661 = vsel %vm1573, 0, %v1659
  %v1662 = vcosq.f32.pop %v1660
  %v1663 = vsinq.f32.pop %v1660
  %vm1664 = vweird.f32 %v26
  %v1665 = vand.u32 %v1661, 3
  %vm1666 = vcmp.lt.s32.totalorder %v1665, 2
  %vm1667 = vcmp.eq.s32.totalorder %v1665, 0
  %v1668 = vxor.u32 %v1663, 2147483648
  %v1669 = vsel %vm1667, %v1662, %v1668
  %vm1670 = vcmp.eq.s32.totalorder %v1665, 2
  %v1671 = vxor.u32 %v1662, 2147483648
  %v1672 = vsel %vm1670, %v1671, %v1663
  %v1673 = vsel %vm1666, %v1669, %v1672
  %v1674 = vsel %vm1664, nan, %v1673
  %v1675 = vand.u32 2147483647, %v11
  %vm1676 = vcmp.le.f32.partialorder %v1675, 0.7853982
  %vm1677 = vcmp.lt.s32.totalorder %v11, 0
  %v1678 = vand.u32 %v11, 2139095040
  %v1679 = vshrl.u32 %v1678, 23
  %v1680 = vsub.s32 %v1679, 127
  %v1681 = vand.u32 2147483647, %v11
  %v1682 = vand.u32 %v1681, 8388607
  %v1683 = vor.u32 %v1682, 8388608
  %v1684 = vsub.s32 0, %v1683
  %v1685 = vadd.s32 %v1680, 1
  %vm1686 = vcmp.gt.s32.totalorder %v1685, 0
  %v1687 = vsel %vm1686, %v1685, 0
  %v1688 = vshrl.u32 %v1687, 5
  %v1689 = vand.u32 %v1687, 31
  %v1690 = vsub.s32 32, %v1689
  %v1691 = vshrl.u32 683565275, %v1690
  %v1692 = vshll.u32 683565275, %v1689
  %v1693 = vshrl.u32 2475754826, %v1690
  %v1694 = vor.u32 %v1692, %v1693
  %v1695 = vshll.u32 2475754826, %v1689
  %v1696 = vshrl.u32 2131351028, %v1690
  %v1697 = vor.u32 %v1695, %v1696
  %v1698 = vshll.u32 2131351028, %v1689
  %v1699 = vshrl.u32 2102212464, %v1690
  %v1700 = vor.u32 %v1698, %v1699
  %v1701 = vshll.u32 2102212464, %v1689
  %v1702 = vshrl.u32 920167782, %v1690
  %v1703 = vor.u32 %v1701, %v1702
  %v1704 = vshll.u32 920167782, %v1689
  %v1705 = vshrl.u32 1326507024, %v1690
  %v1706 = vor.u32 %v1704, %v1705
  %vm1707 = vcmp.lt.s32.totalorder %v1688, 1
  %vm1708 = vcmp.lt.s32.totalorder %v1688, 2
  %vm1709 = vcmp.lt.s32.totalorder %v1688, 3
  %vm1710 = vcmp.lt.s32.totalorder %v1688, 4
  %v1711 = vsel %vm1707, %v1691, %v1694
  %v1712 = vsel %vm1710, %v1700, 2102212464
  %v1713 = vsel %vm1709, %v1697, %v1712
  %v1714 = vsel %vm1708, %v1711, %v1713
  %v1715 = vsel %vm1707, %v1694, %v1697
  %v1716 = vsel %vm1710, %v1703, 920167782
  %v1717 = vsel %vm1709, %v1700, %v1716
  %v1718 = vsel %vm1708, %v1715, %v1717
  %v1719 = vsel %vm1707, %v1697, %v1700
  %v1720 = vsel %vm1710, %v1706, 1326507024
  %v1721 = vsel %vm1709, %v1703, %v1720
  %v1722 = vsel %vm1708, %v1719, %v1721
  %v1723 = vshll.u32 %v1683, 8
  %v1724 = vmul.u32.u64.compose %v1723, %v1722
  %v1725 = vextract.low.u32 %v1724
  %v1726 = vextract.high.u32 %v1724
  %v1727 = vmul.u32.u64.compose %v1723, %v1718
  %v1728 = vextract.low.u32 %v1727
  %v1729 = vextract.high.u32 %v1727
  %v1730 = vmul.u32 %v1723, %v1714
  %v1731 = vadd.s32 %v1726, %v1728
  %vm1732 = vc.u32 %v1726, %v1728
  %v1733 = vadd.s32 %v1729, 1
  %v1734 = vsel %vm1732, %v1733, %v1729
  %v1735 = vadd.s32 %v1730, %v1734
  %v1736 = vadd.s32 %v1735, 536870912
  %v1737 = vshrl.u32 %v1736, 30
  %v1738 = vshll.u32 %v1737, 30
  %v1739 = vsub.s32 %v1735, %v1738
  %vm1740 = vcmp.lt.s32.totalorder %v1739, 0
  %v1741 = vsub.s32 0, %v1739
  %v1742 = vsel %vm1740, %v1741, %v1739
  %v1743 = vclz %v1742
  %v1744 = vsub.s32 %v1743, 2
  %vm1745 = vcmp.gt.s32.totalorder 0, %v1744
  %v1746 = vsel %vm1745, 0, %v1744
  %v1747 = vsub.s32 32, %v1746
  %v1748 = vshll.u32 %v1739, %v1746
  %v1749 = vshrl.u32 %v1731, %v1747
  %v1750 = vor.u32 %v1748, %v1749
  %v1751 = vsub.s32 4294967266, %v1746
  %v1752 = vadd.s32 %v1751, 127
  %v1753 = vshll.u32 %v1752, 23
  %v1754 = vor.u32 4788187, %v1753
  %v1755 = vand.u32 2147483647, %v1754
  %v1757 = vcvt.s32.f32 %v1750
  %v1758 = vmul.f32 %v1757, %v1755
  %v1759 = vxor.u32 %v1758, 2147483648
  %v1760 = vsel %vm1677, %v1759, %v1758
  %v1761 = vsub.s32 4, %v1737
  %v1762 = vsel %vm1677, %v1761, %v1737
  %v1763 = vsel %vm1676, %v11, %v1760
  %v1764 = vsel %vm1676, 0, %v1762
  %v1765 = vcosq.f32.pop %v1763
  %v1766 = vsinq.f32.pop %v1763
  %vm1767 = vweird.f32 %v11
  %v1768 = vadd.s32 %v1764, 3
  %v1769 = vand.u32 %v1768, 3
  %vm1770 = vcmp.lt.s32.totalorder %v1769, 2
  %vm1771 = vcmp.eq.s32.totalorder %v1769, 0
  %v1772 = vxor.u32 %v1766, 2147483648
  %v1773 = vsel %vm1771, %v1765, %v1772
  %vm1774 = vcmp.eq.s32.totalorder %v1769, 2
  %v1775 = vxor.u32 %v1765, 2147483648
  %v1776 = vsel %vm1774, %v1775, %v1766
  %v1777 = vsel %vm1770, %v1773, %v1776
  %v1778 = vsel %vm1767, nan, %v1777
  %v1779 = vand.u32 2147483647, %v12
  %vm1780 = vcmp.le.f32.partialorder %v1779, 0.7853982
  %vm1781 = vcmp.lt.s32.totalorder %v12, 0
  %v1782 = vand.u32 %v12, 2139095040
  %v1783 = vshrl.u32 %v1782, 23
  %v1784 = vsub.s32 %v1783, 127
  %v1785 = vand.u32 2147483647, %v12
  %v1786 = vand.u32 %v1785, 8388607
  %v1787 = vor.u32 %v1786, 8388608
  %v1788 = vsub.s32 0, %v1787
  %v1789 = vadd.s32 %v1784, 1
  %vm1790 = vcmp.gt.s32.totalorder %v1789, 0
  %v1791 = vsel %vm1790, %v1789, 0
  %v1792 = vshrl.u32 %v1791, 5
  %v1793 = vand.u32 %v1791, 31
  %v1794 = vsub.s32 32, %v1793
  %v1795 = vshrl.u32 683565275, %v1794
  %v1796 = vshll.u32 683565275, %v1793
  %v1797 = vshrl.u32 2475754826, %v1794
  %v1798 = vor.u32 %v1796, %v1797
  %v1799 = vshll.u32 2475754826, %v1793
  %v1800 = vshrl.u32 2131351028, %v1794
  %v1801 = vor.u32 %v1799, %v1800
  %v1802 = vshll.u32 2131351028, %v1793
  %v1803 = vshrl.u32 2102212464, %v1794
  %v1804 = vor.u32 %v1802, %v1803
  %v1805 = vshll.u32 2102212464, %v1793
  %v1806 = vshrl.u32 920167782, %v1794
  %v1807 = vor.u32 %v1805, %v1806
  %v1808 = vshll.u32 920167782, %v1793
  %v1809 = vshrl.u32 1326507024, %v1794
  %v1810 = vor.u32 %v1808, %v1809
  %vm1811 = vcmp.lt.s32.totalorder %v1792, 1
  %vm1812 = vcmp.lt.s32.totalorder %v1792, 2
  %vm1813 = vcmp.lt.s32.totalorder %v1792, 3
  %vm1814 = vcmp.lt.s32.totalorder %v1792, 4
  %v1815 = vsel %vm1811, %v1795, %v1798
  %v1816 = vsel %vm1814, %v1804, 2102212464
  %v1817 = vsel %vm1813, %v1801, %v1816
  %v1818 = vsel %vm1812, %v1815, %v1817
  %v1819 = vsel %vm1811, %v1798, %v1801
  %v1820 = vsel %vm1814, %v1807, 920167782
  %v1821 = vsel %vm1813, %v1804, %v1820
  %v1822 = vsel %vm1812, %v1819, %v1821
  %v1823 = vsel %vm1811, %v1801, %v1804
  %v1824 = vsel %vm1814, %v1810, 1326507024
  %v1825 = vsel %vm1813, %v1807, %v1824
  %v1826 = vsel %vm1812, %v1823, %v1825
  %v1827 = vshll.u32 %v1787, 8
  %v1828 = vmul.u32.u64.compose %v1827, %v1826
  %v1829 = vextract.low.u32 %v1828
  %v1830 = vextract.high.u32 %v1828
  %v1831 = vmul.u32.u64.compose %v1827, %v1822
  %v1832 = vextract.low.u32 %v1831
  %v1833 = vextract.high.u32 %v1831
  %v1834 = vmul.u32 %v1827, %v1818
  %v1835 = vadd.s32 %v1830, %v1832
  %vm1836 = vc.u32 %v1830, %v1832
  %v1837 = vadd.s32 %v1833, 1
  %v1838 = vsel %vm1836, %v1837, %v1833
  %v1839 = vadd.s32 %v1834, %v1838
  %v1840 = vadd.s32 %v1839, 536870912
  %v1841 = vshrl.u32 %v1840, 30
  %v1842 = vshll.u32 %v1841, 30
  %v1843 = vsub.s32 %v1839, %v1842
  %vm1844 = vcmp.lt.s32.totalorder %v1843, 0
  %v1845 = vsub.s32 0, %v1843
  %v1846 = vsel %vm1844, %v1845, %v1843
  %v1847 = vclz %v1846
  %v1848 = vsub.s32 %v1847, 2
  %vm1849 = vcmp.gt.s32.totalorder 0, %v1848
  %v1850 = vsel %vm1849, 0, %v1848
  %v1851 = vsub.s32 32, %v1850
  %v1852 = vshll.u32 %v1843, %v1850
  %v1853 = vshrl.u32 %v1835, %v1851
  %v1854 = vor.u32 %v1852, %v1853
  %v1855 = vsub.s32 4294967266, %v1850
  %v1856 = vadd.s32 %v1855, 127
  %v1857 = vshll.u32 %v1856, 23
  %v1858 = vor.u32 4788187, %v1857
  %v1859 = vand.u32 2147483647, %v1858
  %v1861 = vcvt.s32.f32 %v1854
  %v1862 = vmul.f32 %v1861, %v1859
  %v1863 = vxor.u32 %v1862, 2147483648
  %v1864 = vsel %vm1781, %v1863, %v1862
  %v1865 = vsub.s32 4, %v1841
  %v1866 = vsel %vm1781, %v1865, %v1841
  %v1867 = vsel %vm1780, %v12, %v1864
  %v1868 = vsel %vm1780, 0, %v1866
  %v1869 = vcosq.f32.pop %v1867
  %v1870 = vsinq.f32.pop %v1867
  %vm1871 = vweird.f32 %v12
  %v1872 = vadd.s32 %v1868, 3
  %v1873 = vand.u32 %v1872, 3
  %vm1874 = vcmp.lt.s32.totalorder %v1873, 2
  %vm1875 = vcmp.eq.s32.totalorder %v1873, 0
  %v1876 = vxor.u32 %v1870, 2147483648
  %v1877 = vsel %vm1875, %v1869, %v1876
  %vm1878 = vcmp.eq.s32.totalorder %v1873, 2
  %v1879 = vxor.u32 %v1869, 2147483648
  %v1880 = vsel %vm1878, %v1879, %v1870
  %v1881 = vsel %vm1874, %v1877, %v1880
  %v1882 = vsel %vm1871, nan, %v1881
  %v1883 = vand.u32 2147483647, %v13
  %vm1884 = vcmp.le.f32.partialorder %v1883, 0.7853982
  %vm1885 = vcmp.lt.s32.totalorder %v13, 0
  %v1886 = vand.u32 %v13, 2139095040
  %v1887 = vshrl.u32 %v1886, 23
  %v1888 = vsub.s32 %v1887, 127
  %v1889 = vand.u32 2147483647, %v13
  %v1890 = vand.u32 %v1889, 8388607
  %v1891 = vor.u32 %v1890, 8388608
  %v1892 = vsub.s32 0, %v1891
  %v1893 = vadd.s32 %v1888, 1
  %vm1894 = vcmp.gt.s32.totalorder %v1893, 0
  %v1895 = vsel %vm1894, %v1893, 0
  %v1896 = vshrl.u32 %v1895, 5
  %v1897 = vand.u32 %v1895, 31
  %v1898 = vsub.s32 32, %v1897
  %v1899 = vshrl.u32 683565275, %v1898
  %v1900 = vshll.u32 683565275, %v1897
  %v1901 = vshrl.u32 2475754826, %v1898
  %v1902 = vor.u32 %v1900, %v1901
  %v1903 = vshll.u32 2475754826, %v1897
  %v1904 = vshrl.u32 2131351028, %v1898
  %v1905 = vor.u32 %v1903, %v1904
  %v1906 = vshll.u32 2131351028, %v1897
  %v1907 = vshrl.u32 2102212464, %v1898
  %v1908 = vor.u32 %v1906, %v1907
  %v1909 = vshll.u32 2102212464, %v1897
  %v1910 = vshrl.u32 920167782, %v1898
  %v1911 = vor.u32 %v1909, %v1910
  %v1912 = vshll.u32 920167782, %v1897
  %v1913 = vshrl.u32 1326507024, %v1898
  %v1914 = vor.u32 %v1912, %v1913
  %vm1915 = vcmp.lt.s32.totalorder %v1896, 1
  %vm1916 = vcmp.lt.s32.totalorder %v1896, 2
  %vm1917 = vcmp.lt.s32.totalorder %v1896, 3
  %vm1918 = vcmp.lt.s32.totalorder %v1896, 4
  %v1919 = vsel %vm1915, %v1899, %v1902
  %v1920 = vsel %vm1918, %v1908, 2102212464
  %v1921 = vsel %vm1917, %v1905, %v1920
  %v1922 = vsel %vm1916, %v1919, %v1921
  %v1923 = vsel %vm1915, %v1902, %v1905
  %v1924 = vsel %vm1918, %v1911, 920167782
  %v1925 = vsel %vm1917, %v1908, %v1924
  %v1926 = vsel %vm1916, %v1923, %v1925
  %v1927 = vsel %vm1915, %v1905, %v1908
  %v1928 = vsel %vm1918, %v1914, 1326507024
  %v1929 = vsel %vm1917, %v1911, %v1928
  %v1930 = vsel %vm1916, %v1927, %v1929
  %v1931 = vshll.u32 %v1891, 8
  %v1932 = vmul.u32.u64.compose %v1931, %v1930
  %v1933 = vextract.low.u32 %v1932
  %v1934 = vextract.high.u32 %v1932
  %v1935 = vmul.u32.u64.compose %v1931, %v1926
  %v1936 = vextract.low.u32 %v1935
  %v1937 = vextract.high.u32 %v1935
  %v1938 = vmul.u32 %v1931, %v1922
  %v1939 = vadd.s32 %v1934, %v1936
  %vm1940 = vc.u32 %v1934, %v1936
  %v1941 = vadd.s32 %v1937, 1
  %v1942 = vsel %vm1940, %v1941, %v1937
  %v1943 = vadd.s32 %v1938, %v1942
  %v1944 = vadd.s32 %v1943, 536870912
  %v1945 = vshrl.u32 %v1944, 30
  %v1946 = vshll.u32 %v1945, 30
  %v1947 = vsub.s32 %v1943, %v1946
  %vm1948 = vcmp.lt.s32.totalorder %v1947, 0
  %v1949 = vsub.s32 0, %v1947
  %v1950 = vsel %vm1948, %v1949, %v1947
  %v1951 = vclz %v1950
  %v1952 = vsub.s32 %v1951, 2
  %vm1953 = vcmp.gt.s32.totalorder 0, %v1952
  %v1954 = vsel %vm1953, 0, %v1952
  %v1955 = vsub.s32 32, %v1954
  %v1956 = vshll.u32 %v1947, %v1954
  %v1957 = vshrl.u32 %v1939, %v1955
  %v1958 = vor.u32 %v1956, %v1957
  %v1959 = vsub.s32 4294967266, %v1954
  %v1960 = vadd.s32 %v1959, 127
  %v1961 = vshll.u32 %v1960, 23
  %v1962 = vor.u32 4788187, %v1961
  %v1963 = vand.u32 2147483647, %v1962
  %v1965 = vcvt.s32.f32 %v1958
  %v1966 = vmul.f32 %v1965, %v1963
  %v1967 = vxor.u32 %v1966, 2147483648
  %v1968 = vsel %vm1885, %v1967, %v1966
  %v1969 = vsub.s32 4, %v1945
  %v1970 = vsel %vm1885, %v1969, %v1945
  %v1971 = vsel %vm1884, %v13, %v1968
  %v1972 = vsel %vm1884, 0, %v1970
  %v1973 = vcosq.f32.pop %v1971
  %v1974 = vsinq.f32.pop %v1971
  %vm1975 = vweird.f32 %v13
  %v1976 = vadd.s32 %v1972, 3
  %v1977 = vand.u32 %v1976, 3
  %vm1978 = vcmp.lt.s32.totalorder %v1977, 2
  %vm1979 = vcmp.eq.s32.totalorder %v1977, 0
  %v1980 = vxor.u32 %v1974, 2147483648
  %v1981 = vsel %vm1979, %v1973, %v1980
  %vm1982 = vcmp.eq.s32.totalorder %v1977, 2
  %v1983 = vxor.u32 %v1973, 2147483648
  %v1984 = vsel %vm1982, %v1983, %v1974
  %v1985 = vsel %vm1978, %v1981, %v1984
  %v1986 = vsel %vm1975, nan, %v1985
  %v1987 = vand.u32 2147483647, %v14
  %vm1988 = vcmp.le.f32.partialorder %v1987, 0.7853982
  %vm1989 = vcmp.lt.s32.totalorder %v14, 0
  %v1990 = vand.u32 %v14, 2139095040
  %v1991 = vshrl.u32 %v1990, 23
  %v1992 = vsub.s32 %v1991, 127
  %v1993 = vand.u32 2147483647, %v14
  %v1994 = vand.u32 %v1993, 8388607
  %v1995 = vor.u32 %v1994, 8388608
  %v1996 = vsub.s32 0, %v1995
  %v1997 = vadd.s32 %v1992, 1
  %vm1998 = vcmp.gt.s32.totalorder %v1997, 0
  %v1999 = vsel %vm1998, %v1997, 0
  %v2000 = vshrl.u32 %v1999, 5
  %v2001 = vand.u32 %v1999, 31
  %v2002 = vsub.s32 32, %v2001
  %v2003 = vshrl.u32 683565275, %v2002
  %v2004 = vshll.u32 683565275, %v2001
  %v2005 = vshrl.u32 2475754826, %v2002
  %v2006 = vor.u32 %v2004, %v2005
  %v2007 = vshll.u32 2475754826, %v2001
  %v2008 = vshrl.u32 2131351028, %v2002
  %v2009 = vor.u32 %v2007, %v2008
  %v2010 = vshll.u32 2131351028, %v2001
  %v2011 = vshrl.u32 2102212464, %v2002
  %v2012 = vor.u32 %v2010, %v2011
  %v2013 = vshll.u32 2102212464, %v2001
  %v2014 = vshrl.u32 920167782, %v2002
  %v2015 = vor.u32 %v2013, %v2014
  %v2016 = vshll.u32 920167782, %v2001
  %v2017 = vshrl.u32 1326507024, %v2002
  %v2018 = vor.u32 %v2016, %v2017
  %vm2019 = vcmp.lt.s32.totalorder %v2000, 1
  %vm2020 = vcmp.lt.s32.totalorder %v2000, 2
  %vm2021 = vcmp.lt.s32.totalorder %v2000, 3
  %vm2022 = vcmp.lt.s32.totalorder %v2000, 4
  %v2023 = vsel %vm2019, %v2003, %v2006
  %v2024 = vsel %vm2022, %v2012, 2102212464
  %v2025 = vsel %vm2021, %v2009, %v2024
  %v2026 = vsel %vm2020, %v2023, %v2025
  %v2027 = vsel %vm2019, %v2006, %v2009
  %v2028 = vsel %vm2022, %v2015, 920167782
  %v2029 = vsel %vm2021, %v2012, %v2028
  %v2030 = vsel %vm2020, %v2027, %v2029
  %v2031 = vsel %vm2019, %v2009, %v2012
  %v2032 = vsel %vm2022, %v2018, 1326507024
  %v2033 = vsel %vm2021, %v2015, %v2032
  %v2034 = vsel %vm2020, %v2031, %v2033
  %v2035 = vshll.u32 %v1995, 8
  %v2036 = vmul.u32.u64.compose %v2035, %v2034
  %v2037 = vextract.low.u32 %v2036
  %v2038 = vextract.high.u32 %v2036
  %v2039 = vmul.u32.u64.compose %v2035, %v2030
  %v2040 = vextract.low.u32 %v2039
  %v2041 = vextract.high.u32 %v2039
  %v2042 = vmul.u32 %v2035, %v2026
  %v2043 = vadd.s32 %v2038, %v2040
  %vm2044 = vc.u32 %v2038, %v2040
  %v2045 = vadd.s32 %v2041, 1
  %v2046 = vsel %vm2044, %v2045, %v2041
  %v2047 = vadd.s32 %v2042, %v2046
  %v2048 = vadd.s32 %v2047, 536870912
  %v2049 = vshrl.u32 %v2048, 30
  %v2050 = vshll.u32 %v2049, 30
  %v2051 = vsub.s32 %v2047, %v2050
  %vm2052 = vcmp.lt.s32.totalorder %v2051, 0
  %v2053 = vsub.s32 0, %v2051
  %v2054 = vsel %vm2052, %v2053, %v2051
  %v2055 = vclz %v2054
  %v2056 = vsub.s32 %v2055, 2
  %vm2057 = vcmp.gt.s32.totalorder 0, %v2056
  %v2058 = vsel %vm2057, 0, %v2056
  %v2059 = vsub.s32 32, %v2058
  %v2060 = vshll.u32 %v2051, %v2058
  %v2061 = vshrl.u32 %v2043, %v2059
  %v2062 = vor.u32 %v2060, %v2061
  %v2063 = vsub.s32 4294967266, %v2058
  %v2064 = vadd.s32 %v2063, 127
  %v2065 = vshll.u32 %v2064, 23
  %v2066 = vor.u32 4788187, %v2065
  %v2067 = vand.u32 2147483647, %v2066
  %v2069 = vcvt.s32.f32 %v2062
  %v2070 = vmul.f32 %v2069, %v2067
  %v2071 = vxor.u32 %v2070, 2147483648
  %v2072 = vsel %vm1989, %v2071, %v2070
  %v2073 = vsub.s32 4, %v2049
  %v2074 = vsel %vm1989, %v2073, %v2049
  %v2075 = vsel %vm1988, %v14, %v2072
  %v2076 = vsel %vm1988, 0, %v2074
  %v2077 = vcosq.f32.pop %v2075
  %v2078 = vsinq.f32.pop %v2075
  %vm2079 = vweird.f32 %v14
  %v2080 = vadd.s32 %v2076, 3
  %v2081 = vand.u32 %v2080, 3
  %vm2082 = vcmp.lt.s32.totalorder %v2081, 2
  %vm2083 = vcmp.eq.s32.totalorder %v2081, 0
  %v2084 = vxor.u32 %v2078, 2147483648
  %v2085 = vsel %vm2083, %v2077, %v2084
  %vm2086 = vcmp.eq.s32.totalorder %v2081, 2
  %v2087 = vxor.u32 %v2077, 2147483648
  %v2088 = vsel %vm2086, %v2087, %v2078
  %v2089 = vsel %vm2082, %v2085, %v2088
  %v2090 = vsel %vm2079, nan, %v2089
  %v2091 = vand.u32 2147483647, %v15
  %vm2092 = vcmp.le.f32.partialorder %v2091, 0.7853982
  %vm2093 = vcmp.lt.s32.totalorder %v15, 0
  %v2094 = vand.u32 %v15, 2139095040
  %v2095 = vshrl.u32 %v2094, 23
  %v2096 = vsub.s32 %v2095, 127
  %v2097 = vand.u32 2147483647, %v15
  %v2098 = vand.u32 %v2097, 8388607
  %v2099 = vor.u32 %v2098, 8388608
  %v2100 = vsub.s32 0, %v2099
  %v2101 = vadd.s32 %v2096, 1
  %vm2102 = vcmp.gt.s32.totalorder %v2101, 0
  %v2103 = vsel %vm2102, %v2101, 0
  %v2104 = vshrl.u32 %v2103, 5
  %v2105 = vand.u32 %v2103, 31
  %v2106 = vsub.s32 32, %v2105
  %v2107 = vshrl.u32 683565275, %v2106
  %v2108 = vshll.u32 683565275, %v2105
  %v2109 = vshrl.u32 2475754826, %v2106
  %v2110 = vor.u32 %v2108, %v2109
  %v2111 = vshll.u32 2475754826, %v2105
  %v2112 = vshrl.u32 2131351028, %v2106
  %v2113 = vor.u32 %v2111, %v2112
  %v2114 = vshll.u32 2131351028, %v2105
  %v2115 = vshrl.u32 2102212464, %v2106
  %v2116 = vor.u32 %v2114, %v2115
  %v2117 = vshll.u32 2102212464, %v2105
  %v2118 = vshrl.u32 920167782, %v2106
  %v2119 = vor.u32 %v2117, %v2118
  %v2120 = vshll.u32 920167782, %v2105
  %v2121 = vshrl.u32 1326507024, %v2106
  %v2122 = vor.u32 %v2120, %v2121
  %vm2123 = vcmp.lt.s32.totalorder %v2104, 1
  %vm2124 = vcmp.lt.s32.totalorder %v2104, 2
  %vm2125 = vcmp.lt.s32.totalorder %v2104, 3
  %vm2126 = vcmp.lt.s32.totalorder %v2104, 4
  %v2127 = vsel %vm2123, %v2107, %v2110
  %v2128 = vsel %vm2126, %v2116, 2102212464
  %v2129 = vsel %vm2125, %v2113, %v2128
  %v2130 = vsel %vm2124, %v2127, %v2129
  %v2131 = vsel %vm2123, %v2110, %v2113
  %v2132 = vsel %vm2126, %v2119, 920167782
  %v2133 = vsel %vm2125, %v2116, %v2132
  %v2134 = vsel %vm2124, %v2131, %v2133
  %v2135 = vsel %vm2123, %v2113, %v2116
  %v2136 = vsel %vm2126, %v2122, 1326507024
  %v2137 = vsel %vm2125, %v2119, %v2136
  %v2138 = vsel %vm2124, %v2135, %v2137
  %v2139 = vshll.u32 %v2099, 8
  %v2140 = vmul.u32.u64.compose %v2139, %v2138
  %v2141 = vextract.low.u32 %v2140
  %v2142 = vextract.high.u32 %v2140
  %v2143 = vmul.u32.u64.compose %v2139, %v2134
  %v2144 = vextract.low.u32 %v2143
  %v2145 = vextract.high.u32 %v2143
  %v2146 = vmul.u32 %v2139, %v2130
  %v2147 = vadd.s32 %v2142, %v2144
  %vm2148 = vc.u32 %v2142, %v2144
  %v2149 = vadd.s32 %v2145, 1
  %v2150 = vsel %vm2148, %v2149, %v2145
  %v2151 = vadd.s32 %v2146, %v2150
  %v2152 = vadd.s32 %v2151, 536870912
  %v2153 = vshrl.u32 %v2152, 30
  %v2154 = vshll.u32 %v2153, 30
  %v2155 = vsub.s32 %v2151, %v2154
  %vm2156 = vcmp.lt.s32.totalorder %v2155, 0
  %v2157 = vsub.s32 0, %v2155
  %v2158 = vsel %vm2156, %v2157, %v2155
  %v2159 = vclz %v2158
  %v2160 = vsub.s32 %v2159, 2
  %vm2161 = vcmp.gt.s32.totalorder 0, %v2160
  %v2162 = vsel %vm2161, 0, %v2160
  %v2163 = vsub.s32 32, %v2162
  %v2164 = vshll.u32 %v2155, %v2162
  %v2165 = vshrl.u32 %v2147, %v2163
  %v2166 = vor.u32 %v2164, %v2165
  %v2167 = vsub.s32 4294967266, %v2162
  %v2168 = vadd.s32 %v2167, 127
  %v2169 = vshll.u32 %v2168, 23
  %v2170 = vor.u32 4788187, %v2169
  %v2171 = vand.u32 2147483647, %v2170
  %v2173 = vcvt.s32.f32 %v2166
  %v2174 = vmul.f32 %v2173, %v2171
  %v2175 = vxor.u32 %v2174, 2147483648
  %v2176 = vsel %vm2093, %v2175, %v2174
  %v2177 = vsub.s32 4, %v2153
  %v2178 = vsel %vm2093, %v2177, %v2153
  %v2179 = vsel %vm2092, %v15, %v2176
  %v2180 = vsel %vm2092, 0, %v2178
  %v2181 = vcosq.f32.pop %v2179
  %v2182 = vsinq.f32.pop %v2179
  %vm2183 = vweird.f32 %v15
  %v2184 = vadd.s32 %v2180, 3
  %v2185 = vand.u32 %v2184, 3
  %vm2186 = vcmp.lt.s32.totalorder %v2185, 2
  %vm2187 = vcmp.eq.s32.totalorder %v2185, 0
  %v2188 = vxor.u32 %v2182, 2147483648
  %v2189 = vsel %vm2187, %v2181, %v2188
  %vm2190 = vcmp.eq.s32.totalorder %v2185, 2
  %v2191 = vxor.u32 %v2181, 2147483648
  %v2192 = vsel %vm2190, %v2191, %v2182
  %v2193 = vsel %vm2186, %v2189, %v2192
  %v2194 = vsel %vm2183, nan, %v2193
  %v2195 = vand.u32 2147483647, %v16
  %vm2196 = vcmp.le.f32.partialorder %v2195, 0.7853982
  %vm2197 = vcmp.lt.s32.totalorder %v16, 0
  %v2198 = vand.u32 %v16, 2139095040
  %v2199 = vshrl.u32 %v2198, 23
  %v2200 = vsub.s32 %v2199, 127
  %v2201 = vand.u32 2147483647, %v16
  %v2202 = vand.u32 %v2201, 8388607
  %v2203 = vor.u32 %v2202, 8388608
  %v2204 = vsub.s32 0, %v2203
  %v2205 = vadd.s32 %v2200, 1
  %vm2206 = vcmp.gt.s32.totalorder %v2205, 0
  %v2207 = vsel %vm2206, %v2205, 0
  %v2208 = vshrl.u32 %v2207, 5
  %v2209 = vand.u32 %v2207, 31
  %v2210 = vsub.s32 32, %v2209
  %v2211 = vshrl.u32 683565275, %v2210
  %v2212 = vshll.u32 683565275, %v2209
  %v2213 = vshrl.u32 2475754826, %v2210
  %v2214 = vor.u32 %v2212, %v2213
  %v2215 = vshll.u32 2475754826, %v2209
  %v2216 = vshrl.u32 2131351028, %v2210
  %v2217 = vor.u32 %v2215, %v2216
  %v2218 = vshll.u32 2131351028, %v2209
  %v2219 = vshrl.u32 2102212464, %v2210
  %v2220 = vor.u32 %v2218, %v2219
  %v2221 = vshll.u32 2102212464, %v2209
  %v2222 = vshrl.u32 920167782, %v2210
  %v2223 = vor.u32 %v2221, %v2222
  %v2224 = vshll.u32 920167782, %v2209
  %v2225 = vshrl.u32 1326507024, %v2210
  %v2226 = vor.u32 %v2224, %v2225
  %vm2227 = vcmp.lt.s32.totalorder %v2208, 1
  %vm2228 = vcmp.lt.s32.totalorder %v2208, 2
  %vm2229 = vcmp.lt.s32.totalorder %v2208, 3
  %vm2230 = vcmp.lt.s32.totalorder %v2208, 4
  %v2231 = vsel %vm2227, %v2211, %v2214
  %v2232 = vsel %vm2230, %v2220, 2102212464
  %v2233 = vsel %vm2229, %v2217, %v2232
  %v2234 = vsel %vm2228, %v2231, %v2233
  %v2235 = vsel %vm2227, %v2214, %v2217
  %v2236 = vsel %vm2230, %v2223, 920167782
  %v2237 = vsel %vm2229, %v2220, %v2236
  %v2238 = vsel %vm2228, %v2235, %v2237
  %v2239 = vsel %vm2227, %v2217, %v2220
  %v2240 = vsel %vm2230, %v2226, 1326507024
  %v2241 = vsel %vm2229, %v2223, %v2240
  %v2242 = vsel %vm2228, %v2239, %v2241
  %v2243 = vshll.u32 %v2203, 8
  %v2244 = vmul.u32.u64.compose %v2243, %v2242
  %v2245 = vextract.low.u32 %v2244
  %v2246 = vextract.high.u32 %v2244
  %v2247 = vmul.u32.u64.compose %v2243, %v2238
  %v2248 = vextract.low.u32 %v2247
  %v2249 = vextract.high.u32 %v2247
  %v2250 = vmul.u32 %v2243, %v2234
  %v2251 = vadd.s32 %v2246, %v2248
  %vm2252 = vc.u32 %v2246, %v2248
  %v2253 = vadd.s32 %v2249, 1
  %v2254 = vsel %vm2252, %v2253, %v2249
  %v2255 = vadd.s32 %v2250, %v2254
  %v2256 = vadd.s32 %v2255, 536870912
  %v2257 = vshrl.u32 %v2256, 30
  %v2258 = vshll.u32 %v2257, 30
  %v2259 = vsub.s32 %v2255, %v2258
  %vm2260 = vcmp.lt.s32.totalorder %v2259, 0
  %v2261 = vsub.s32 0, %v2259
  %v2262 = vsel %vm2260, %v2261, %v2259
  %v2263 = vclz %v2262
  %v2264 = vsub.s32 %v2263, 2
  %vm2265 = vcmp.gt.s32.totalorder 0, %v2264
  %v2266 = vsel %vm2265, 0, %v2264
  %v2267 = vsub.s32 32, %v2266
  %v2268 = vshll.u32 %v2259, %v2266
  %v2269 = vshrl.u32 %v2251, %v2267
  %v2270 = vor.u32 %v2268, %v2269
  %v2271 = vsub.s32 4294967266, %v2266
  %v2272 = vadd.s32 %v2271, 127
  %v2273 = vshll.u32 %v2272, 23
  %v2274 = vor.u32 4788187, %v2273
  %v2275 = vand.u32 2147483647, %v2274
  %v2277 = vcvt.s32.f32 %v2270
  %v2278 = vmul.f32 %v2277, %v2275
  %v2279 = vxor.u32 %v2278, 2147483648
  %v2280 = vsel %vm2197, %v2279, %v2278
  %v2281 = vsub.s32 4, %v2257
  %v2282 = vsel %vm2197, %v2281, %v2257
  %v2283 = vsel %vm2196, %v16, %v2280
  %v2284 = vsel %vm2196, 0, %v2282
  %v2285 = vcosq.f32.pop %v2283
  %v2286 = vsinq.f32.pop %v2283
  %vm2287 = vweird.f32 %v16
  %v2288 = vadd.s32 %v2284, 3
  %v2289 = vand.u32 %v2288, 3
  %vm2290 = vcmp.lt.s32.totalorder %v2289, 2
  %vm2291 = vcmp.eq.s32.totalorder %v2289, 0
  %v2292 = vxor.u32 %v2286, 2147483648
  %v2293 = vsel %vm2291, %v2285, %v2292
  %vm2294 = vcmp.eq.s32.totalorder %v2289, 2
  %v2295 = vxor.u32 %v2285, 2147483648
  %v2296 = vsel %vm2294, %v2295, %v2286
  %v2297 = vsel %vm2290, %v2293, %v2296
  %v2298 = vsel %vm2287, nan, %v2297
  %v2299 = vand.u32 2147483647, %v17
  %vm2300 = vcmp.le.f32.partialorder %v2299, 0.7853982
  %vm2301 = vcmp.lt.s32.totalorder %v17, 0
  %v2302 = vand.u32 %v17, 2139095040
  %v2303 = vshrl.u32 %v2302, 23
  %v2304 = vsub.s32 %v2303, 127
  %v2305 = vand.u32 2147483647, %v17
  %v2306 = vand.u32 %v2305, 8388607
  %v2307 = vor.u32 %v2306, 8388608
  %v2308 = vsub.s32 0, %v2307
  %v2309 = vadd.s32 %v2304, 1
  %vm2310 = vcmp.gt.s32.totalorder %v2309, 0
  %v2311 = vsel %vm2310, %v2309, 0
  %v2312 = vshrl.u32 %v2311, 5
  %v2313 = vand.u32 %v2311, 31
  %v2314 = vsub.s32 32, %v2313
  %v2315 = vshrl.u32 683565275, %v2314
  %v2316 = vshll.u32 683565275, %v2313
  %v2317 = vshrl.u32 2475754826, %v2314
  %v2318 = vor.u32 %v2316, %v2317
  %v2319 = vshll.u32 2475754826, %v2313
  %v2320 = vshrl.u32 2131351028, %v2314
  %v2321 = vor.u32 %v2319, %v2320
  %v2322 = vshll.u32 2131351028, %v2313
  %v2323 = vshrl.u32 2102212464, %v2314
  %v2324 = vor.u32 %v2322, %v2323
  %v2325 = vshll.u32 2102212464, %v2313
  %v2326 = vshrl.u32 920167782, %v2314
  %v2327 = vor.u32 %v2325, %v2326
  %v2328 = vshll.u32 920167782, %v2313
  %v2329 = vshrl.u32 1326507024, %v2314
  %v2330 = vor.u32 %v2328, %v2329
  %vm2331 = vcmp.lt.s32.totalorder %v2312, 1
  %vm2332 = vcmp.lt.s32.totalorder %v2312, 2
  %vm2333 = vcmp.lt.s32.totalorder %v2312, 3
  %vm2334 = vcmp.lt.s32.totalorder %v2312, 4
  %v2335 = vsel %vm2331, %v2315, %v2318
  %v2336 = vsel %vm2334, %v2324, 2102212464
  %v2337 = vsel %vm2333, %v2321, %v2336
  %v2338 = vsel %vm2332, %v2335, %v2337
  %v2339 = vsel %vm2331, %v2318, %v2321
  %v2340 = vsel %vm2334, %v2327, 920167782
  %v2341 = vsel %vm2333, %v2324, %v2340
  %v2342 = vsel %vm2332, %v2339, %v2341
  %v2343 = vsel %vm2331, %v2321, %v2324
  %v2344 = vsel %vm2334, %v2330, 1326507024
  %v2345 = vsel %vm2333, %v2327, %v2344
  %v2346 = vsel %vm2332, %v2343, %v2345
  %v2347 = vshll.u32 %v2307, 8
  %v2348 = vmul.u32.u64.compose %v2347, %v2346
  %v2349 = vextract.low.u32 %v2348
  %v2350 = vextract.high.u32 %v2348
  %v2351 = vmul.u32.u64.compose %v2347, %v2342
  %v2352 = vextract.low.u32 %v2351
  %v2353 = vextract.high.u32 %v2351
  %v2354 = vmul.u32 %v2347, %v2338
  %v2355 = vadd.s32 %v2350, %v2352
  %vm2356 = vc.u32 %v2350, %v2352
  %v2357 = vadd.s32 %v2353, 1
  %v2358 = vsel %vm2356, %v2357, %v2353
  %v2359 = vadd.s32 %v2354, %v2358
  %v2360 = vadd.s32 %v2359, 536870912
  %v2361 = vshrl.u32 %v2360, 30
  %v2362 = vshll.u32 %v2361, 30
  %v2363 = vsub.s32 %v2359, %v2362
  %vm2364 = vcmp.lt.s32.totalorder %v2363, 0
  %v2365 = vsub.s32 0, %v2363
  %v2366 = vsel %vm2364, %v2365, %v2363
  %v2367 = vclz %v2366
  %v2368 = vsub.s32 %v2367, 2
  %vm2369 = vcmp.gt.s32.totalorder 0, %v2368
  %v2370 = vsel %vm2369, 0, %v2368
  %v2371 = vsub.s32 32, %v2370
  %v2372 = vshll.u32 %v2363, %v2370
  %v2373 = vshrl.u32 %v2355, %v2371
  %v2374 = vor.u32 %v2372, %v2373
  %v2375 = vsub.s32 4294967266, %v2370
  %v2376 = vadd.s32 %v2375, 127
  %v2377 = vshll.u32 %v2376, 23
  %v2378 = vor.u32 4788187, %v2377
  %v2379 = vand.u32 2147483647, %v2378
  %v2381 = vcvt.s32.f32 %v2374
  %v2382 = vmul.f32 %v2381, %v2379
  %v2383 = vxor.u32 %v2382, 2147483648
  %v2384 = vsel %vm2301, %v2383, %v2382
  %v2385 = vsub.s32 4, %v2361
  %v2386 = vsel %vm2301, %v2385, %v2361
  %v2387 = vsel %vm2300, %v17, %v2384
  %v2388 = vsel %vm2300, 0, %v2386
  %v2389 = vcosq.f32.pop %v2387
  %v2390 = vsinq.f32.pop %v2387
  %vm2391 = vweird.f32 %v17
  %v2392 = vadd.s32 %v2388, 3
  %v2393 = vand.u32 %v2392, 3
  %vm2394 = vcmp.lt.s32.totalorder %v2393, 2
  %vm2395 = vcmp.eq.s32.totalorder %v2393, 0
  %v2396 = vxor.u32 %v2390, 2147483648
  %v2397 = vsel %vm2395, %v2389, %v2396
  %vm2398 = vcmp.eq.s32.totalorder %v2393, 2
  %v2399 = vxor.u32 %v2389, 2147483648
  %v2400 = vsel %vm2398, %v2399, %v2390
  %v2401 = vsel %vm2394, %v2397, %v2400
  %v2402 = vsel %vm2391, nan, %v2401
  %v2403 = vand.u32 2147483647, %v18
  %vm2404 = vcmp.le.f32.partialorder %v2403, 0.7853982
  %vm2405 = vcmp.lt.s32.totalorder %v18, 0
  %v2406 = vand.u32 %v18, 2139095040
  %v2407 = vshrl.u32 %v2406, 23
  %v2408 = vsub.s32 %v2407, 127
  %v2409 = vand.u32 2147483647, %v18
  %v2410 = vand.u32 %v2409, 8388607
  %v2411 = vor.u32 %v2410, 8388608
  %v2412 = vsub.s32 0, %v2411
  %v2413 = vadd.s32 %v2408, 1
  %vm2414 = vcmp.gt.s32.totalorder %v2413, 0
  %v2415 = vsel %vm2414, %v2413, 0
  %v2416 = vshrl.u32 %v2415, 5
  %v2417 = vand.u32 %v2415, 31
  %v2418 = vsub.s32 32, %v2417
  %v2419 = vshrl.u32 683565275, %v2418
  %v2420 = vshll.u32 683565275, %v2417
  %v2421 = vshrl.u32 2475754826, %v2418
  %v2422 = vor.u32 %v2420, %v2421
  %v2423 = vshll.u32 2475754826, %v2417
  %v2424 = vshrl.u32 2131351028, %v2418
  %v2425 = vor.u32 %v2423, %v2424
  %v2426 = vshll.u32 2131351028, %v2417
  %v2427 = vshrl.u32 2102212464, %v2418
  %v2428 = vor.u32 %v2426, %v2427
  %v2429 = vshll.u32 2102212464, %v2417
  %v2430 = vshrl.u32 920167782, %v2418
  %v2431 = vor.u32 %v2429, %v2430
  %v2432 = vshll.u32 920167782, %v2417
  %v2433 = vshrl.u32 1326507024, %v2418
  %v2434 = vor.u32 %v2432, %v2433
  %vm2435 = vcmp.lt.s32.totalorder %v2416, 1
  %vm2436 = vcmp.lt.s32.totalorder %v2416, 2
  %vm2437 = vcmp.lt.s32.totalorder %v2416, 3
  %vm2438 = vcmp.lt.s32.totalorder %v2416, 4
  %v2439 = vsel %vm2435, %v2419, %v2422
  %v2440 = vsel %vm2438, %v2428, 2102212464
  %v2441 = vsel %vm2437, %v2425, %v2440
  %v2442 = vsel %vm2436, %v2439, %v2441
  %v2443 = vsel %vm2435, %v2422, %v2425
  %v2444 = vsel %vm2438, %v2431, 920167782
  %v2445 = vsel %vm2437, %v2428, %v2444
  %v2446 = vsel %vm2436, %v2443, %v2445
  %v2447 = vsel %vm2435, %v2425, %v2428
  %v2448 = vsel %vm2438, %v2434, 1326507024
  %v2449 = vsel %vm2437, %v2431, %v2448
  %v2450 = vsel %vm2436, %v2447, %v2449
  %v2451 = vshll.u32 %v2411, 8
  %v2452 = vmul.u32.u64.compose %v2451, %v2450
  %v2453 = vextract.low.u32 %v2452
  %v2454 = vextract.high.u32 %v2452
  %v2455 = vmul.u32.u64.compose %v2451, %v2446
  %v2456 = vextract.low.u32 %v2455
  %v2457 = vextract.high.u32 %v2455
  %v2458 = vmul.u32 %v2451, %v2442
  %v2459 = vadd.s32 %v2454, %v2456
  %vm2460 = vc.u32 %v2454, %v2456
  %v2461 = vadd.s32 %v2457, 1
  %v2462 = vsel %vm2460, %v2461, %v2457
  %v2463 = vadd.s32 %v2458, %v2462
  %v2464 = vadd.s32 %v2463, 536870912
  %v2465 = vshrl.u32 %v2464, 30
  %v2466 = vshll.u32 %v2465, 30
  %v2467 = vsub.s32 %v2463, %v2466
  %vm2468 = vcmp.lt.s32.totalorder %v2467, 0
  %v2469 = vsub.s32 0, %v2467
  %v2470 = vsel %vm2468, %v2469, %v2467
  %v2471 = vclz %v2470
  %v2472 = vsub.s32 %v2471, 2
  %vm2473 = vcmp.gt.s32.totalorder 0, %v2472
  %v2474 = vsel %vm2473, 0, %v2472
  %v2475 = vsub.s32 32, %v2474
  %v2476 = vshll.u32 %v2467, %v2474
  %v2477 = vshrl.u32 %v2459, %v2475
  %v2478 = vor.u32 %v2476, %v2477
  %v2479 = vsub.s32 4294967266, %v2474
  %v2480 = vadd.s32 %v2479, 127
  %v2481 = vshll.u32 %v2480, 23
  %v2482 = vor.u32 4788187, %v2481
  %v2483 = vand.u32 2147483647, %v2482
  %v2485 = vcvt.s32.f32 %v2478
  %v2486 = vmul.f32 %v2485, %v2483
  %v2487 = vxor.u32 %v2486, 2147483648
  %v2488 = vsel %vm2405, %v2487, %v2486
  %v2489 = vsub.s32 4, %v2465
  %v2490 = vsel %vm2405, %v2489, %v2465
  %v2491 = vsel %vm2404, %v18, %v2488
  %v2492 = vsel %vm2404, 0, %v2490
  %v2493 = vcosq.f32.pop %v2491
  %v2494 = vsinq.f32.pop %v2491
  %vm2495 = vweird.f32 %v18
  %v2496 = vadd.s32 %v2492, 3
  %v2497 = vand.u32 %v2496, 3
  %vm2498 = vcmp.lt.s32.totalorder %v2497, 2
  %vm2499 = vcmp.eq.s32.totalorder %v2497, 0
  %v2500 = vxor.u32 %v2494, 2147483648
  %v2501 = vsel %vm2499, %v2493, %v2500
  %vm2502 = vcmp.eq.s32.totalorder %v2497, 2
  %v2503 = vxor.u32 %v2493, 2147483648
  %v2504 = vsel %vm2502, %v2503, %v2494
  %v2505 = vsel %vm2498, %v2501, %v2504
  %v2506 = vsel %vm2495, nan, %v2505
  %v2507 = vand.u32 2147483647, %v19
  %vm2508 = vcmp.le.f32.partialorder %v2507, 0.7853982
  %vm2509 = vcmp.lt.s32.totalorder %v19, 0
  %v2510 = vand.u32 %v19, 2139095040
  %v2511 = vshrl.u32 %v2510, 23
  %v2512 = vsub.s32 %v2511, 127
  %v2513 = vand.u32 2147483647, %v19
  %v2514 = vand.u32 %v2513, 8388607
  %v2515 = vor.u32 %v2514, 8388608
  %v2516 = vsub.s32 0, %v2515
  %v2517 = vadd.s32 %v2512, 1
  %vm2518 = vcmp.gt.s32.totalorder %v2517, 0
  %v2519 = vsel %vm2518, %v2517, 0
  %v2520 = vshrl.u32 %v2519, 5
  %v2521 = vand.u32 %v2519, 31
  %v2522 = vsub.s32 32, %v2521
  %v2523 = vshrl.u32 683565275, %v2522
  %v2524 = vshll.u32 683565275, %v2521
  %v2525 = vshrl.u32 2475754826, %v2522
  %v2526 = vor.u32 %v2524, %v2525
  %v2527 = vshll.u32 2475754826, %v2521
  %v2528 = vshrl.u32 2131351028, %v2522
  %v2529 = vor.u32 %v2527, %v2528
  %v2530 = vshll.u32 2131351028, %v2521
  %v2531 = vshrl.u32 2102212464, %v2522
  %v2532 = vor.u32 %v2530, %v2531
  %v2533 = vshll.u32 2102212464, %v2521
  %v2534 = vshrl.u32 920167782, %v2522
  %v2535 = vor.u32 %v2533, %v2534
  %v2536 = vshll.u32 920167782, %v2521
  %v2537 = vshrl.u32 1326507024, %v2522
  %v2538 = vor.u32 %v2536, %v2537
  %vm2539 = vcmp.lt.s32.totalorder %v2520, 1
  %vm2540 = vcmp.lt.s32.totalorder %v2520, 2
  %vm2541 = vcmp.lt.s32.totalorder %v2520, 3
  %vm2542 = vcmp.lt.s32.totalorder %v2520, 4
  %v2543 = vsel %vm2539, %v2523, %v2526
  %v2544 = vsel %vm2542, %v2532, 2102212464
  %v2545 = vsel %vm2541, %v2529, %v2544
  %v2546 = vsel %vm2540, %v2543, %v2545
  %v2547 = vsel %vm2539, %v2526, %v2529
  %v2548 = vsel %vm2542, %v2535, 920167782
  %v2549 = vsel %vm2541, %v2532, %v2548
  %v2550 = vsel %vm2540, %v2547, %v2549
  %v2551 = vsel %vm2539, %v2529, %v2532
  %v2552 = vsel %vm2542, %v2538, 1326507024
  %v2553 = vsel %vm2541, %v2535, %v2552
  %v2554 = vsel %vm2540, %v2551, %v2553
  %v2555 = vshll.u32 %v2515, 8
  %v2556 = vmul.u32.u64.compose %v2555, %v2554
  %v2557 = vextract.low.u32 %v2556
  %v2558 = vextract.high.u32 %v2556
  %v2559 = vmul.u32.u64.compose %v2555, %v2550
  %v2560 = vextract.low.u32 %v2559
  %v2561 = vextract.high.u32 %v2559
  %v2562 = vmul.u32 %v2555, %v2546
  %v2563 = vadd.s32 %v2558, %v2560
  %vm2564 = vc.u32 %v2558, %v2560
  %v2565 = vadd.s32 %v2561, 1
  %v2566 = vsel %vm2564, %v2565, %v2561
  %v2567 = vadd.s32 %v2562, %v2566
  %v2568 = vadd.s32 %v2567, 536870912
  %v2569 = vshrl.u32 %v2568, 30
  %v2570 = vshll.u32 %v2569, 30
  %v2571 = vsub.s32 %v2567, %v2570
  %vm2572 = vcmp.lt.s32.totalorder %v2571, 0
  %v2573 = vsub.s32 0, %v2571
  %v2574 = vsel %vm2572, %v2573, %v2571
  %v2575 = vclz %v2574
  %v2576 = vsub.s32 %v2575, 2
  %vm2577 = vcmp.gt.s32.totalorder 0, %v2576
  %v2578 = vsel %vm2577, 0, %v2576
  %v2579 = vsub.s32 32, %v2578
  %v2580 = vshll.u32 %v2571, %v2578
  %v2581 = vshrl.u32 %v2563, %v2579
  %v2582 = vor.u32 %v2580, %v2581
  %v2583 = vsub.s32 4294967266, %v2578
  %v2584 = vadd.s32 %v2583, 127
  %v2585 = vshll.u32 %v2584, 23
  %v2586 = vor.u32 4788187, %v2585
  %v2587 = vand.u32 2147483647, %v2586
  %v2589 = vcvt.s32.f32 %v2582
  %v2590 = vmul.f32 %v2589, %v2587
  %v2591 = vxor.u32 %v2590, 2147483648
  %v2592 = vsel %vm2509, %v2591, %v2590
  %v2593 = vsub.s32 4, %v2569
  %v2594 = vsel %vm2509, %v2593, %v2569
  %v2595 = vsel %vm2508, %v19, %v2592
  %v2596 = vsel %vm2508, 0, %v2594
  %v2597 = vcosq.f32.pop %v2595
  %v2598 = vsinq.f32.pop %v2595
  %vm2599 = vweird.f32 %v19
  %v2600 = vadd.s32 %v2596, 3
  %v2601 = vand.u32 %v2600, 3
  %vm2602 = vcmp.lt.s32.totalorder %v2601, 2
  %vm2603 = vcmp.eq.s32.totalorder %v2601, 0
  %v2604 = vxor.u32 %v2598, 2147483648
  %v2605 = vsel %vm2603, %v2597, %v2604
  %vm2606 = vcmp.eq.s32.totalorder %v2601, 2
  %v2607 = vxor.u32 %v2597, 2147483648
  %v2608 = vsel %vm2606, %v2607, %v2598
  %v2609 = vsel %vm2602, %v2605, %v2608
  %v2610 = vsel %vm2599, nan, %v2609
  %v2611 = vand.u32 2147483647, %v20
  %vm2612 = vcmp.le.f32.partialorder %v2611, 0.7853982
  %vm2613 = vcmp.lt.s32.totalorder %v20, 0
  %v2614 = vand.u32 %v20, 2139095040
  %v2615 = vshrl.u32 %v2614, 23
  %v2616 = vsub.s32 %v2615, 127
  %v2617 = vand.u32 2147483647, %v20
  %v2618 = vand.u32 %v2617, 8388607
  %v2619 = vor.u32 %v2618, 8388608
  %v2620 = vsub.s32 0, %v2619
  %v2621 = vadd.s32 %v2616, 1
  %vm2622 = vcmp.gt.s32.totalorder %v2621, 0
  %v2623 = vsel %vm2622, %v2621, 0
  %v2624 = vshrl.u32 %v2623, 5
  %v2625 = vand.u32 %v2623, 31
  %v2626 = vsub.s32 32, %v2625
  %v2627 = vshrl.u32 683565275, %v2626
  %v2628 = vshll.u32 683565275, %v2625
  %v2629 = vshrl.u32 2475754826, %v2626
  %v2630 = vor.u32 %v2628, %v2629
  %v2631 = vshll.u32 2475754826, %v2625
  %v2632 = vshrl.u32 2131351028, %v2626
  %v2633 = vor.u32 %v2631, %v2632
  %v2634 = vshll.u32 2131351028, %v2625
  %v2635 = vshrl.u32 2102212464, %v2626
  %v2636 = vor.u32 %v2634, %v2635
  %v2637 = vshll.u32 2102212464, %v2625
  %v2638 = vshrl.u32 920167782, %v2626
  %v2639 = vor.u32 %v2637, %v2638
  %v2640 = vshll.u32 920167782, %v2625
  %v2641 = vshrl.u32 1326507024, %v2626
  %v2642 = vor.u32 %v2640, %v2641
  %vm2643 = vcmp.lt.s32.totalorder %v2624, 1
  %vm2644 = vcmp.lt.s32.totalorder %v2624, 2
  %vm2645 = vcmp.lt.s32.totalorder %v2624, 3
  %vm2646 = vcmp.lt.s32.totalorder %v2624, 4
  %v2647 = vsel %vm2643, %v2627, %v2630
  %v2648 = vsel %vm2646, %v2636, 2102212464
  %v2649 = vsel %vm2645, %v2633, %v2648
  %v2650 = vsel %vm2644, %v2647, %v2649
  %v2651 = vsel %vm2643, %v2630, %v2633
  %v2652 = vsel %vm2646, %v2639, 920167782
  %v2653 = vsel %vm2645, %v2636, %v2652
  %v2654 = vsel %vm2644, %v2651, %v2653
  %v2655 = vsel %vm2643, %v2633, %v2636
  %v2656 = vsel %vm2646, %v2642, 1326507024
  %v2657 = vsel %vm2645, %v2639, %v2656
  %v2658 = vsel %vm2644, %v2655, %v2657
  %v2659 = vshll.u32 %v2619, 8
  %v2660 = vmul.u32.u64.compose %v2659, %v2658
  %v2661 = vextract.low.u32 %v2660
  %v2662 = vextract.high.u32 %v2660
  %v2663 = vmul.u32.u64.compose %v2659, %v2654
  %v2664 = vextract.low.u32 %v2663
  %v2665 = vextract.high.u32 %v2663
  %v2666 = vmul.u32 %v2659, %v2650
  %v2667 = vadd.s32 %v2662, %v2664
  %vm2668 = vc.u32 %v2662, %v2664
  %v2669 = vadd.s32 %v2665, 1
  %v2670 = vsel %vm2668, %v2669, %v2665
  %v2671 = vadd.s32 %v2666, %v2670
  %v2672 = vadd.s32 %v2671, 536870912
  %v2673 = vshrl.u32 %v2672, 30
  %v2674 = vshll.u32 %v2673, 30
  %v2675 = vsub.s32 %v2671, %v2674
  %vm2676 = vcmp.lt.s32.totalorder %v2675, 0
  %v2677 = vsub.s32 0, %v2675
  %v2678 = vsel %vm2676, %v2677, %v2675
  %v2679 = vclz %v2678
  %v2680 = vsub.s32 %v2679, 2
  %vm2681 = vcmp.gt.s32.totalorder 0, %v2680
  %v2682 = vsel %vm2681, 0, %v2680
  %v2683 = vsub.s32 32, %v2682
  %v2684 = vshll.u32 %v2675, %v2682
  %v2685 = vshrl.u32 %v2667, %v2683
  %v2686 = vor.u32 %v2684, %v2685
  %v2687 = vsub.s32 4294967266, %v2682
  %v2688 = vadd.s32 %v2687, 127
  %v2689 = vshll.u32 %v2688, 23
  %v2690 = vor.u32 4788187, %v2689
  %v2691 = vand.u32 2147483647, %v2690
  %v2693 = vcvt.s32.f32 %v2686
  %v2694 = vmul.f32 %v2693, %v2691
  %v2695 = vxor.u32 %v2694, 2147483648
  %v2696 = vsel %vm2613, %v2695, %v2694
  %v2697 = vsub.s32 4, %v2673
  %v2698 = vsel %vm2613, %v2697, %v2673
  %v2699 = vsel %vm2612, %v20, %v2696
  %v2700 = vsel %vm2612, 0, %v2698
  %v2701 = vcosq.f32.pop %v2699
  %v2702 = vsinq.f32.pop %v2699
  %vm2703 = vweird.f32 %v20
  %v2704 = vadd.s32 %v2700, 3
  %v2705 = vand.u32 %v2704, 3
  %vm2706 = vcmp.lt.s32.totalorder %v2705, 2
  %vm2707 = vcmp.eq.s32.totalorder %v2705, 0
  %v2708 = vxor.u32 %v2702, 2147483648
  %v2709 = vsel %vm2707, %v2701, %v2708
  %vm2710 = vcmp.eq.s32.totalorder %v2705, 2
  %v2711 = vxor.u32 %v2701, 2147483648
  %v2712 = vsel %vm2710, %v2711, %v2702
  %v2713 = vsel %vm2706, %v2709, %v2712
  %v2714 = vsel %vm2703, nan, %v2713
  %v2715 = vand.u32 2147483647, %v21
  %vm2716 = vcmp.le.f32.partialorder %v2715, 0.7853982
  %vm2717 = vcmp.lt.s32.totalorder %v21, 0
  %v2718 = vand.u32 %v21, 2139095040
  %v2719 = vshrl.u32 %v2718, 23
  %v2720 = vsub.s32 %v2719, 127
  %v2721 = vand.u32 2147483647, %v21
  %v2722 = vand.u32 %v2721, 8388607
  %v2723 = vor.u32 %v2722, 8388608
  %v2724 = vsub.s32 0, %v2723
  %v2725 = vadd.s32 %v2720, 1
  %vm2726 = vcmp.gt.s32.totalorder %v2725, 0
  %v2727 = vsel %vm2726, %v2725, 0
  %v2728 = vshrl.u32 %v2727, 5
  %v2729 = vand.u32 %v2727, 31
  %v2730 = vsub.s32 32, %v2729
  %v2731 = vshrl.u32 683565275, %v2730
  %v2732 = vshll.u32 683565275, %v2729
  %v2733 = vshrl.u32 2475754826, %v2730
  %v2734 = vor.u32 %v2732, %v2733
  %v2735 = vshll.u32 2475754826, %v2729
  %v2736 = vshrl.u32 2131351028, %v2730
  %v2737 = vor.u32 %v2735, %v2736
  %v2738 = vshll.u32 2131351028, %v2729
  %v2739 = vshrl.u32 2102212464, %v2730
  %v2740 = vor.u32 %v2738, %v2739
  %v2741 = vshll.u32 2102212464, %v2729
  %v2742 = vshrl.u32 920167782, %v2730
  %v2743 = vor.u32 %v2741, %v2742
  %v2744 = vshll.u32 920167782, %v2729
  %v2745 = vshrl.u32 1326507024, %v2730
  %v2746 = vor.u32 %v2744, %v2745
  %vm2747 = vcmp.lt.s32.totalorder %v2728, 1
  %vm2748 = vcmp.lt.s32.totalorder %v2728, 2
  %vm2749 = vcmp.lt.s32.totalorder %v2728, 3
  %vm2750 = vcmp.lt.s32.totalorder %v2728, 4
  %v2751 = vsel %vm2747, %v2731, %v2734
  %v2752 = vsel %vm2750, %v2740, 2102212464
  %v2753 = vsel %vm2749, %v2737, %v2752
  %v2754 = vsel %vm2748, %v2751, %v2753
  %v2755 = vsel %vm2747, %v2734, %v2737
  %v2756 = vsel %vm2750, %v2743, 920167782
  %v2757 = vsel %vm2749, %v2740, %v2756
  %v2758 = vsel %vm2748, %v2755, %v2757
  %v2759 = vsel %vm2747, %v2737, %v2740
  %v2760 = vsel %vm2750, %v2746, 1326507024
  %v2761 = vsel %vm2749, %v2743, %v2760
  %v2762 = vsel %vm2748, %v2759, %v2761
  %v2763 = vshll.u32 %v2723, 8
  %v2764 = vmul.u32.u64.compose %v2763, %v2762
  %v2765 = vextract.low.u32 %v2764
  %v2766 = vextract.high.u32 %v2764
  %v2767 = vmul.u32.u64.compose %v2763, %v2758
  %v2768 = vextract.low.u32 %v2767
  %v2769 = vextract.high.u32 %v2767
  %v2770 = vmul.u32 %v2763, %v2754
  %v2771 = vadd.s32 %v2766, %v2768
  %vm2772 = vc.u32 %v2766, %v2768
  %v2773 = vadd.s32 %v2769, 1
  %v2774 = vsel %vm2772, %v2773, %v2769
  %v2775 = vadd.s32 %v2770, %v2774
  %v2776 = vadd.s32 %v2775, 536870912
  %v2777 = vshrl.u32 %v2776, 30
  %v2778 = vshll.u32 %v2777, 30
  %v2779 = vsub.s32 %v2775, %v2778
  %vm2780 = vcmp.lt.s32.totalorder %v2779, 0
  %v2781 = vsub.s32 0, %v2779
  %v2782 = vsel %vm2780, %v2781, %v2779
  %v2783 = vclz %v2782
  %v2784 = vsub.s32 %v2783, 2
  %vm2785 = vcmp.gt.s32.totalorder 0, %v2784
  %v2786 = vsel %vm2785, 0, %v2784
  %v2787 = vsub.s32 32, %v2786
  %v2788 = vshll.u32 %v2779, %v2786
  %v2789 = vshrl.u32 %v2771, %v2787
  %v2790 = vor.u32 %v2788, %v2789
  %v2791 = vsub.s32 4294967266, %v2786
  %v2792 = vadd.s32 %v2791, 127
  %v2793 = vshll.u32 %v2792, 23
  %v2794 = vor.u32 4788187, %v2793
  %v2795 = vand.u32 2147483647, %v2794
  %v2797 = vcvt.s32.f32 %v2790
  %v2798 = vmul.f32 %v2797, %v2795
  %v2799 = vxor.u32 %v2798, 2147483648
  %v2800 = vsel %vm2717, %v2799, %v2798
  %v2801 = vsub.s32 4, %v2777
  %v2802 = vsel %vm2717, %v2801, %v2777
  %v2803 = vsel %vm2716, %v21, %v2800
  %v2804 = vsel %vm2716, 0, %v2802
  %v2805 = vcosq.f32.pop %v2803
  %v2806 = vsinq.f32.pop %v2803
  %vm2807 = vweird.f32 %v21
  %v2808 = vadd.s32 %v2804, 3
  %v2809 = vand.u32 %v2808, 3
  %vm2810 = vcmp.lt.s32.totalorder %v2809, 2
  %vm2811 = vcmp.eq.s32.totalorder %v2809, 0
  %v2812 = vxor.u32 %v2806, 2147483648
  %v2813 = vsel %vm2811, %v2805, %v2812
  %vm2814 = vcmp.eq.s32.totalorder %v2809, 2
  %v2815 = vxor.u32 %v2805, 2147483648
  %v2816 = vsel %vm2814, %v2815, %v2806
  %v2817 = vsel %vm2810, %v2813, %v2816
  %v2818 = vsel %vm2807, nan, %v2817
  %v2819 = vand.u32 2147483647, %v22
  %vm2820 = vcmp.le.f32.partialorder %v2819, 0.7853982
  %vm2821 = vcmp.lt.s32.totalorder %v22, 0
  %v2822 = vand.u32 %v22, 2139095040
  %v2823 = vshrl.u32 %v2822, 23
  %v2824 = vsub.s32 %v2823, 127
  %v2825 = vand.u32 2147483647, %v22
  %v2826 = vand.u32 %v2825, 8388607
  %v2827 = vor.u32 %v2826, 8388608
  %v2828 = vsub.s32 0, %v2827
  %v2829 = vadd.s32 %v2824, 1
  %vm2830 = vcmp.gt.s32.totalorder %v2829, 0
  %v2831 = vsel %vm2830, %v2829, 0
  %v2832 = vshrl.u32 %v2831, 5
  %v2833 = vand.u32 %v2831, 31
  %v2834 = vsub.s32 32, %v2833
  %v2835 = vshrl.u32 683565275, %v2834
  %v2836 = vshll.u32 683565275, %v2833
  %v2837 = vshrl.u32 2475754826, %v2834
  %v2838 = vor.u32 %v2836, %v2837
  %v2839 = vshll.u32 2475754826, %v2833
  %v2840 = vshrl.u32 2131351028, %v2834
  %v2841 = vor.u32 %v2839, %v2840
  %v2842 = vshll.u32 2131351028, %v2833
  %v2843 = vshrl.u32 2102212464, %v2834
  %v2844 = vor.u32 %v2842, %v2843
  %v2845 = vshll.u32 2102212464, %v2833
  %v2846 = vshrl.u32 920167782, %v2834
  %v2847 = vor.u32 %v2845, %v2846
  %v2848 = vshll.u32 920167782, %v2833
  %v2849 = vshrl.u32 1326507024, %v2834
  %v2850 = vor.u32 %v2848, %v2849
  %vm2851 = vcmp.lt.s32.totalorder %v2832, 1
  %vm2852 = vcmp.lt.s32.totalorder %v2832, 2
  %vm2853 = vcmp.lt.s32.totalorder %v2832, 3
  %vm2854 = vcmp.lt.s32.totalorder %v2832, 4
  %v2855 = vsel %vm2851, %v2835, %v2838
  %v2856 = vsel %vm2854, %v2844, 2102212464
  %v2857 = vsel %vm2853, %v2841, %v2856
  %v2858 = vsel %vm2852, %v2855, %v2857
  %v2859 = vsel %vm2851, %v2838, %v2841
  %v2860 = vsel %vm2854, %v2847, 920167782
  %v2861 = vsel %vm2853, %v2844, %v2860
  %v2862 = vsel %vm2852, %v2859, %v2861
  %v2863 = vsel %vm2851, %v2841, %v2844
  %v2864 = vsel %vm2854, %v2850, 1326507024
  %v2865 = vsel %vm2853, %v2847, %v2864
  %v2866 = vsel %vm2852, %v2863, %v2865
  %v2867 = vshll.u32 %v2827, 8
  %v2868 = vmul.u32.u64.compose %v2867, %v2866
  %v2869 = vextract.low.u32 %v2868
  %v2870 = vextract.high.u32 %v2868
  %v2871 = vmul.u32.u64.compose %v2867, %v2862
  %v2872 = vextract.low.u32 %v2871
  %v2873 = vextract.high.u32 %v2871
  %v2874 = vmul.u32 %v2867, %v2858
  %v2875 = vadd.s32 %v2870, %v2872
  %vm2876 = vc.u32 %v2870, %v2872
  %v2877 = vadd.s32 %v2873, 1
  %v2878 = vsel %vm2876, %v2877, %v2873
  %v2879 = vadd.s32 %v2874, %v2878
  %v2880 = vadd.s32 %v2879, 536870912
  %v2881 = vshrl.u32 %v2880, 30
  %v2882 = vshll.u32 %v2881, 30
  %v2883 = vsub.s32 %v2879, %v2882
  %vm2884 = vcmp.lt.s32.totalorder %v2883, 0
  %v2885 = vsub.s32 0, %v2883
  %v2886 = vsel %vm2884, %v2885, %v2883
  %v2887 = vclz %v2886
  %v2888 = vsub.s32 %v2887, 2
  %vm2889 = vcmp.gt.s32.totalorder 0, %v2888
  %v2890 = vsel %vm2889, 0, %v2888
  %v2891 = vsub.s32 32, %v2890
  %v2892 = vshll.u32 %v2883, %v2890
  %v2893 = vshrl.u32 %v2875, %v2891
  %v2894 = vor.u32 %v2892, %v2893
  %v2895 = vsub.s32 4294967266, %v2890
  %v2896 = vadd.s32 %v2895, 127
  %v2897 = vshll.u32 %v2896, 23
  %v2898 = vor.u32 4788187, %v2897
  %v2899 = vand.u32 2147483647, %v2898
  %v2901 = vcvt.s32.f32 %v2894
  %v2902 = vmul.f32 %v2901, %v2899
  %v2903 = vxor.u32 %v2902, 2147483648
  %v2904 = vsel %vm2821, %v2903, %v2902
  %v2905 = vsub.s32 4, %v2881
  %v2906 = vsel %vm2821, %v2905, %v2881
  %v2907 = vsel %vm2820, %v22, %v2904
  %v2908 = vsel %vm2820, 0, %v2906
  %v2909 = vcosq.f32.pop %v2907
  %v2910 = vsinq.f32.pop %v2907
  %vm2911 = vweird.f32 %v22
  %v2912 = vadd.s32 %v2908, 3
  %v2913 = vand.u32 %v2912, 3
  %vm2914 = vcmp.lt.s32.totalorder %v2913, 2
  %vm2915 = vcmp.eq.s32.totalorder %v2913, 0
  %v2916 = vxor.u32 %v2910, 2147483648
  %v2917 = vsel %vm2915, %v2909, %v2916
  %vm2918 = vcmp.eq.s32.totalorder %v2913, 2
  %v2919 = vxor.u32 %v2909, 2147483648
  %v2920 = vsel %vm2918, %v2919, %v2910
  %v2921 = vsel %vm2914, %v2917, %v2920
  %v2922 = vsel %vm2911, nan, %v2921
  %v2923 = vand.u32 2147483647, %v23
  %vm2924 = vcmp.le.f32.partialorder %v2923, 0.7853982
  %vm2925 = vcmp.lt.s32.totalorder %v23, 0
  %v2926 = vand.u32 %v23, 2139095040
  %v2927 = vshrl.u32 %v2926, 23
  %v2928 = vsub.s32 %v2927, 127
  %v2929 = vand.u32 2147483647, %v23
  %v2930 = vand.u32 %v2929, 8388607
  %v2931 = vor.u32 %v2930, 8388608
  %v2932 = vsub.s32 0, %v2931
  %v2933 = vadd.s32 %v2928, 1
  %vm2934 = vcmp.gt.s32.totalorder %v2933, 0
  %v2935 = vsel %vm2934, %v2933, 0
  %v2936 = vshrl.u32 %v2935, 5
  %v2937 = vand.u32 %v2935, 31
  %v2938 = vsub.s32 32, %v2937
  %v2939 = vshrl.u32 683565275, %v2938
  %v2940 = vshll.u32 683565275, %v2937
  %v2941 = vshrl.u32 2475754826, %v2938
  %v2942 = vor.u32 %v2940, %v2941
  %v2943 = vshll.u32 2475754826, %v2937
  %v2944 = vshrl.u32 2131351028, %v2938
  %v2945 = vor.u32 %v2943, %v2944
  %v2946 = vshll.u32 2131351028, %v2937
  %v2947 = vshrl.u32 2102212464, %v2938
  %v2948 = vor.u32 %v2946, %v2947
  %v2949 = vshll.u32 2102212464, %v2937
  %v2950 = vshrl.u32 920167782, %v2938
  %v2951 = vor.u32 %v2949, %v2950
  %v2952 = vshll.u32 920167782, %v2937
  %v2953 = vshrl.u32 1326507024, %v2938
  %v2954 = vor.u32 %v2952, %v2953
  %vm2955 = vcmp.lt.s32.totalorder %v2936, 1
  %vm2956 = vcmp.lt.s32.totalorder %v2936, 2
  %vm2957 = vcmp.lt.s32.totalorder %v2936, 3
  %vm2958 = vcmp.lt.s32.totalorder %v2936, 4
  %v2959 = vsel %vm2955, %v2939, %v2942
  %v2960 = vsel %vm2958, %v2948, 2102212464
  %v2961 = vsel %vm2957, %v2945, %v2960
  %v2962 = vsel %vm2956, %v2959, %v2961
  %v2963 = vsel %vm2955, %v2942, %v2945
  %v2964 = vsel %vm2958, %v2951, 920167782
  %v2965 = vsel %vm2957, %v2948, %v2964
  %v2966 = vsel %vm2956, %v2963, %v2965
  %v2967 = vsel %vm2955, %v2945, %v2948
  %v2968 = vsel %vm2958, %v2954, 1326507024
  %v2969 = vsel %vm2957, %v2951, %v2968
  %v2970 = vsel %vm2956, %v2967, %v2969
  %v2971 = vshll.u32 %v2931, 8
  %v2972 = vmul.u32.u64.compose %v2971, %v2970
  %v2973 = vextract.low.u32 %v2972
  %v2974 = vextract.high.u32 %v2972
  %v2975 = vmul.u32.u64.compose %v2971, %v2966
  %v2976 = vextract.low.u32 %v2975
  %v2977 = vextract.high.u32 %v2975
  %v2978 = vmul.u32 %v2971, %v2962
  %v2979 = vadd.s32 %v2974, %v2976
  %vm2980 = vc.u32 %v2974, %v2976
  %v2981 = vadd.s32 %v2977, 1
  %v2982 = vsel %vm2980, %v2981, %v2977
  %v2983 = vadd.s32 %v2978, %v2982
  %v2984 = vadd.s32 %v2983, 536870912
  %v2985 = vshrl.u32 %v2984, 30
  %v2986 = vshll.u32 %v2985, 30
  %v2987 = vsub.s32 %v2983, %v2986
  %vm2988 = vcmp.lt.s32.totalorder %v2987, 0
  %v2989 = vsub.s32 0, %v2987
  %v2990 = vsel %vm2988, %v2989, %v2987
  %v2991 = vclz %v2990
  %v2992 = vsub.s32 %v2991, 2
  %vm2993 = vcmp.gt.s32.totalorder 0, %v2992
  %v2994 = vsel %vm2993, 0, %v2992
  %v2995 = vsub.s32 32, %v2994
  %v2996 = vshll.u32 %v2987, %v2994
  %v2997 = vshrl.u32 %v2979, %v2995
  %v2998 = vor.u32 %v2996, %v2997
  %v2999 = vsub.s32 4294967266, %v2994
  %v3000 = vadd.s32 %v2999, 127
  %v3001 = vshll.u32 %v3000, 23
  %v3002 = vor.u32 4788187, %v3001
  %v3003 = vand.u32 2147483647, %v3002
  %v3005 = vcvt.s32.f32 %v2998
  %v3006 = vmul.f32 %v3005, %v3003
  %v3007 = vxor.u32 %v3006, 2147483648
  %v3008 = vsel %vm2925, %v3007, %v3006
  %v3009 = vsub.s32 4, %v2985
  %v3010 = vsel %vm2925, %v3009, %v2985
  %v3011 = vsel %vm2924, %v23, %v3008
  %v3012 = vsel %vm2924, 0, %v3010
  %v3013 = vcosq.f32.pop %v3011
  %v3014 = vsinq.f32.pop %v3011
  %vm3015 = vweird.f32 %v23
  %v3016 = vadd.s32 %v3012, 3
  %v3017 = vand.u32 %v3016, 3
  %vm3018 = vcmp.lt.s32.totalorder %v3017, 2
  %vm3019 = vcmp.eq.s32.totalorder %v3017, 0
  %v3020 = vxor.u32 %v3014, 2147483648
  %v3021 = vsel %vm3019, %v3013, %v3020
  %vm3022 = vcmp.eq.s32.totalorder %v3017, 2
  %v3023 = vxor.u32 %v3013, 2147483648
  %v3024 = vsel %vm3022, %v3023, %v3014
  %v3025 = vsel %vm3018, %v3021, %v3024
  %v3026 = vsel %vm3015, nan, %v3025
  %v3027 = vand.u32 2147483647, %v24
  %vm3028 = vcmp.le.f32.partialorder %v3027, 0.7853982
  %vm3029 = vcmp.lt.s32.totalorder %v24, 0
  %v3030 = vand.u32 %v24, 2139095040
  %v3031 = vshrl.u32 %v3030, 23
  %v3032 = vsub.s32 %v3031, 127
  %v3033 = vand.u32 2147483647, %v24
  %v3034 = vand.u32 %v3033, 8388607
  %v3035 = vor.u32 %v3034, 8388608
  %v3036 = vsub.s32 0, %v3035
  %v3037 = vadd.s32 %v3032, 1
  %vm3038 = vcmp.gt.s32.totalorder %v3037, 0
  %v3039 = vsel %vm3038, %v3037, 0
  %v3040 = vshrl.u32 %v3039, 5
  %v3041 = vand.u32 %v3039, 31
  %v3042 = vsub.s32 32, %v3041
  %v3043 = vshrl.u32 683565275, %v3042
  %v3044 = vshll.u32 683565275, %v3041
  %v3045 = vshrl.u32 2475754826, %v3042
  %v3046 = vor.u32 %v3044, %v3045
  %v3047 = vshll.u32 2475754826, %v3041
  %v3048 = vshrl.u32 2131351028, %v3042
  %v3049 = vor.u32 %v3047, %v3048
  %v3050 = vshll.u32 2131351028, %v3041
  %v3051 = vshrl.u32 2102212464, %v3042
  %v3052 = vor.u32 %v3050, %v3051
  %v3053 = vshll.u32 2102212464, %v3041
  %v3054 = vshrl.u32 920167782, %v3042
  %v3055 = vor.u32 %v3053, %v3054
  %v3056 = vshll.u32 920167782, %v3041
  %v3057 = vshrl.u32 1326507024, %v3042
  %v3058 = vor.u32 %v3056, %v3057
  %vm3059 = vcmp.lt.s32.totalorder %v3040, 1
  %vm3060 = vcmp.lt.s32.totalorder %v3040, 2
  %vm3061 = vcmp.lt.s32.totalorder %v3040, 3
  %vm3062 = vcmp.lt.s32.totalorder %v3040, 4
  %v3063 = vsel %vm3059, %v3043, %v3046
  %v3064 = vsel %vm3062, %v3052, 2102212464
  %v3065 = vsel %vm3061, %v3049, %v3064
  %v3066 = vsel %vm3060, %v3063, %v3065
  %v3067 = vsel %vm3059, %v3046, %v3049
  %v3068 = vsel %vm3062, %v3055, 920167782
  %v3069 = vsel %vm3061, %v3052, %v3068
  %v3070 = vsel %vm3060, %v3067, %v3069
  %v3071 = vsel %vm3059, %v3049, %v3052
  %v3072 = vsel %vm3062, %v3058, 1326507024
  %v3073 = vsel %vm3061, %v3055, %v3072
  %v3074 = vsel %vm3060, %v3071, %v3073
  %v3075 = vshll.u32 %v3035, 8
  %v3076 = vmul.u32.u64.compose %v3075, %v3074
  %v3077 = vextract.low.u32 %v3076
  %v3078 = vextract.high.u32 %v3076
  %v3079 = vmul.u32.u64.compose %v3075, %v3070
  %v3080 = vextract.low.u32 %v3079
  %v3081 = vextract.high.u32 %v3079
  %v3082 = vmul.u32 %v3075, %v3066
  %v3083 = vadd.s32 %v3078, %v3080
  %vm3084 = vc.u32 %v3078, %v3080
  %v3085 = vadd.s32 %v3081, 1
  %v3086 = vsel %vm3084, %v3085, %v3081
  %v3087 = vadd.s32 %v3082, %v3086
  %v3088 = vadd.s32 %v3087, 536870912
  %v3089 = vshrl.u32 %v3088, 30
  %v3090 = vshll.u32 %v3089, 30
  %v3091 = vsub.s32 %v3087, %v3090
  %vm3092 = vcmp.lt.s32.totalorder %v3091, 0
  %v3093 = vsub.s32 0, %v3091
  %v3094 = vsel %vm3092, %v3093, %v3091
  %v3095 = vclz %v3094
  %v3096 = vsub.s32 %v3095, 2
  %vm3097 = vcmp.gt.s32.totalorder 0, %v3096
  %v3098 = vsel %vm3097, 0, %v3096
  %v3099 = vsub.s32 32, %v3098
  %v3100 = vshll.u32 %v3091, %v3098
  %v3101 = vshrl.u32 %v3083, %v3099
  %v3102 = vor.u32 %v3100, %v3101
  %v3103 = vsub.s32 4294967266, %v3098
  %v3104 = vadd.s32 %v3103, 127
  %v3105 = vshll.u32 %v3104, 23
  %v3106 = vor.u32 4788187, %v3105
  %v3107 = vand.u32 2147483647, %v3106
  %v3109 = vcvt.s32.f32 %v3102
  %v3110 = vmul.f32 %v3109, %v3107
  %v3111 = vxor.u32 %v3110, 2147483648
  %v3112 = vsel %vm3029, %v3111, %v3110
  %v3113 = vsub.s32 4, %v3089
  %v3114 = vsel %vm3029, %v3113, %v3089
  %v3115 = vsel %vm3028, %v24, %v3112
  %v3116 = vsel %vm3028, 0, %v3114
  %v3117 = vcosq.f32.pop %v3115
  %v3118 = vsinq.f32.pop %v3115
  %vm3119 = vweird.f32 %v24
  %v3120 = vadd.s32 %v3116, 3
  %v3121 = vand.u32 %v3120, 3
  %vm3122 = vcmp.lt.s32.totalorder %v3121, 2
  %vm3123 = vcmp.eq.s32.totalorder %v3121, 0
  %v3124 = vxor.u32 %v3118, 2147483648
  %v3125 = vsel %vm3123, %v3117, %v3124
  %vm3126 = vcmp.eq.s32.totalorder %v3121, 2
  %v3127 = vxor.u32 %v3117, 2147483648
  %v3128 = vsel %vm3126, %v3127, %v3118
  %v3129 = vsel %vm3122, %v3125, %v3128
  %v3130 = vsel %vm3119, nan, %v3129
  %v3131 = vand.u32 2147483647, %v25
  %vm3132 = vcmp.le.f32.partialorder %v3131, 0.7853982
  %vm3133 = vcmp.lt.s32.totalorder %v25, 0
  %v3134 = vand.u32 %v25, 2139095040
  %v3135 = vshrl.u32 %v3134, 23
  %v3136 = vsub.s32 %v3135, 127
  %v3137 = vand.u32 2147483647, %v25
  %v3138 = vand.u32 %v3137, 8388607
  %v3139 = vor.u32 %v3138, 8388608
  %v3140 = vsub.s32 0, %v3139
  %v3141 = vadd.s32 %v3136, 1
  %vm3142 = vcmp.gt.s32.totalorder %v3141, 0
  %v3143 = vsel %vm3142, %v3141, 0
  %v3144 = vshrl.u32 %v3143, 5
  %v3145 = vand.u32 %v3143, 31
  %v3146 = vsub.s32 32, %v3145
  %v3147 = vshrl.u32 683565275, %v3146
  %v3148 = vshll.u32 683565275, %v3145
  %v3149 = vshrl.u32 2475754826, %v3146
  %v3150 = vor.u32 %v3148, %v3149
  %v3151 = vshll.u32 2475754826, %v3145
  %v3152 = vshrl.u32 2131351028, %v3146
  %v3153 = vor.u32 %v3151, %v3152
  %v3154 = vshll.u32 2131351028, %v3145
  %v3155 = vshrl.u32 2102212464, %v3146
  %v3156 = vor.u32 %v3154, %v3155
  %v3157 = vshll.u32 2102212464, %v3145
  %v3158 = vshrl.u32 920167782, %v3146
  %v3159 = vor.u32 %v3157, %v3158
  %v3160 = vshll.u32 920167782, %v3145
  %v3161 = vshrl.u32 1326507024, %v3146
  %v3162 = vor.u32 %v3160, %v3161
  %vm3163 = vcmp.lt.s32.totalorder %v3144, 1
  %vm3164 = vcmp.lt.s32.totalorder %v3144, 2
  %vm3165 = vcmp.lt.s32.totalorder %v3144, 3
  %vm3166 = vcmp.lt.s32.totalorder %v3144, 4
  %v3167 = vsel %vm3163, %v3147, %v3150
  %v3168 = vsel %vm3166, %v3156, 2102212464
  %v3169 = vsel %vm3165, %v3153, %v3168
  %v3170 = vsel %vm3164, %v3167, %v3169
  %v3171 = vsel %vm3163, %v3150, %v3153
  %v3172 = vsel %vm3166, %v3159, 920167782
  %v3173 = vsel %vm3165, %v3156, %v3172
  %v3174 = vsel %vm3164, %v3171, %v3173
  %v3175 = vsel %vm3163, %v3153, %v3156
  %v3176 = vsel %vm3166, %v3162, 1326507024
  %v3177 = vsel %vm3165, %v3159, %v3176
  %v3178 = vsel %vm3164, %v3175, %v3177
  %v3179 = vshll.u32 %v3139, 8
  %v3180 = vmul.u32.u64.compose %v3179, %v3178
  %v3181 = vextract.low.u32 %v3180
  %v3182 = vextract.high.u32 %v3180
  %v3183 = vmul.u32.u64.compose %v3179, %v3174
  %v3184 = vextract.low.u32 %v3183
  %v3185 = vextract.high.u32 %v3183
  %v3186 = vmul.u32 %v3179, %v3170
  %v3187 = vadd.s32 %v3182, %v3184
  %vm3188 = vc.u32 %v3182, %v3184
  %v3189 = vadd.s32 %v3185, 1
  %v3190 = vsel %vm3188, %v3189, %v3185
  %v3191 = vadd.s32 %v3186, %v3190
  %v3192 = vadd.s32 %v3191, 536870912
  %v3193 = vshrl.u32 %v3192, 30
  %v3194 = vshll.u32 %v3193, 30
  %v3195 = vsub.s32 %v3191, %v3194
  %vm3196 = vcmp.lt.s32.totalorder %v3195, 0
  %v3197 = vsub.s32 0, %v3195
  %v3198 = vsel %vm3196, %v3197, %v3195
  %v3199 = vclz %v3198
  %v3200 = vsub.s32 %v3199, 2
  %vm3201 = vcmp.gt.s32.totalorder 0, %v3200
  %v3202 = vsel %vm3201, 0, %v3200
  %v3203 = vsub.s32 32, %v3202
  %v3204 = vshll.u32 %v3195, %v3202
  %v3205 = vshrl.u32 %v3187, %v3203
  %v3206 = vor.u32 %v3204, %v3205
  %v3207 = vsub.s32 4294967266, %v3202
  %v3208 = vadd.s32 %v3207, 127
  %v3209 = vshll.u32 %v3208, 23
  %v3210 = vor.u32 4788187, %v3209
  %v3211 = vand.u32 2147483647, %v3210
  %v3213 = vcvt.s32.f32 %v3206
  %v3214 = vmul.f32 %v3213, %v3211
  %v3215 = vxor.u32 %v3214, 2147483648
  %v3216 = vsel %vm3133, %v3215, %v3214
  %v3217 = vsub.s32 4, %v3193
  %v3218 = vsel %vm3133, %v3217, %v3193
  %v3219 = vsel %vm3132, %v25, %v3216
  %v3220 = vsel %vm3132, 0, %v3218
  %v3221 = vcosq.f32.pop %v3219
  %v3222 = vsinq.f32.pop %v3219
  %vm3223 = vweird.f32 %v25
  %v3224 = vadd.s32 %v3220, 3
  %v3225 = vand.u32 %v3224, 3
  %vm3226 = vcmp.lt.s32.totalorder %v3225, 2
  %vm3227 = vcmp.eq.s32.totalorder %v3225, 0
  %v3228 = vxor.u32 %v3222, 2147483648
  %v3229 = vsel %vm3227, %v3221, %v3228
  %vm3230 = vcmp.eq.s32.totalorder %v3225, 2
  %v3231 = vxor.u32 %v3221, 2147483648
  %v3232 = vsel %vm3230, %v3231, %v3222
  %v3233 = vsel %vm3226, %v3229, %v3232
  %v3234 = vsel %vm3223, nan, %v3233
  %v3235 = vand.u32 2147483647, %v26
  %vm3236 = vcmp.le.f32.partialorder %v3235, 0.7853982
  %vm3237 = vcmp.lt.s32.totalorder %v26, 0
  %v3238 = vand.u32 %v26, 2139095040
  %v3239 = vshrl.u32 %v3238, 23
  %v3240 = vsub.s32 %v3239, 127
  %v3241 = vand.u32 2147483647, %v26
  %v3242 = vand.u32 %v3241, 8388607
  %v3243 = vor.u32 %v3242, 8388608
  %v3244 = vsub.s32 0, %v3243
  %v3245 = vadd.s32 %v3240, 1
  %vm3246 = vcmp.gt.s32.totalorder %v3245, 0
  %v3247 = vsel %vm3246, %v3245, 0
  %v3248 = vshrl.u32 %v3247, 5
  %v3249 = vand.u32 %v3247, 31
  %v3250 = vsub.s32 32, %v3249
  %v3251 = vshrl.u32 683565275, %v3250
  %v3252 = vshll.u32 683565275, %v3249
  %v3253 = vshrl.u32 2475754826, %v3250
  %v3254 = vor.u32 %v3252, %v3253
  %v3255 = vshll.u32 2475754826, %v3249
  %v3256 = vshrl.u32 2131351028, %v3250
  %v3257 = vor.u32 %v3255, %v3256
  %v3258 = vshll.u32 2131351028, %v3249
  %v3259 = vshrl.u32 2102212464, %v3250
  %v3260 = vor.u32 %v3258, %v3259
  %v3261 = vshll.u32 2102212464, %v3249
  %v3262 = vshrl.u32 920167782, %v3250
  %v3263 = vor.u32 %v3261, %v3262
  %v3264 = vshll.u32 920167782, %v3249
  %v3265 = vshrl.u32 1326507024, %v3250
  %v3266 = vor.u32 %v3264, %v3265
  %vm3267 = vcmp.lt.s32.totalorder %v3248, 1
  %vm3268 = vcmp.lt.s32.totalorder %v3248, 2
  %vm3269 = vcmp.lt.s32.totalorder %v3248, 3
  %vm3270 = vcmp.lt.s32.totalorder %v3248, 4
  %v3271 = vsel %vm3267, %v3251, %v3254
  %v3272 = vsel %vm3270, %v3260, 2102212464
  %v3273 = vsel %vm3269, %v3257, %v3272
  %v3274 = vsel %vm3268, %v3271, %v3273
  %v3275 = vsel %vm3267, %v3254, %v3257
  %v3276 = vsel %vm3270, %v3263, 920167782
  %v3277 = vsel %vm3269, %v3260, %v3276
  %v3278 = vsel %vm3268, %v3275, %v3277
  %v3279 = vsel %vm3267, %v3257, %v3260
  %v3280 = vsel %vm3270, %v3266, 1326507024
  %v3281 = vsel %vm3269, %v3263, %v3280
  %v3282 = vsel %vm3268, %v3279, %v3281
  %v3283 = vshll.u32 %v3243, 8
  %v3284 = vmul.u32.u64.compose %v3283, %v3282
  %v3285 = vextract.low.u32 %v3284
  %v3286 = vextract.high.u32 %v3284
  %v3287 = vmul.u32.u64.compose %v3283, %v3278
  %v3288 = vextract.low.u32 %v3287
  %v3289 = vextract.high.u32 %v3287
  %v3290 = vmul.u32 %v3283, %v3274
  %v3291 = vadd.s32 %v3286, %v3288
  %vm3292 = vc.u32 %v3286, %v3288
  %v3293 = vadd.s32 %v3289, 1
  %v3294 = vsel %vm3292, %v3293, %v3289
  %v3295 = vadd.s32 %v3290, %v3294
  %v3296 = vadd.s32 %v3295, 536870912
  %v3297 = vshrl.u32 %v3296, 30
  %v3298 = vshll.u32 %v3297, 30
  %v3299 = vsub.s32 %v3295, %v3298
  %vm3300 = vcmp.lt.s32.totalorder %v3299, 0
  %v3301 = vsub.s32 0, %v3299
  %v3302 = vsel %vm3300, %v3301, %v3299
  %v3303 = vclz %v3302
  %v3304 = vsub.s32 %v3303, 2
  %vm3305 = vcmp.gt.s32.totalorder 0, %v3304
  %v3306 = vsel %vm3305, 0, %v3304
  %v3307 = vsub.s32 32, %v3306
  %v3308 = vshll.u32 %v3299, %v3306
  %v3309 = vshrl.u32 %v3291, %v3307
  %v3310 = vor.u32 %v3308, %v3309
  %v3311 = vsub.s32 4294967266, %v3306
  %v3312 = vadd.s32 %v3311, 127
  %v3313 = vshll.u32 %v3312, 23
  %v3314 = vor.u32 4788187, %v3313
  %v3315 = vand.u32 2147483647, %v3314
  %v3317 = vcvt.s32.f32 %v3310
  %v3318 = vmul.f32 %v3317, %v3315
  %v3319 = vxor.u32 %v3318, 2147483648
  %v3320 = vsel %vm3237, %v3319, %v3318
  %v3321 = vsub.s32 4, %v3297
  %v3322 = vsel %vm3237, %v3321, %v3297
  %v3323 = vsel %vm3236, %v26, %v3320
  %v3324 = vsel %vm3236, 0, %v3322
  %v3325 = vcosq.f32.pop %v3323
  %v3326 = vsinq.f32.pop %v3323
  %vm3327 = vweird.f32 %v26
  %v3328 = vadd.s32 %v3324, 3
  %v3329 = vand.u32 %v3328, 3
  %vm3330 = vcmp.lt.s32.totalorder %v3329, 2
  %vm3331 = vcmp.eq.s32.totalorder %v3329, 0
  %v3332 = vxor.u32 %v3326, 2147483648
  %v3333 = vsel %vm3331, %v3325, %v3332
  %vm3334 = vcmp.eq.s32.totalorder %v3329, 2
  %v3335 = vxor.u32 %v3325, 2147483648
  %v3336 = vsel %vm3334, %v3335, %v3326
  %v3337 = vsel %vm3330, %v3333, %v3336
  %v3338 = vsel %vm3327, nan, %v3337
  %3355 = vrot.lane.b32.xlu0 %v1778, 2
  %v3356 = vpop.permute.xlu0 %3355
  %3357 = vrot.lane.b32.xlu0 %v1882, 2
  %v3358 = vpop.permute.xlu0 %3357
  %3359 = vrot.lane.b32.xlu0 %v1986, 2
  %v3360 = vpop.permute.xlu0 %3359
  %3361 = vrot.lane.b32.xlu0 %v2090, 2
  %v3362 = vpop.permute.xlu0 %3361
  %3363 = vrot.lane.b32.xlu0 %v2194, 2
  %v3364 = vpop.permute.xlu0 %3363
  %3365 = vrot.lane.b32.xlu0 %v2298, 2
  %v3366 = vpop.permute.xlu0 %3365
  %3367 = vrot.lane.b32.xlu0 %v2402, 2
  %v3368 = vpop.permute.xlu0 %3367
  %3369 = vrot.lane.b32.xlu0 %v2506, 2
  %v3370 = vpop.permute.xlu0 %3369
  %3371 = vrot.lane.b32.xlu0 %v2610, 2
  %v3372 = vpop.permute.xlu0 %3371
  %3373 = vrot.lane.b32.xlu0 %v2714, 2
  %v3374 = vpop.permute.xlu0 %3373
  %3375 = vrot.lane.b32.xlu0 %v2818, 2
  %v3376 = vpop.permute.xlu0 %3375
  %3377 = vrot.lane.b32.xlu0 %v2922, 2
  %v3378 = vpop.permute.xlu0 %3377
  %3379 = vrot.lane.b32.xlu0 %v3026, 2
  %v3380 = vpop.permute.xlu0 %3379
  %3381 = vrot.lane.b32.xlu0 %v3130, 2
  %v3382 = vpop.permute.xlu0 %3381
  %3383 = vrot.lane.b32.xlu0 %v3234, 2
  %v3384 = vpop.permute.xlu0 %3383
  %3385 = vrot.lane.b32.xlu0 %v3338, 2
  %v3386 = vpop.permute.xlu0 %3385
  %3419 = vrot.lane.b32.xlu0 %v11, 2
  %v3420 = vpop.permute.xlu0 %3419
  %3421 = vrot.lane.b32.xlu0 %v12, 2
  %v3422 = vpop.permute.xlu0 %3421
  %3423 = vrot.lane.b32.xlu0 %v13, 2
  %v3424 = vpop.permute.xlu0 %3423
  %3425 = vrot.lane.b32.xlu0 %v14, 2
  %v3426 = vpop.permute.xlu0 %3425
  %3427 = vrot.lane.b32.xlu0 %v15, 2
  %v3428 = vpop.permute.xlu0 %3427
  %3429 = vrot.lane.b32.xlu0 %v16, 2
  %v3430 = vpop.permute.xlu0 %3429
  %3431 = vrot.lane.b32.xlu0 %v17, 2
  %v3432 = vpop.permute.xlu0 %3431
  %3433 = vrot.lane.b32.xlu0 %v18, 2
  %v3434 = vpop.permute.xlu0 %3433
  %3435 = vrot.lane.b32.xlu0 %v19, 2
  %v3436 = vpop.permute.xlu0 %3435
  %3437 = vrot.lane.b32.xlu0 %v20, 2
  %v3438 = vpop.permute.xlu0 %3437
  %3439 = vrot.lane.b32.xlu0 %v21, 2
  %v3440 = vpop.permute.xlu0 %3439
  %3441 = vrot.lane.b32.xlu0 %v22, 2
  %v3442 = vpop.permute.xlu0 %3441
  %3443 = vrot.lane.b32.xlu0 %v23, 2
  %v3444 = vpop.permute.xlu0 %3443
  %3445 = vrot.lane.b32.xlu0 %v24, 2
  %v3446 = vpop.permute.xlu0 %3445
  %3447 = vrot.lane.b32.xlu0 %v25, 2
  %v3448 = vpop.permute.xlu0 %3447
  %3449 = vrot.lane.b32.xlu0 %v26, 2
  %v3450 = vpop.permute.xlu0 %3449
  %vm3467 = vcmask 15360
  %v3468 = vsel %vm3467, %v129, %v3356
  %v3469 = vsel %vm3467, %v232, %v3358
  %v3470 = vsel %vm3467, %v335, %v3360
  %v3471 = vsel %vm3467, %v438, %v3362
  %v3472 = vsel %vm3467, %v541, %v3364
  %v3473 = vsel %vm3467, %v644, %v3366
  %v3474 = vsel %vm3467, %v747, %v3368
  %v3475 = vsel %vm3467, %v850, %v3370
  %v3476 = vsel %vm3467, %v953, %v3372
  %v3477 = vsel %vm3467, %v1056, %v3374
  %v3478 = vsel %vm3467, %v1159, %v3376
  %v3479 = vsel %vm3467, %v1262, %v3378
  %v3480 = vsel %vm3467, %v1365, %v3380
  %v3481 = vsel %vm3467, %v1468, %v3382
  %v3482 = vsel %vm3467, %v1571, %v3384
  %v3483 = vsel %vm3467, %v1674, %v3386
  %vm3484 = vcmask 31744
  %v3485 = vsel %vm3484, %v3468, %v3420
  %v3486 = vsel %vm3484, %v3469, %v3422
  %v3487 = vsel %vm3484, %v3470, %v3424
  %v3488 = vsel %vm3484, %v3471, %v3426
  %v3489 = vsel %vm3484, %v3472, %v3428
  %v3490 = vsel %vm3484, %v3473, %v3430
  %v3491 = vsel %vm3484, %v3474, %v3432
  %v3492 = vsel %vm3484, %v3475, %v3434
  %v3493 = vsel %vm3484, %v3476, %v3436
  %v3494 = vsel %vm3484, %v3477, %v3438
  %v3495 = vsel %vm3484, %v3478, %v3440
  %v3496 = vsel %vm3484, %v3479, %v3442
  %v3497 = vsel %vm3484, %v3480, %v3444
  %v3498 = vsel %vm3484, %v3481, %v3446
  %v3499 = vsel %vm3484, %v3482, %v3448
  %v3500 = vsel %vm3484, %v3483, %v3450
  %v3501 = vld [vmem:[%s1] sm:$0x3f]
  %v3502 = vld [vmem:[%s1 + $0x8] sm:$0x1]
  %v3503 = vlaneseq
  %v3504 = vshrl.u32 %v3503, 7
  %v3505 = vsub.s32 0, %v3504
  %v3506 = vrot.slane %v3502, %v3505
  %vm3507 = vcmask 48128
  %v3509 = vsel %vm3507, %v3485, 0
  %v3512 = vsel %vm3507, %v3486, 0
  %v3515 = vsel %vm3507, %v3487, 0
  %v3518 = vsel %vm3507, %v3488, 0
  %v3521 = vsel %vm3507, %v3489, 0
  %v3524 = vsel %vm3507, %v3490, 0
  %v3527 = vsel %vm3507, %v3491, 0
  %v3530 = vsel %vm3507, %v3492, 0
  %v3533 = vsel %vm3507, %v3493, 0
  %v3536 = vsel %vm3507, %v3494, 0
  %v3539 = vsel %vm3507, %v3495, 0
  %v3542 = vsel %vm3507, %v3496, 0
  %v3545 = vsel %vm3507, %v3497, 0
  %v3548 = vsel %vm3507, %v3498, 0
  %v3551 = vsel %vm3507, %v3499, 0
  %v3554 = vsel %vm3507, %v3500, 0
  %vm3556 = vcmask 1045504
  %v3558 = vsel %vm3556, %v3501, 0
  %3560 = vmatprep.subr.mxu0 0.0
  %3561 = vmatpush1.msra.mxu0 %v3558
  %3562 = vmatprep.subr.mxu0 0.0
  %3563 = vmatpush1.msra.mxu0 0.0
  %3564 = vmatprep.subr.mxu0 0.0
  %3565 = vmatpush1.msra.mxu0 0.0
  %3566 = vmatprep.subr.mxu0 0.0
  %3567 = vmatpush1.msra.mxu0 0.0
  %3568 = vmatprep.subr.mxu0 0.0
  %3569 = vmatpush1.msra.mxu0 0.0
  %3570 = vmatprep.subr.mxu0 0.0
  %3571 = vmatpush1.msra.mxu0 0.0
  %3572 = vmatprep.subr.mxu0 0.0
  %3573 = vmatpush1.msra.mxu0 0.0
  %3574 = vmatprep.subr.mxu0 0.0
  %3575 = vmatpush1.msra.mxu0 0.0
  %3576 = vmatprep.subr.mxu0 0.0
  %3577 = vmatpush1.msra.mxu0 0.0
  %3578 = vmatprep.subr.mxu0 0.0
  %3579 = vmatpush1.msra.mxu0 0.0
  %3580 = vmatprep.subr.mxu0 0.0
  %3581 = vmatpush1.msra.mxu0 0.0
  %3582 = vmatprep.subr.mxu0 0.0
  %3583 = vmatpush1.msra.mxu0 0.0
  %3584 = vmatprep.subr.mxu0 0.0
  %3585 = vmatpush1.msra.mxu0 0.0
  %3586 = vmatprep.subr.mxu0 0.0
  %3587 = vmatpush1.msra.mxu0 0.0
  %3588 = vmatprep.subr.mxu0 0.0
  %3589 = vmatpush1.msra.mxu0 0.0
  %3590 = vmatprep.subr.mxu0 0.0
  %3591 = vmatpush1.msra.mxu0 0.0
  %3592 = vmatprep.subr.mxu0 0.0
  %3593 = vmatpush1.msra.mxu0 0.0
  %3594 = vmatprep.subr.mxu0 0.0
  %3595 = vmatpush1.msra.mxu0 0.0
  %3596 = vmatprep.subr.mxu0 0.0
  %3597 = vmatpush1.msra.mxu0 0.0
  %3598 = vmatprep.subr.mxu0 0.0
  %3599 = vmatpush1.msra.mxu0 0.0
  %3600 = vmatprep.subr.mxu0 0.0
  %3601 = vmatpush1.msra.mxu0 0.0
  %3602 = vmatprep.subr.mxu0 0.0
  %3603 = vmatpush1.msra.mxu0 0.0
  %3604 = vmatprep.subr.mxu0 0.0
  %3605 = vmatpush1.msra.mxu0 0.0
  %3606 = vmatprep.subr.mxu0 0.0
  %3607 = vmatpush1.msra.mxu0 0.0
  %3608 = vmatprep.subr.mxu0 0.0
  %3609 = vmatpush1.msra.mxu0 0.0
  %3610 = vmatprep.subr.mxu0 0.0
  %3611 = vmatpush1.msra.mxu0 0.0
  %3612 = vmatprep.subr.mxu0 0.0
  %3613 = vmatpush1.msra.mxu0 0.0
  %3614 = vmatprep.subr.mxu0 0.0
  %3615 = vmatpush1.msra.mxu0 0.0
  %3616 = vmatprep.subr.mxu0 0.0
  %3617 = vmatpush1.msra.mxu0 0.0
  %3618 = vmatprep.subr.mxu0 0.0
  %3619 = vmatpush1.msra.mxu0 0.0
  %3620 = vmatprep.subr.mxu0 0.0
  %3621 = vmatpush1.msra.mxu0 0.0
  %3622 = vmatprep.subr.mxu0 0.0
  %3623 = vmatpush1.msra.mxu0 0.0
  %3624 = vmatprep.mubr.f32.mxu0 0.0
  %3625 = vmatmul.mubr.f32.gmra.mrb[0].mxu0 %v3509
  %v3626 = vpop.f32.mrb[0].mxu0
  %v3627 = vadd.f32 %v3506, %v3626
  %v3628 = vpop.f32.mrb[0].mxu0
  %3629 = vmatprep.mubr.f32.mxu0 0.0
  %3630 = vmatmul.mubr.f32.gmra.mrb[0].mxu0 %v3512
  %v3631 = vpop.f32.mrb[0].mxu0
  %v3632 = vadd.f32 %v3506, %v3631
  %v3633 = vpop.f32.mrb[0].mxu0
  %3634 = vmatprep.mubr.f32.mxu0 0.0
  %3635 = vmatmul.mubr.f32.gmra.mrb[0].mxu0 %v3515
  %v3636 = vpop.f32.mrb[0].mxu0
  %v3637 = vadd.f32 %v3506, %v3636
  %v3638 = vpop.f32.mrb[0].mxu0
  %3639 = vmatprep.mubr.f32.mxu0 0.0
  %3640 = vmatmul.mubr.f32.gmra.mrb[0].mxu0 %v3518
  %v3641 = vpop.f32.mrb[0].mxu0
  %v3642 = vadd.f32 %v3506, %v3641
  %v3643 = vpop.f32.mrb[0].mxu0
  %3644 = vmatprep.mubr.f32.mxu0 0.0
  %3645 = vmatmul.mubr.f32.gmra.mrb[0].mxu0 %v3521
  %v3646 = vpop.f32.mrb[0].mxu0
  %v3647 = vadd.f32 %v3506, %v3646
  %v3648 = vpop.f32.mrb[0].mxu0
  %3649 = vmatprep.mubr.f32.mxu0 0.0
  %3650 = vmatmul.mubr.f32.gmra.mrb[0].mxu0 %v3524
  %v3651 = vpop.f32.mrb[0].mxu0
  %v3652 = vadd.f32 %v3506, %v3651
  %v3653 = vpop.f32.mrb[0].mxu0
  %3654 = vmatprep.mubr.f32.mxu0 0.0
  %3655 = vmatmul.mubr.f32.gmra.mrb[0].mxu0 %v3527
  %v3656 = vpop.f32.mrb[0].mxu0
  %v3657 = vadd.f32 %v3506, %v3656
  %v3658 = vpop.f32.mrb[0].mxu0
  %3659 = vmatprep.mubr.f32.mxu0 0.0
  %3660 = vmatmul.mubr.f32.gmra.mrb[0].mxu0 %v3530
  %v3661 = vpop.f32.mrb[0].mxu0
  %v3662 = vadd.f32 %v3506, %v3661
  %v3663 = vpop.f32.mrb[0].mxu0
  %3664 = vmatprep.mubr.f32.mxu0 0.0
  %3665 = vmatmul.mubr.f32.gmra.mrb[0].mxu0 %v3533
  %v3666 = vpop.f32.mrb[0].mxu0
  %v3667 = vadd.f32 %v3506, %v3666
  %v3668 = vpop.f32.mrb[0].mxu0
  %3669 = vmatprep.mubr.f32.mxu0 0.0
  %3670 = vmatmul.mubr.f32.gmra.mrb[0].mxu0 %v3536
  %v3671 = vpop.f32.mrb[0].mxu0
  %v3672 = vadd.f32 %v3506, %v3671
  %v3673 = vpop.f32.mrb[0].mxu0
  %3674 = vmatprep.mubr.f32.mxu0 0.0
  %3675 = vmatmul.mubr.f32.gmra.mrb[0].mxu0 %v3539
  %v3676 = vpop.f32.mrb[0].mxu0
  %v3677 = vadd.f32 %v3506, %v3676
  %v3678 = vpop.f32.mrb[0].mxu0
  %3679 = vmatprep.mubr.f32.mxu0 0.0
  %3680 = vmatmul.mubr.f32.gmra.mrb[0].mxu0 %v3542
  %v3681 = vpop.f32.mrb[0].mxu0
  %v3682 = vadd.f32 %v3506, %v3681
  %v3683 = vpop.f32.mrb[0].mxu0
  %3684 = vmatprep.mubr.f32.mxu0 0.0
  %3685 = vmatmul.mubr.f32.gmra.mrb[0].mxu0 %v3545
  %v3686 = vpop.f32.mrb[0].mxu0
  %v3687 = vadd.f32 %v3506, %v3686
  %v3688 = vpop.f32.mrb[0].mxu0
  %3689 = vmatprep.mubr.f32.mxu0 0.0
  %3690 = vmatmul.mubr.f32.gmra.mrb[0].mxu0 %v3548
  %v3691 = vpop.f32.mrb[0].mxu0
  %v3692 = vadd.f32 %v3506, %v3691
  %v3693 = vpop.f32.mrb[0].mxu0
  %3694 = vmatprep.mubr.f32.mxu0 0.0
  %3695 = vmatmul.mubr.f32.gmra.mrb[0].mxu0 %v3551
  %v3696 = vpop.f32.mrb[0].mxu0
  %v3697 = vadd.f32 %v3506, %v3696
  %v3698 = vpop.f32.mrb[0].mxu0
  %3699 = vmatprep.mubr.f32.mxu0 0.0
  %3700 = vmatmul.mubr.f32.gmra.mrb[0].mxu0 %v3554
  %v3701 = vpop.f32.mrb[0].mxu0
  %v3702 = vadd.f32 %v3506, %v3701
  %v3703 = vpop.f32.mrb[0].mxu0
  %3704 = vdwg.mxu0
  %v3705 = vtanh.pop %v3627
  %v3706 = vtanh.pop %v3632
  %v3707 = vtanh.pop %v3637
  %v3708 = vtanh.pop %v3642
  %v3709 = vtanh.pop %v3647
  %v3710 = vtanh.pop %v3652
  %v3711 = vtanh.pop %v3657
  %v3712 = vtanh.pop %v3662
  %v3713 = vtanh.pop %v3667
  %v3714 = vtanh.pop %v3672
  %v3715 = vtanh.pop %v3677
  %v3716 = vtanh.pop %v3682
  %v3717 = vtanh.pop %v3687
  %v3718 = vtanh.pop %v3692
  %v3719 = vtanh.pop %v3697
  %v3720 = vtanh.pop %v3702
  %v3721 = vld [vmem:[%s1 + $0x10] sm:$0xff]
  %v3722 = vld [vmem:[%s1 + $0x18] sm:$0xff]
  %v3723 = vld [vmem:[%s1 + $0x20] sm:$0x1]
  %v3724 = vlaneseq
  %v3725 = vshrl.u32 %v3724, 7
  %v3726 = vsub.s32 0, %v3725
  %v3727 = vrot.slane %v3723, %v3726
  %vm3728 = vcmask 130048
  %v3730 = vsel %vm3728, %v3705, 0
  %v3733 = vsel %vm3728, %v3706, 0
  %v3736 = vsel %vm3728, %v3707, 0
  %v3739 = vsel %vm3728, %v3708, 0
  %v3742 = vsel %vm3728, %v3709, 0
  %v3745 = vsel %vm3728, %v3710, 0
  %v3748 = vsel %vm3728, %v3711, 0
  %v3751 = vsel %vm3728, %v3712, 0
  %v3754 = vsel %vm3728, %v3713, 0
  %v3757 = vsel %vm3728, %v3714, 0
  %v3760 = vsel %vm3728, %v3715, 0
  %v3763 = vsel %vm3728, %v3716, 0
  %v3766 = vsel %vm3728, %v3717, 0
  %v3769 = vsel %vm3728, %v3718, 0
  %v3772 = vsel %vm3728, %v3719, 0
  %v3775 = vsel %vm3728, %v3720, 0
  %3777 = vmatprep.subr.mxu0 0.0
  %3778 = vmatpush1.msra.mxu0 %v3721
  %3779 = vmatprep.subr.mxu0 0.0
  %3780 = vmatpush1.msra.mxu0 %v3722
  %3781 = vmatprep.subr.mxu0 0.0
  %3782 = vmatpush1.msra.mxu0 0.0
  %3783 = vmatprep.subr.mxu0 0.0
  %3784 = vmatpush1.msra.mxu0 0.0
  %3785 = vmatprep.subr.mxu0 0.0
  %3786 = vmatpush1.msra.mxu0 0.0
  %3787 = vmatprep.subr.mxu0 0.0
  %3788 = vmatpush1.msra.mxu0 0.0
  %3789 = vmatprep.subr.mxu0 0.0
  %3790 = vmatpush1.msra.mxu0 0.0
  %3791 = vmatprep.subr.mxu0 0.0
  %3792 = vmatpush1.msra.mxu0 0.0
  %3793 = vmatprep.subr.mxu0 0.0
  %3794 = vmatpush1.msra.mxu0 0.0
  %3795 = vmatprep.subr.mxu0 0.0
  %3796 = vmatpush1.msra.mxu0 0.0
  %3797 = vmatprep.subr.mxu0 0.0
  %3798 = vmatpush1.msra.mxu0 0.0
  %3799 = vmatprep.subr.mxu0 0.0
  %3800 = vmatpush1.msra.mxu0 0.0
  %3801 = vmatprep.subr.mxu0 0.0
  %3802 = vmatpush1.msra.mxu0 0.0
  %3803 = vmatprep.subr.mxu0 0.0
  %3804 = vmatpush1.msra.mxu0 0.0
  %3805 = vmatprep.subr.mxu0 0.0
  %3806 = vmatpush1.msra.mxu0 0.0
  %3807 = vmatprep.subr.mxu0 0.0
  %3808 = vmatpush1.msra.mxu0 0.0
  %3809 = vmatprep.subr.mxu0 0.0
  %3810 = vmatpush1.msra.mxu0 0.0
  %3811 = vmatprep.subr.mxu0 0.0
  %3812 = vmatpush1.msra.mxu0 0.0
  %3813 = vmatprep.subr.mxu0 0.0
  %3814 = vmatpush1.msra.mxu0 0.0
  %3815 = vmatprep.subr.mxu0 0.0
  %3816 = vmatpush1.msra.mxu0 0.0
  %3817 = vmatprep.subr.mxu0 0.0
  %3818 = vmatpush1.msra.mxu0 0.0
  %3819 = vmatprep.subr.mxu0 0.0
  %3820 = vmatpush1.msra.mxu0 0.0
  %3821 = vmatprep.subr.mxu0 0.0
  %3822 = vmatpush1.msra.mxu0 0.0
  %3823 = vmatprep.subr.mxu0 0.0
  %3824 = vmatpush1.msra.mxu0 0.0
  %3825 = vmatprep.subr.mxu0 0.0
  %3826 = vmatpush1.msra.mxu0 0.0
  %3827 = vmatprep.subr.mxu0 0.0
  %3828 = vmatpush1.msra.mxu0 0.0
  %3829 = vmatprep.subr.mxu0 0.0
  %3830 = vmatpush1.msra.mxu0 0.0
  %3831 = vmatprep.subr.mxu0 0.0
  %3832 = vmatpush1.msra.mxu0 0.0
  %3833 = vmatprep.subr.mxu0 0.0
  %3834 = vmatpush1.msra.mxu0 0.0
  %3835 = vmatprep.subr.mxu0 0.0
  %3836 = vmatpush1.msra.mxu0 0.0
  %3837 = vmatprep.subr.mxu0 0.0
  %3838 = vmatpush1.msra.mxu0 0.0
  %3839 = vmatprep.subr.mxu0 0.0
  %3840 = vmatpush1.msra.mxu0 0.0
  %3841 = vmatprep.mubr.f32.mxu0 0.0
  %3842 = vmatmul.mubr.f32.gmra.mrb[0].mxu0 %v3730
  %v3843 = vpop.f32.mrb[0].mxu0
  %v3844 = vadd.f32 %v3727, %v3843
  %v3845 = vpop.f32.mrb[0].mxu0
  %3846 = vmatprep.mubr.f32.mxu0 0.0
  %3847 = vmatmul.mubr.f32.gmra.mrb[0].mxu0 %v3733
  %v3848 = vpop.f32.mrb[0].mxu0
  %v3849 = vadd.f32 %v3727, %v3848
  %v3850 = vpop.f32.mrb[0].mxu0
  %3851 = vmatprep.mubr.f32.mxu0 0.0
  %3852 = vmatmul.mubr.f32.gmra.mrb[0].mxu0 %v3736
  %v3853 = vpop.f32.mrb[0].mxu0
  %v3854 = vadd.f32 %v3727, %v3853
  %v3855 = vpop.f32.mrb[0].mxu0
  %3856 = vmatprep.mubr.f32.mxu0 0.0
  %3857 = vmatmul.mubr.f32.gmra.mrb[0].mxu0 %v3739
  %v3858 = vpop.f32.mrb[0].mxu0
  %v3859 = vadd.f32 %v3727, %v3858
  %v3860 = vpop.f32.mrb[0].mxu0
  %3861 = vmatprep.mubr.f32.mxu0 0.0
  %3862 = vmatmul.mubr.f32.gmra.mrb[0].mxu0 %v3742
  %v3863 = vpop.f32.mrb[0].mxu0
  %v3864 = vadd.f32 %v3727, %v3863
  %v3865 = vpop.f32.mrb[0].mxu0
  %3866 = vmatprep.mubr.f32.mxu0 0.0
  %3867 = vmatmul.mubr.f32.gmra.mrb[0].mxu0 %v3745
  %v3868 = vpop.f32.mrb[0].mxu0
  %v3869 = vadd.f32 %v3727, %v3868
  %v3870 = vpop.f32.mrb[0].mxu0
  %3871 = vmatprep.mubr.f32.mxu0 0.0
  %3872 = vmatmul.mubr.f32.gmra.mrb[0].mxu0 %v3748
  %v3873 = vpop.f32.mrb[0].mxu0
  %v3874 = vadd.f32 %v3727, %v3873
  %v3875 = vpop.f32.mrb[0].mxu0
  %3876 = vmatprep.mubr.f32.mxu0 0.0
  %3877 = vmatmul.mubr.f32.gmra.mrb[0].mxu0 %v3751
  %v3878 = vpop.f32.mrb[0].mxu0
  %v3879 = vadd.f32 %v3727, %v3878
  %v3880 = vpop.f32.mrb[0].mxu0
  %3881 = vmatprep.mubr.f32.mxu0 0.0
  %3882 = vmatmul.mubr.f32.gmra.mrb[0].mxu0 %v3754
  %v3883 = vpop.f32.mrb[0].mxu0
  %v3884 = vadd.f32 %v3727, %v3883
  %v3885 = vpop.f32.mrb[0].mxu0
  %3886 = vmatprep.mubr.f32.mxu0 0.0
  %3887 = vmatmul.mubr.f32.gmra.mrb[0].mxu0 %v3757
  %v3888 = vpop.f32.mrb[0].mxu0
  %v3889 = vadd.f32 %v3727, %v3888
  %v3890 = vpop.f32.mrb[0].mxu0
  %3891 = vmatprep.mubr.f32.mxu0 0.0
  %3892 = vmatmul.mubr.f32.gmra.mrb[0].mxu0 %v3760
  %v3893 = vpop.f32.mrb[0].mxu0
  %v3894 = vadd.f32 %v3727, %v3893
  %v3895 = vpop.f32.mrb[0].mxu0
  %3896 = vmatprep.mubr.f32.mxu0 0.0
  %3897 = vmatmul.mubr.f32.gmra.mrb[0].mxu0 %v3763
  %v3898 = vpop.f32.mrb[0].mxu0
  %v3899 = vadd.f32 %v3727, %v3898
  %v3900 = vpop.f32.mrb[0].mxu0
  %3901 = vmatprep.mubr.f32.mxu0 0.0
  %3902 = vmatmul.mubr.f32.gmra.mrb[0].mxu0 %v3766
  %v3903 = vpop.f32.mrb[0].mxu0
  %v3904 = vadd.f32 %v3727, %v3903
  %v3905 = vpop.f32.mrb[0].mxu0
  %3906 = vmatprep.mubr.f32.mxu0 0.0
  %3907 = vmatmul.mubr.f32.gmra.mrb[0].mxu0 %v3769
  %v3908 = vpop.f32.mrb[0].mxu0
  %v3909 = vadd.f32 %v3727, %v3908
  %v3910 = vpop.f32.mrb[0].mxu0
  %3911 = vmatprep.mubr.f32.mxu0 0.0
  %3912 = vmatmul.mubr.f32.gmra.mrb[0].mxu0 %v3772
  %v3913 = vpop.f32.mrb[0].mxu0
  %v3914 = vadd.f32 %v3727, %v3913
  %v3915 = vpop.f32.mrb[0].mxu0
  %3916 = vmatprep.mubr.f32.mxu0 0.0
  %3917 = vmatmul.mubr.f32.gmra.mrb[0].mxu0 %v3775
  %v3918 = vpop.f32.mrb[0].mxu0
  %v3919 = vadd.f32 %v3727, %v3918
  %v3920 = vpop.f32.mrb[0].mxu0
  %3921 = vdwg.mxu0
  %v3922 = vtanh.pop %v3844
  %v3923 = vtanh.pop %v3849
  %v3924 = vtanh.pop %v3854
  %v3925 = vtanh.pop %v3859
  %v3926 = vtanh.pop %v3864
  %v3927 = vtanh.pop %v3869
  %v3928 = vtanh.pop %v3874
  %v3929 = vtanh.pop %v3879
  %v3930 = vtanh.pop %v3884
  %v3931 = vtanh.pop %v3889
  %v3932 = vtanh.pop %v3894
  %v3933 = vtanh.pop %v3899
  %v3934 = vtanh.pop %v3904
  %v3935 = vtanh.pop %v3909
  %v3936 = vtanh.pop %v3914
  %v3937 = vtanh.pop %v3919
  %v3938 = vld [vmem:[%s1 + $0x28] sm:$0xff]
  %v3939 = vld [vmem:[%s1 + $0x30] sm:$0xff]
  %v3940 = vld [vmem:[%s1 + $0x38] sm:$0xff]
  %v3941 = vld [vmem:[%s1 + $0x40] sm:$0xff]
  %v3942 = vld [vmem:[%s1 + $0x48] sm:$0x1]
  %v3943 = vlaneseq
  %v3944 = vshrl.u32 %v3943, 7
  %v3945 = vsub.s32 0, %v3944
  %v3946 = vrot.slane %v3942, %v3945
  %vm3947 = vcmask 261120
  %v3949 = vsel %vm3947, %v3922, 0
  %v3952 = vsel %vm3947, %v3923, 0
  %v3955 = vsel %vm3947, %v3924, 0
  %v3958 = vsel %vm3947, %v3925, 0
  %v3961 = vsel %vm3947, %v3926, 0
  %v3964 = vsel %vm3947, %v3927, 0
  %v3967 = vsel %vm3947, %v3928, 0
  %v3970 = vsel %vm3947, %v3929, 0
  %v3973 = vsel %vm3947, %v3930, 0
  %v3976 = vsel %vm3947, %v3931, 0
  %v3979 = vsel %vm3947, %v3932, 0
  %v3982 = vsel %vm3947, %v3933, 0
  %v3985 = vsel %vm3947, %v3934, 0
  %v3988 = vsel %vm3947, %v3935, 0
  %v3991 = vsel %vm3947, %v3936, 0
  %v3994 = vsel %vm3947, %v3937, 0
  %3996 = vmatprep.subr.mxu0 0.0
  %3997 = vmatpush1.msra.mxu0 %v3938
  %3998 = vmatprep.subr.mxu0 0.0
  %3999 = vmatpush1.msra.mxu0 %v3939
  %4000 = vmatprep.subr.mxu0 0.0
  %4001 = vmatpush1.msra.mxu0 %v3940
  %4002 = vmatprep.subr.mxu0 0.0
  %4003 = vmatpush1.msra.mxu0 %v3941
  %4004 = vmatprep.subr.mxu0 0.0
  %4005 = vmatpush1.msra.mxu0 0.0
  %4006 = vmatprep.subr.mxu0 0.0
  %4007 = vmatpush1.msra.mxu0 0.0
  %4008 = vmatprep.subr.mxu0 0.0
  %4009 = vmatpush1.msra.mxu0 0.0
  %4010 = vmatprep.subr.mxu0 0.0
  %4011 = vmatpush1.msra.mxu0 0.0
  %4012 = vmatprep.subr.mxu0 0.0
  %4013 = vmatpush1.msra.mxu0 0.0
  %4014 = vmatprep.subr.mxu0 0.0
  %4015 = vmatpush1.msra.mxu0 0.0
  %4016 = vmatprep.subr.mxu0 0.0
  %4017 = vmatpush1.msra.mxu0 0.0
  %4018 = vmatprep.subr.mxu0 0.0
  %4019 = vmatpush1.msra.mxu0 0.0
  %4020 = vmatprep.subr.mxu0 0.0
  %4021 = vmatpush1.msra.mxu0 0.0
  %4022 = vmatprep.subr.mxu0 0.0
  %4023 = vmatpush1.msra.mxu0 0.0
  %4024 = vmatprep.subr.mxu0 0.0
  %4025 = vmatpush1.msra.mxu0 0.0
  %4026 = vmatprep.subr.mxu0 0.0
  %4027 = vmatpush1.msra.mxu0 0.0
  %4028 = vmatprep.subr.mxu0 0.0
  %4029 = vmatpush1.msra.mxu0 0.0
  %4030 = vmatprep.subr.mxu0 0.0
  %4031 = vmatpush1.msra.mxu0 0.0
  %4032 = vmatprep.subr.mxu0 0.0
  %4033 = vmatpush1.msra.mxu0 0.0
  %4034 = vmatprep.subr.mxu0 0.0
  %4035 = vmatpush1.msra.mxu0 0.0
  %4036 = vmatprep.subr.mxu0 0.0
  %4037 = vmatpush1.msra.mxu0 0.0
  %4038 = vmatprep.subr.mxu0 0.0
  %4039 = vmatpush1.msra.mxu0 0.0
  %4040 = vmatprep.subr.mxu0 0.0
  %4041 = vmatpush1.msra.mxu0 0.0
  %4042 = vmatprep.subr.mxu0 0.0
  %4043 = vmatpush1.msra.mxu0 0.0
  %4044 = vmatprep.subr.mxu0 0.0
  %4045 = vmatpush1.msra.mxu0 0.0
  %4046 = vmatprep.subr.mxu0 0.0
  %4047 = vmatpush1.msra.mxu0 0.0
  %4048 = vmatprep.subr.mxu0 0.0
  %4049 = vmatpush1.msra.mxu0 0.0
  %4050 = vmatprep.subr.mxu0 0.0
  %4051 = vmatpush1.msra.mxu0 0.0
  %4052 = vmatprep.subr.mxu0 0.0
  %4053 = vmatpush1.msra.mxu0 0.0
  %4054 = vmatprep.subr.mxu0 0.0
  %4055 = vmatpush1.msra.mxu0 0.0
  %4056 = vmatprep.subr.mxu0 0.0
  %4057 = vmatpush1.msra.mxu0 0.0
  %4058 = vmatprep.subr.mxu0 0.0
  %4059 = vmatpush1.msra.mxu0 0.0
  %4060 = vmatprep.mubr.f32.mxu0 0.0
  %4061 = vmatmul.mubr.f32.gmra.mrb[0].mxu0 %v3949
  %v4062 = vpop.f32.mrb[0].mxu0
  %v4063 = vadd.f32 %v3946, %v4062
  %v4064 = vpop.f32.mrb[0].mxu0
  %4065 = vmatprep.mubr.f32.mxu0 0.0
  %4066 = vmatmul.mubr.f32.gmra.mrb[0].mxu0 %v3952
  %v4067 = vpop.f32.mrb[0].mxu0
  %v4068 = vadd.f32 %v3946, %v4067
  %v4069 = vpop.f32.mrb[0].mxu0
  %4070 = vmatprep.mubr.f32.mxu0 0.0
  %4071 = vmatmul.mubr.f32.gmra.mrb[0].mxu0 %v3955
  %v4072 = vpop.f32.mrb[0].mxu0
  %v4073 = vadd.f32 %v3946, %v4072
  %v4074 = vpop.f32.mrb[0].mxu0
  %4075 = vmatprep.mubr.f32.mxu0 0.0
  %4076 = vmatmul.mubr.f32.gmra.mrb[0].mxu0 %v3958
  %v4077 = vpop.f32.mrb[0].mxu0
  %v4078 = vadd.f32 %v3946, %v4077
  %v4079 = vpop.f32.mrb[0].mxu0
  %4080 = vmatprep.mubr.f32.mxu0 0.0
  %4081 = vmatmul.mubr.f32.gmra.mrb[0].mxu0 %v3961
  %v4082 = vpop.f32.mrb[0].mxu0
  %v4083 = vadd.f32 %v3946, %v4082
  %v4084 = vpop.f32.mrb[0].mxu0
  %4085 = vmatprep.mubr.f32.mxu0 0.0
  %4086 = vmatmul.mubr.f32.gmra.mrb[0].mxu0 %v3964
  %v4087 = vpop.f32.mrb[0].mxu0
  %v4088 = vadd.f32 %v3946, %v4087
  %v4089 = vpop.f32.mrb[0].mxu0
  %4090 = vmatprep.mubr.f32.mxu0 0.0
  %4091 = vmatmul.mubr.f32.gmra.mrb[0].mxu0 %v3967
  %v4092 = vpop.f32.mrb[0].mxu0
  %v4093 = vadd.f32 %v3946, %v4092
  %v4094 = vpop.f32.mrb[0].mxu0
  %4095 = vmatprep.mubr.f32.mxu0 0.0
  %4096 = vmatmul.mubr.f32.gmra.mrb[0].mxu0 %v3970
  %v4097 = vpop.f32.mrb[0].mxu0
  %v4098 = vadd.f32 %v3946, %v4097
  %v4099 = vpop.f32.mrb[0].mxu0
  %4100 = vmatprep.mubr.f32.mxu0 0.0
  %4101 = vmatmul.mubr.f32.gmra.mrb[0].mxu0 %v3973
  %v4102 = vpop.f32.mrb[0].mxu0
  %v4103 = vadd.f32 %v3946, %v4102
  %v4104 = vpop.f32.mrb[0].mxu0
  %4105 = vmatprep.mubr.f32.mxu0 0.0
  %4106 = vmatmul.mubr.f32.gmra.mrb[0].mxu0 %v3976
  %v4107 = vpop.f32.mrb[0].mxu0
  %v4108 = vadd.f32 %v3946, %v4107
  %v4109 = vpop.f32.mrb[0].mxu0
  %4110 = vmatprep.mubr.f32.mxu0 0.0
  %4111 = vmatmul.mubr.f32.gmra.mrb[0].mxu0 %v3979
  %v4112 = vpop.f32.mrb[0].mxu0
  %v4113 = vadd.f32 %v3946, %v4112
  %v4114 = vpop.f32.mrb[0].mxu0
  %4115 = vmatprep.mubr.f32.mxu0 0.0
  %4116 = vmatmul.mubr.f32.gmra.mrb[0].mxu0 %v3982
  %v4117 = vpop.f32.mrb[0].mxu0
  %v4118 = vadd.f32 %v3946, %v4117
  %v4119 = vpop.f32.mrb[0].mxu0
  %4120 = vmatprep.mubr.f32.mxu0 0.0
  %4121 = vmatmul.mubr.f32.gmra.mrb[0].mxu0 %v3985
  %v4122 = vpop.f32.mrb[0].mxu0
  %v4123 = vadd.f32 %v3946, %v4122
  %v4124 = vpop.f32.mrb[0].mxu0
  %4125 = vmatprep.mubr.f32.mxu0 0.0
  %4126 = vmatmul.mubr.f32.gmra.mrb[0].mxu0 %v3988
  %v4127 = vpop.f32.mrb[0].mxu0
  %v4128 = vadd.f32 %v3946, %v4127
  %v4129 = vpop.f32.mrb[0].mxu0
  %4130 = vmatprep.mubr.f32.mxu0 0.0
  %4131 = vmatmul.mubr.f32.gmra.mrb[0].mxu0 %v3991
  %v4132 = vpop.f32.mrb[0].mxu0
  %v4133 = vadd.f32 %v3946, %v4132
  %v4134 = vpop.f32.mrb[0].mxu0
  %4135 = vmatprep.mubr.f32.mxu0 0.0
  %4136 = vmatmul.mubr.f32.gmra.mrb[0].mxu0 %v3994
  %v4137 = vpop.f32.mrb[0].mxu0
  %v4138 = vadd.f32 %v3946, %v4137
  %v4139 = vpop.f32.mrb[0].mxu0
  %4140 = vdwg.mxu0
  %v4141 = vtanh.pop %v4063
  %v4142 = vtanh.pop %v4068
  %v4143 = vtanh.pop %v4073
  %v4144 = vtanh.pop %v4078
  %v4145 = vtanh.pop %v4083
  %v4146 = vtanh.pop %v4088
  %v4147 = vtanh.pop %v4093
  %v4148 = vtanh.pop %v4098
  %v4149 = vtanh.pop %v4103
  %v4150 = vtanh.pop %v4108
  %v4151 = vtanh.pop %v4113
  %v4152 = vtanh.pop %v4118
  %v4153 = vtanh.pop %v4123
  %v4154 = vtanh.pop %v4128
  %v4155 = vtanh.pop %v4133
  %v4156 = vtanh.pop %v4138
  %v4157 = vld [vmem:[%s1 + $0x50] sm:$0xff]
  %v4158 = vld [vmem:[%s1 + $0x58] sm:$0xff]
  %v4159 = vld [vmem:[%s1 + $0x60] sm:$0x1]
  %v4160 = vlaneseq
  %v4161 = vshrl.u32 %v4160, 7
  %v4162 = vsub.s32 0, %v4161
  %v4163 = vrot.slane %v4159, %v4162
  %v4165 = vsel %vm3728, %v4141, 0
  %v4168 = vsel %vm3728, %v4142, 0
  %v4171 = vsel %vm3728, %v4143, 0
  %v4174 = vsel %vm3728, %v4144, 0
  %v4177 = vsel %vm3728, %v4145, 0
  %v4180 = vsel %vm3728, %v4146, 0
  %v4183 = vsel %vm3728, %v4147, 0
  %v4186 = vsel %vm3728, %v4148, 0
  %v4189 = vsel %vm3728, %v4149, 0
  %v4192 = vsel %vm3728, %v4150, 0
  %v4195 = vsel %vm3728, %v4151, 0
  %v4198 = vsel %vm3728, %v4152, 0
  %v4201 = vsel %vm3728, %v4153, 0
  %v4204 = vsel %vm3728, %v4154, 0
  %v4207 = vsel %vm3728, %v4155, 0
  %v4210 = vsel %vm3728, %v4156, 0
  %4212 = vmatprep.subr.mxu0 0.0
  %4213 = vmatpush1.msra.mxu0 %v4157
  %4214 = vmatprep.subr.mxu0 0.0
  %4215 = vmatpush1.msra.mxu0 %v4158
  %4216 = vmatprep.subr.mxu0 0.0
  %4217 = vmatpush1.msra.mxu0 0.0
  %4218 = vmatprep.subr.mxu0 0.0
  %4219 = vmatpush1.msra.mxu0 0.0
  %4220 = vmatprep.subr.mxu0 0.0
  %4221 = vmatpush1.msra.mxu0 0.0
  %4222 = vmatprep.subr.mxu0 0.0
  %4223 = vmatpush1.msra.mxu0 0.0
  %4224 = vmatprep.subr.mxu0 0.0
  %4225 = vmatpush1.msra.mxu0 0.0
  %4226 = vmatprep.subr.mxu0 0.0
  %4227 = vmatpush1.msra.mxu0 0.0
  %4228 = vmatprep.subr.mxu0 0.0
  %4229 = vmatpush1.msra.mxu0 0.0
  %4230 = vmatprep.subr.mxu0 0.0
  %4231 = vmatpush1.msra.mxu0 0.0
  %4232 = vmatprep.subr.mxu0 0.0
  %4233 = vmatpush1.msra.mxu0 0.0
  %4234 = vmatprep.subr.mxu0 0.0
  %4235 = vmatpush1.msra.mxu0 0.0
  %4236 = vmatprep.subr.mxu0 0.0
  %4237 = vmatpush1.msra.mxu0 0.0
  %4238 = vmatprep.subr.mxu0 0.0
  %4239 = vmatpush1.msra.mxu0 0.0
  %4240 = vmatprep.subr.mxu0 0.0
  %4241 = vmatpush1.msra.mxu0 0.0
  %4242 = vmatprep.subr.mxu0 0.0
  %4243 = vmatpush1.msra.mxu0 0.0
  %4244 = vmatprep.subr.mxu0 0.0
  %4245 = vmatpush1.msra.mxu0 0.0
  %4246 = vmatprep.subr.mxu0 0.0
  %4247 = vmatpush1.msra.mxu0 0.0
  %4248 = vmatprep.subr.mxu0 0.0
  %4249 = vmatpush1.msra.mxu0 0.0
  %4250 = vmatprep.subr.mxu0 0.0
  %4251 = vmatpush1.msra.mxu0 0.0
  %4252 = vmatprep.subr.mxu0 0.0
  %4253 = vmatpush1.msra.mxu0 0.0
  %4254 = vmatprep.subr.mxu0 0.0
  %4255 = vmatpush1.msra.mxu0 0.0
  %4256 = vmatprep.subr.mxu0 0.0
  %4257 = vmatpush1.msra.mxu0 0.0
  %4258 = vmatprep.subr.mxu0 0.0
  %4259 = vmatpush1.msra.mxu0 0.0
  %4260 = vmatprep.subr.mxu0 0.0
  %4261 = vmatpush1.msra.mxu0 0.0
  %4262 = vmatprep.subr.mxu0 0.0
  %4263 = vmatpush1.msra.mxu0 0.0
  %4264 = vmatprep.subr.mxu0 0.0
  %4265 = vmatpush1.msra.mxu0 0.0
  %4266 = vmatprep.subr.mxu0 0.0
  %4267 = vmatpush1.msra.mxu0 0.0
  %4268 = vmatprep.subr.mxu0 0.0
  %4269 = vmatpush1.msra.mxu0 0.0
  %4270 = vmatprep.subr.mxu0 0.0
  %4271 = vmatpush1.msra.mxu0 0.0
  %4272 = vmatprep.subr.mxu0 0.0
  %4273 = vmatpush1.msra.mxu0 0.0
  %4274 = vmatprep.subr.mxu0 0.0
  %4275 = vmatpush1.msra.mxu0 0.0
  %4276 = vmatprep.mubr.f32.mxu0 0.0
  %4277 = vmatmul.mubr.f32.gmra.mrb[0].mxu0 %v4165
  %v4278 = vpop.f32.mrb[0].mxu0
  %v4279 = vadd.f32 %v4163, %v4278
  %v4280 = vpop.f32.mrb[0].mxu0
  %4281 = vmatprep.mubr.f32.mxu0 0.0
  %4282 = vmatmul.mubr.f32.gmra.mrb[0].mxu0 %v4168
  %v4283 = vpop.f32.mrb[0].mxu0
  %v4284 = vadd.f32 %v4163, %v4283
  %v4285 = vpop.f32.mrb[0].mxu0
  %4286 = vmatprep.mubr.f32.mxu0 0.0
  %4287 = vmatmul.mubr.f32.gmra.mrb[0].mxu0 %v4171
  %v4288 = vpop.f32.mrb[0].mxu0
  %v4289 = vadd.f32 %v4163, %v4288
  %v4290 = vpop.f32.mrb[0].mxu0
  %4291 = vmatprep.mubr.f32.mxu0 0.0
  %4292 = vmatmul.mubr.f32.gmra.mrb[0].mxu0 %v4174
  %v4293 = vpop.f32.mrb[0].mxu0
  %v4294 = vadd.f32 %v4163, %v4293
  %v4295 = vpop.f32.mrb[0].mxu0
  %4296 = vmatprep.mubr.f32.mxu0 0.0
  %4297 = vmatmul.mubr.f32.gmra.mrb[0].mxu0 %v4177
  %v4298 = vpop.f32.mrb[0].mxu0
  %v4299 = vadd.f32 %v4163, %v4298
  %v4300 = vpop.f32.mrb[0].mxu0
  %4301 = vmatprep.mubr.f32.mxu0 0.0
  %4302 = vmatmul.mubr.f32.gmra.mrb[0].mxu0 %v4180
  %v4303 = vpop.f32.mrb[0].mxu0
  %v4304 = vadd.f32 %v4163, %v4303
  %v4305 = vpop.f32.mrb[0].mxu0
  %4306 = vmatprep.mubr.f32.mxu0 0.0
  %4307 = vmatmul.mubr.f32.gmra.mrb[0].mxu0 %v4183
  %v4308 = vpop.f32.mrb[0].mxu0
  %v4309 = vadd.f32 %v4163, %v4308
  %v4310 = vpop.f32.mrb[0].mxu0
  %4311 = vmatprep.mubr.f32.mxu0 0.0
  %4312 = vmatmul.mubr.f32.gmra.mrb[0].mxu0 %v4186
  %v4313 = vpop.f32.mrb[0].mxu0
  %v4314 = vadd.f32 %v4163, %v4313
  %v4315 = vpop.f32.mrb[0].mxu0
  %4316 = vmatprep.mubr.f32.mxu0 0.0
  %4317 = vmatmul.mubr.f32.gmra.mrb[0].mxu0 %v4189
  %v4318 = vpop.f32.mrb[0].mxu0
  %v4319 = vadd.f32 %v4163, %v4318
  %v4320 = vpop.f32.mrb[0].mxu0
  %4321 = vmatprep.mubr.f32.mxu0 0.0
  %4322 = vmatmul.mubr.f32.gmra.mrb[0].mxu0 %v4192
  %v4323 = vpop.f32.mrb[0].mxu0
  %v4324 = vadd.f32 %v4163, %v4323
  %v4325 = vpop.f32.mrb[0].mxu0
  %4326 = vmatprep.mubr.f32.mxu0 0.0
  %4327 = vmatmul.mubr.f32.gmra.mrb[0].mxu0 %v4195
  %v4328 = vpop.f32.mrb[0].mxu0
  %v4329 = vadd.f32 %v4163, %v4328
  %v4330 = vpop.f32.mrb[0].mxu0
  %4331 = vmatprep.mubr.f32.mxu0 0.0
  %4332 = vmatmul.mubr.f32.gmra.mrb[0].mxu0 %v4198
  %v4333 = vpop.f32.mrb[0].mxu0
  %v4334 = vadd.f32 %v4163, %v4333
  %v4335 = vpop.f32.mrb[0].mxu0
  %4336 = vmatprep.mubr.f32.mxu0 0.0
  %4337 = vmatmul.mubr.f32.gmra.mrb[0].mxu0 %v4201
  %v4338 = vpop.f32.mrb[0].mxu0
  %v4339 = vadd.f32 %v4163, %v4338
  %v4340 = vpop.f32.mrb[0].mxu0
  %4341 = vmatprep.mubr.f32.mxu0 0.0
  %4342 = vmatmul.mubr.f32.gmra.mrb[0].mxu0 %v4204
  %v4343 = vpop.f32.mrb[0].mxu0
  %v4344 = vadd.f32 %v4163, %v4343
  %v4345 = vpop.f32.mrb[0].mxu0
  %4346 = vmatprep.mubr.f32.mxu0 0.0
  %4347 = vmatmul.mubr.f32.gmra.mrb[0].mxu0 %v4207
  %v4348 = vpop.f32.mrb[0].mxu0
  %v4349 = vadd.f32 %v4163, %v4348
  %v4350 = vpop.f32.mrb[0].mxu0
  %4351 = vmatprep.mubr.f32.mxu0 0.0
  %4352 = vmatmul.mubr.f32.gmra.mrb[0].mxu0 %v4210
  %v4353 = vpop.f32.mrb[0].mxu0
  %v4354 = vadd.f32 %v4163, %v4353
  %v4355 = vpop.f32.mrb[0].mxu0
  %4356 = vdwg.mxu0
  %4357 = vst.msk [vmem:[%s2] sm:$0xff] %vm3484, %v4279
  %4358 = vst.msk [vmem:[%s2 + $0x8] sm:$0xff] %vm3484, %v4284
  %4359 = vst.msk [vmem:[%s2 + $0x10] sm:$0xff] %vm3484, %v4289
  %4360 = vst.msk [vmem:[%s2 + $0x18] sm:$0xff] %vm3484, %v4294
  %4361 = vst.msk [vmem:[%s2 + $0x20] sm:$0xff] %vm3484, %v4299
  %4362 = vst.msk [vmem:[%s2 + $0x28] sm:$0xff] %vm3484, %v4304
  %4363 = vst.msk [vmem:[%s2 + $0x30] sm:$0xff] %vm3484, %v4309
  %4364 = vst.msk [vmem:[%s2 + $0x38] sm:$0xff] %vm3484, %v4314
  %4365 = vst.msk [vmem:[%s2 + $0x40] sm:$0xff] %vm3484, %v4319
  %4366 = vst.msk [vmem:[%s2 + $0x48] sm:$0xff] %vm3484, %v4324
  %4367 = vst.msk [vmem:[%s2 + $0x50] sm:$0xff] %vm3484, %v4329
  %4368 = vst.msk [vmem:[%s2 + $0x58] sm:$0xff] %vm3484, %v4334
  %4369 = vst.msk [vmem:[%s2 + $0x60] sm:$0xff] %vm3484, %v4339
  %4370 = vst.msk [vmem:[%s2 + $0x68] sm:$0xff] %vm3484, %v4344
  %4371 = vst.msk [vmem:[%s2 + $0x70] sm:$0xff] %vm3484, %v4349
  %4372 = vst.msk [vmem:[%s2 + $0x78] sm:$0xff] %vm3484, %v4354
  // Predicated region
  $region10: #{encoder1d_forward.1} parent=0 // pred_check
    _
  $region11: #{encoder1d_forward.1} parent=0 // pred_check_branch
    %4374 = sbr.rel (0) target = $region13
  $region12: #{encoder1d_forward.1} parent=0 // pred_region
    _
  $region13: #{encoder1d_forward.1} parent=0 // pred_fallthru
    _
  // Predicated region
  $region14: #{encoder1d_forward.1} parent=0 // pred_check
    _
  $region15: #{encoder1d_forward.1} parent=0 // pred_check_branch
    %4376 = sbr.rel (0) target = $region17
  $region16: #{encoder1d_forward.1} parent=0 // pred_region
    _
  $region17: #{encoder1d_forward.1} parent=0 // pred_fallthru
    _

</llo_original>
